<compile_context>
chip_gen: v6e
topology: v6e:2x2x1
jax: 0.10.0
libtpu: 0.0.40
codegen_flags: <defaults>
</compile_context>

<pallas_src>
import math
from functools import partial

import jax
import jax.numpy as jnp
from jax.experimental import pallas as pl
from jax.experimental.pallas import tpu as pltpu


# ----------------------------------------------------------------------------
# Generation-aware VMEM budget (v5e/v6e: 128 MiB physical -> 64 MiB scoped,
# v7x: 64 MiB physical -> keep the 32 MiB default).
# ----------------------------------------------------------------------------
try:
    _VMEM_CAP = pltpu.get_tpu_info().vmem_capacity_bytes
    VMEM_LIMIT = int(min(_VMEM_CAP // 2, 64 * 1024 * 1024))
except Exception:  # pragma: no cover - fall back to the compiler default
    VMEM_LIMIT = None


def _pick_tile(dim, target):
    """Use `target` if it evenly tiles `dim`, else fall back to the full dim."""
    return target if (dim % target == 0) else dim


# ----------------------------------------------------------------------------
# Kernel 1: tiled matmul + bias (+ optional ReLU)
# ----------------------------------------------------------------------------
def _matmul_bias_kernel(x_ref, w_ref, b_ref, o_ref, acc_ref, *, act):
    k = pl.program_id(2)

    @pl.when(k == 0)
    def _():
        acc_ref[...] = jnp.zeros_like(acc_ref)

    acc_ref[...] += jnp.dot(x_ref[...], w_ref[...],
                            preferred_element_type=jnp.float32)

    @pl.when(k == pl.num_programs(2) - 1)
    def _():
        y = acc_ref[...] + b_ref[...]
        if act == "relu":
            y = jnp.maximum(y, 0.0)
        o_ref[...] = y.astype(o_ref.dtype)


def matmul_bias(x, w, b, *, out_dtype, act="none",
                tm_target=256, tn_target=512, tk_target=512):
    """y = act(x @ w + b).  x:(M,K) bf16, w:(K,N) bf16, b:(1,N) f32."""
    M, K = x.shape
    N = w.shape[1]
    tm = _pick_tile(M, tm_target)
    tn = _pick_tile(N, tn_target)
    tk = _pick_tile(K, tk_target)
    grid = (M // tm, N // tn, K // tk)
    return pl.pallas_call(
        partial(_matmul_bias_kernel, act=act),
        out_shape=jax.ShapeDtypeStruct((M, N), out_dtype),
        grid_spec=pltpu.PrefetchScalarGridSpec(
            num_scalar_prefetch=0,
            grid=grid,
            in_specs=[
                pl.BlockSpec((tm, tk), lambda i, j, k: (i, k)),
                pl.BlockSpec((tk, tn), lambda i, j, k: (k, j)),
                pl.BlockSpec((1, tn), lambda i, j, k: (0, j)),
            ],
            out_specs=pl.BlockSpec((tm, tn), lambda i, j, k: (i, j)),
            scratch_shapes=[pltpu.VMEM((tm, tn), jnp.float32)],
        ),
        compiler_params=pltpu.CompilerParams(
            dimension_semantics=("parallel", "parallel", "arbitrary"),
            vmem_limit_bytes=VMEM_LIMIT),
    )(x, w, b)


# ----------------------------------------------------------------------------
# Kernel 2: tiled matmul + bias + residual + LayerNorm (f32 epilogue)
# emits both an f32 residual-stream output and a bf16 copy for the next matmul
# ----------------------------------------------------------------------------
def _matmul_res_ln_kernel(x_ref, w_ref, b_ref, r_ref, g_ref, be_ref,
                          o32_ref, obf_ref, acc_ref, *, eps):
    k = pl.program_id(1)

    @pl.when(k == 0)
    def _():
        acc_ref[...] = jnp.zeros_like(acc_ref)

    acc_ref[...] += jnp.dot(x_ref[...], w_ref[...],
                            preferred_element_type=jnp.float32)

    @pl.when(k == pl.num_programs(1) - 1)
    def _():
        y = acc_ref[...] + b_ref[...] + r_ref[...]
        mu = jnp.mean(y, axis=-1, keepdims=True)
        var = jnp.mean((y - mu) ** 2, axis=-1, keepdims=True)
        out = (y - mu) * jax.lax.rsqrt(var + eps) * g_ref[...] + be_ref[...]
        o32_ref[...] = out
        obf_ref[...] = out.astype(jnp.bfloat16)


def matmul_bias_residual_ln(x, w, b, res, gamma, beta, *, eps=1e-5,
                            tm_target=256, tk_target=512):
    """LayerNorm(x @ w + b + res).  N (=d_model) is kept untiled for the LN."""
    M, K = x.shape
    D = w.shape[1]
    tm = _pick_tile(M, tm_target)
    tk = _pick_tile(K, tk_target)
    grid = (M // tm, K // tk)
    return pl.pallas_call(
        partial(_matmul_res_ln_kernel, eps=eps),
        out_shape=(jax.ShapeDtypeStruct((M, D), jnp.float32),
                   jax.ShapeDtypeStruct((M, D), jnp.bfloat16)),
        grid_spec=pltpu.PrefetchScalarGridSpec(
            num_scalar_prefetch=0,
            grid=grid,
            in_specs=[
                pl.BlockSpec((tm, tk), lambda i, k: (i, k)),
                pl.BlockSpec((tk, D), lambda i, k: (k, 0)),
                pl.BlockSpec((1, D), lambda i, k: (0, 0)),
                pl.BlockSpec((tm, D), lambda i, k: (i, 0)),
                pl.BlockSpec((1, D), lambda i, k: (0, 0)),
                pl.BlockSpec((1, D), lambda i, k: (0, 0)),
            ],
            out_specs=(pl.BlockSpec((tm, D), lambda i, k: (i, 0)),
                       pl.BlockSpec((tm, D), lambda i, k: (i, 0))),
            scratch_shapes=[pltpu.VMEM((tm, D), jnp.float32)],
        ),
        compiler_params=pltpu.CompilerParams(
            dimension_semantics=("parallel", "arbitrary"),
            vmem_limit_bytes=VMEM_LIMIT),
    )(x, w, b, res, gamma, beta)


# ----------------------------------------------------------------------------
# Kernel 3: fused FFN (w1 + ReLU + w2) + residual + LayerNorm.
# The (tm, d_ff) hidden activation never leaves VMEM.
# ----------------------------------------------------------------------------
def _ffn_res_ln_kernel(x_ref, w1_ref, b1_ref, w2_ref, b2_ref, r_ref,
                       g_ref, be_ref, o32_ref, obf_ref, *, eps):
    h = jnp.dot(x_ref[...], w1_ref[...], preferred_element_type=jnp.float32)
    h = jnp.maximum(h + b1_ref[...], 0.0).astype(jnp.bfloat16)
    y = jnp.dot(h, w2_ref[...], preferred_element_type=jnp.float32)
    y = y + b2_ref[...] + r_ref[...]
    mu = jnp.mean(y, axis=-1, keepdims=True)
    var = jnp.mean((y - mu) ** 2, axis=-1, keepdims=True)
    out = (y - mu) * jax.lax.rsqrt(var + eps) * g_ref[...] + be_ref[...]
    o32_ref[...] = out
    obf_ref[...] = out.astype(jnp.bfloat16)


def ffn_residual_ln(x, w1, b1, w2, b2, res, gamma, beta, *, eps=1e-5,
                    tm_target=256):
    M, D = x.shape
    F = w1.shape[1]
    tm = _pick_tile(M, tm_target)
    grid = (M // tm,)
    return pl.pallas_call(
        partial(_ffn_res_ln_kernel, eps=eps),
        out_shape=(jax.ShapeDtypeStruct((M, D), jnp.float32),
                   jax.ShapeDtypeStruct((M, D), jnp.bfloat16)),
        grid_spec=pltpu.PrefetchScalarGridSpec(
            num_scalar_prefetch=0,
            grid=grid,
            in_specs=[
                pl.BlockSpec((tm, D), lambda i: (i, 0)),
                pl.BlockSpec((D, F), lambda i: (0, 0)),
                pl.BlockSpec((1, F), lambda i: (0, 0)),
                pl.BlockSpec((F, D), lambda i: (0, 0)),
                pl.BlockSpec((1, D), lambda i: (0, 0)),
                pl.BlockSpec((tm, D), lambda i: (i, 0)),
                pl.BlockSpec((1, D), lambda i: (0, 0)),
                pl.BlockSpec((1, D), lambda i: (0, 0)),
            ],
            out_specs=(pl.BlockSpec((tm, D), lambda i: (i, 0)),
                       pl.BlockSpec((tm, D), lambda i: (i, 0))),
        ),
        compiler_params=pltpu.CompilerParams(
            dimension_semantics=("parallel",),
            vmem_limit_bytes=VMEM_LIMIT),
    )(x, w1, b1, w2, b2, res, gamma, beta)


# ----------------------------------------------------------------------------
# Kernel 4: multi-head attention.  One grid step per batch element; all heads
# handled inside on (S, D) lane-dense blocks.  Pad/causal mask built in-kernel
# from a (B, 1, Sk) key-pad vector.  Softmax entirely in f32.
# ----------------------------------------------------------------------------
def _attention_kernel(kpad_ref, q_ref, k_ref, v_ref, o_ref, a_ref, *,
                      n_heads, d_head, scale, causal):
    Sq = q_ref.shape[1]
    Sk = k_ref.shape[1]

    # additive mask, shared across heads (1.0 in kpad == "masked out")
    neg = jnp.where(kpad_ref[0] > 0.0, -1e9, 0.0)            # (1, Sk) f32
    neg = jnp.broadcast_to(neg, (Sq, Sk))
    if causal:
        rows = jax.lax.broadcasted_iota(jnp.int32, (Sq, Sk), 0)
        cols = jax.lax.broadcasted_iota(jnp.int32, (Sq, Sk), 1)
        neg = jnp.where(cols > rows, -1e9, neg)

    # fold the 1/sqrt(d_head) scale into q once
    q = (q_ref[0].astype(jnp.float32) * scale).astype(jnp.bfloat16)  # (Sq, D)
    k = k_ref[0]                                                     # (Sk, D)
    v = v_ref[0]                                                     # (Sk, D)

    outs = []
    for h in range(n_heads):                                 # static unroll
        sl = slice(h * d_head, (h + 1) * d_head)
        s = jax.lax.dot_general(q[:, sl], k[:, sl],
                                (((1,), (1,)), ((), ())),
                                preferred_element_type=jnp.float32)  # (Sq, Sk)
        s = s + neg
        s = s - jnp.max(s, axis=-1, keepdims=True)
        e = jnp.exp(s)
        p = e * pl.reciprocal(jnp.sum(e, axis=-1, keepdims=True), approx=True)
        a_ref[0, h] = p
        outs.append(jnp.dot(p.astype(jnp.bfloat16), v[:, sl],
                            preferred_element_type=jnp.float32))
    o_ref[0] = jnp.concatenate(outs, axis=-1).astype(o_ref.dtype)    # (Sq, D)


def attention(q, k, v, kpad, *, n_heads, causal):
    """q:(B,Sq,D) bf16, k/v:(B,Sk,D) bf16, kpad:(B,1,Sk) f32."""
    B, Sq, D = q.shape
    Sk = k.shape[1]
    dh = D // n_heads
    scale = 1.0 / math.sqrt(dh)
    out, attn = pl.pallas_call(
        partial(_attention_kernel, n_heads=n_heads, d_head=dh,
                scale=scale, causal=causal),
        grid=(B,),
        out_shape=(jax.ShapeDtypeStruct((B, Sq, D), jnp.bfloat16),
                   jax.ShapeDtypeStruct((B, n_heads, Sq, Sk), jnp.float32)),
        in_specs=[
            pl.BlockSpec((1, 1, Sk), lambda b: (b, 0, 0)),
            pl.BlockSpec((1, Sq, D), lambda b: (b, 0, 0)),
            pl.BlockSpec((1, Sk, D), lambda b: (b, 0, 0)),
            pl.BlockSpec((1, Sk, D), lambda b: (b, 0, 0)),
        ],
        out_specs=(
            pl.BlockSpec((1, Sq, D), lambda b: (b, 0, 0)),
            pl.BlockSpec((1, n_heads, Sq, Sk), lambda b: (b, 0, 0, 0)),
        ),
        compiler_params=pltpu.CompilerParams(
            dimension_semantics=("parallel",),
            vmem_limit_bytes=VMEM_LIMIT),
    )(kpad, q, k, v)
    return out, attn


# ----------------------------------------------------------------------------
# Transformer blocks (thin JAX glue around the kernels)
# ----------------------------------------------------------------------------
def self_attention_block(mha, ln_g, ln_b, x32, xbf, kpad, n_heads, causal):
    B, S, D = x32.shape
    M = B * S
    qkv = matmul_bias(xbf.reshape(M, D), mha["w_qkv"], mha["b_qkv"],
                      out_dtype=jnp.bfloat16).reshape(B, S, 3 * D)
    q, k, v = qkv[..., :D], qkv[..., D:2 * D], qkv[..., 2 * D:]
    o, attn = attention(q, k, v, kpad, n_heads=n_heads, causal=causal)
    y32, ybf = matmul_bias_residual_ln(o.reshape(M, D), mha["wo"], mha["bo"],
                                       x32.reshape(M, D), ln_g, ln_b)
    return y32.reshape(B, S, D), ybf.reshape(B, S, D), attn


def cross_attention_block(mha, ln_g, ln_b, xq32, xqbf, kvbf, kpad, n_heads):
    B, Sq, D = xq32.shape
    Sk = kvbf.shape[1]
    q = matmul_bias(xqbf.reshape(B * Sq, D), mha["wq"], mha["bq"],
                    out_dtype=jnp.bfloat16).reshape(B, Sq, D)
    kv = matmul_bias(kvbf.reshape(B * Sk, D), mha["w_kv"], mha["b_kv"],
                     out_dtype=jnp.bfloat16).reshape(B, Sk, 2 * D)
    k, v = kv[..., :D], kv[..., D:]
    o, attn = attention(q, k, v, kpad, n_heads=n_heads, causal=False)
    y32, ybf = matmul_bias_residual_ln(o.reshape(B * Sq, D), mha["wo"],
                                       mha["bo"], xq32.reshape(B * Sq, D),
                                       ln_g, ln_b)
    return y32.reshape(B, Sq, D), ybf.reshape(B, Sq, D), attn


def encoder_layer(p, x32, xbf, src_kpad, n_heads):
    B, S, D = x32.shape
    x1_32, x1_bf, attn = self_attention_block(
        p["mha"], p["ln1_g"], p["ln1_b"], x32, xbf, src_kpad, n_heads, False)
    x2_32, x2_bf = ffn_residual_ln(
        x1_bf.reshape(B * S, D), p["ff_w1"], p["ff_b1"], p["ff_w2"], p["ff_b2"],
        x1_32.reshape(B * S, D), p["ln2_g"], p["ln2_b"])
    return x2_32.reshape(B, S, D), x2_bf.reshape(B, S, D), attn


def decoder_layer(p, x32, xbf, enc_bf, trg_kpad, src_kpad, n_heads):
    B, S, D = x32.shape
    x1_32, x1_bf, attn_dec = self_attention_block(
        p["self_mha"], p["ln1_g"], p["ln1_b"], x32, xbf, trg_kpad, n_heads, True)
    x2_32, x2_bf, attn_ed = cross_attention_block(
        p["cross_mha"], p["ln2_g"], p["ln2_b"], x1_32, x1_bf, enc_bf,
        src_kpad, n_heads)
    x3_32, x3_bf = ffn_residual_ln(
        x2_bf.reshape(B * S, D), p["ff_w1"], p["ff_b1"], p["ff_w2"], p["ff_b2"],
        x2_32.reshape(B * S, D), p["ln3_g"], p["ln3_b"])
    return x3_32.reshape(B, S, D), x3_bf.reshape(B, S, D), attn_dec, attn_ed


def encoder_forward(cp, src, src_kpad, n_heads, d_model):
    B, S = src.shape
    x32 = (cp["tok_emb"][src] * math.sqrt(d_model)
           + cp["enc_pos_emb"][:S][None]).astype(jnp.float32)
    xbf = x32.astype(jnp.bfloat16)
    attns = []
    for lp in cp["enc_layers"]:
        x32, xbf, a = encoder_layer(lp, x32, xbf, src_kpad, n_heads)
        attns.append(a)
    return x32, xbf, jnp.stack(attns)


def decoder_forward(cp, trg, enc_bf, trg_kpad, src_kpad, n_heads, d_model):
    B, S = trg.shape
    x32 = (cp["tok_emb"][trg] * math.sqrt(d_model)
           + cp["dec_pos_emb"][:S][None]).astype(jnp.float32)
    xbf = x32.astype(jnp.bfloat16)
    a_decs, a_eds = [], []
    for lp in cp["dec_layers"]:
        x32, xbf, a1, a2 = decoder_layer(lp, x32, xbf, enc_bf,
                                         trg_kpad, src_kpad, n_heads)
        a_decs.append(a1)
        a_eds.append(a2)
    D = x32.shape[-1]
    out = matmul_bias(xbf.reshape(B * S, D), cp["fc_out_w"], cp["fc_out_b"],
                      out_dtype=jnp.float32).reshape(B, S, -1)
    return out, jnp.stack(a_decs), jnp.stack(a_eds)


def make_key_pad_masks(src, trg, pad_idx):
    src_kpad = (src == pad_idx).astype(jnp.float32)[:, None, :]   # (B,1,Ss)
    trg_kpad = (trg == pad_idx).astype(jnp.float32)[:, None, :]   # (B,1,St)
    return src_kpad, trg_kpad


def transformer_forward(cp, src, trg, *, pad_idx, n_heads, d_model):
    src_kpad, trg_kpad = make_key_pad_masks(src, trg, pad_idx)
    _, enc_bf, atten_encs = encoder_forward(cp, src, src_kpad, n_heads, d_model)
    out, atten_decs, atten_enc_decs = decoder_forward(
        cp, trg, enc_bf, trg_kpad, src_kpad, n_heads, d_model)
    return out, atten_encs, atten_decs, atten_enc_decs


# ----------------------------------------------------------------------------
# Parameter init (xavier_uniform, f32) + conversion to compute layout
# (bf16 matmul weights, fused QKV / KV, (1, N) f32 biases & LN params)
# ----------------------------------------------------------------------------
def _xavier(key, shape):
    fan_in, fan_out = shape[0], shape[1]
    limit = math.sqrt(6.0 / (fan_in + fan_out))
    return jax.random.uniform(key, shape, jnp.float32, -limit, limit)


def _init_mha(key, d_model):
    ks = jax.random.split(key, 4)
    z = jnp.zeros((d_model,), jnp.float32)
    return {"wq": _xavier(ks[0], (d_model, d_model)), "bq": z,
            "wk": _xavier(ks[1], (d_model, d_model)), "bk": z,
            "wv": _xavier(ks[2], (d_model, d_model)), "bv": z,
            "wo": _xavier(ks[3], (d_model, d_model)), "bo": z}


def _init_enc_layer(key, d_model, d_ff):
    ks = jax.random.split(key, 3)
    return {"mha": _init_mha(ks[0], d_model),
            "ff_w1": _xavier(ks[1], (d_model, d_ff)), "ff_b1": jnp.zeros((d_ff,)),
            "ff_w2": _xavier(ks[2], (d_ff, d_model)), "ff_b2": jnp.zeros((d_model,)),
            "ln1_g": jnp.ones((d_model,)), "ln1_b": jnp.zeros((d_model,)),
            "ln2_g": jnp.ones((d_model,)), "ln2_b": jnp.zeros((d_model,))}


def _init_dec_layer(key, d_model, d_ff):
    ks = jax.random.split(key, 4)
    return {"self_mha": _init_mha(ks[0], d_model),
            "cross_mha": _init_mha(ks[1], d_model),
            "ff_w1": _xavier(ks[2], (d_model, d_ff)), "ff_b1": jnp.zeros((d_ff,)),
            "ff_w2": _xavier(ks[3], (d_ff, d_model)), "ff_b2": jnp.zeros((d_model,)),
            "ln1_g": jnp.ones((d_model,)), "ln1_b": jnp.zeros((d_model,)),
            "ln2_g": jnp.ones((d_model,)), "ln2_b": jnp.zeros((d_model,)),
            "ln3_g": jnp.ones((d_model,)), "ln3_b": jnp.zeros((d_model,))}


def init_params(key, vocab_size, max_len, n_layers, d_model, d_ff):
    keys = jax.random.split(key, 4 + 2 * n_layers)
    return {
        "tok_emb": _xavier(keys[0], (vocab_size, d_model)),
        "enc_pos_emb": _xavier(keys[1], (max_len, d_model)),
        "dec_pos_emb": _xavier(keys[2], (max_len, d_model)),
        "fc_out_w": _xavier(keys[3], (d_model, vocab_size)),
        "fc_out_b": jnp.zeros((vocab_size,), jnp.float32),
        "enc_layers": [_init_enc_layer(keys[4 + i], d_model, d_ff)
                       for i in range(n_layers)],
        "dec_layers": [_init_dec_layer(keys[4 + n_layers + i], d_model, d_ff)
                       for i in range(n_layers)],
    }


def _mha_compute(m):
    return {
        "w_qkv": jnp.concatenate([m["wq"], m["wk"], m["wv"]], 1).astype(jnp.bfloat16),
        "b_qkv": jnp.concatenate([m["bq"], m["bk"], m["bv"]]).reshape(1, -1),
        "wq": m["wq"].astype(jnp.bfloat16),
        "bq": m["bq"].reshape(1, -1),
        "w_kv": jnp.concatenate([m["wk"], m["wv"]], 1).astype(jnp.bfloat16),
        "b_kv": jnp.concatenate([m["bk"], m["bv"]]).reshape(1, -1),
        "wo": m["wo"].astype(jnp.bfloat16),
        "bo": m["bo"].reshape(1, -1),
    }


def _ffn_ln_compute(l, names):
    out = {"ff_w1": l["ff_w1"].astype(jnp.bfloat16), "ff_b1": l["ff_b1"].reshape(1, -1),
           "ff_w2": l["ff_w2"].astype(jnp.bfloat16), "ff_b2": l["ff_b2"].reshape(1, -1)}
    for n in names:
        out[n + "_g"] = l[n + "_g"].reshape(1, -1)
        out[n + "_b"] = l[n + "_b"].reshape(1, -1)
    return out


def to_compute_params(p):
    enc_layers, dec_layers = [], []
    for l in p["enc_layers"]:
        cl = {"mha": _mha_compute(l["mha"])}
        cl.update(_ffn_ln_compute(l, ("ln1", "ln2")))
        enc_layers.append(cl)
    for l in p["dec_layers"]:
        cl = {"self_mha": _mha_compute(l["self_mha"]),
              "cross_mha": _mha_compute(l["cross_mha"])}
        cl.update(_ffn_ln_compute(l, ("ln1", "ln2", "ln3")))
        dec_layers.append(cl)
    return {
        "tok_emb": p["tok_emb"],
        "enc_pos_emb": p["enc_pos_emb"],
        "dec_pos_emb": p["dec_pos_emb"],
        "fc_out_w": p["fc_out_w"].astype(jnp.bfloat16),
        "fc_out_b": p["fc_out_b"].reshape(1, -1),
        "enc_layers": enc_layers,
        "dec_layers": dec_layers,
    }


# ----------------------------------------------------------------------------
# Main
# ----------------------------------------------------------------------------
if __name__ == "__main__":
    vocab_size, pad_idx, max_len = 50, 0, 16
    n_layers, d_model, d_ff, n_heads, drop_p = 2, 32, 64, 4, 0.0
    B, S_src, S_trg = 2, 8, 8

    key = jax.random.PRNGKey(0)
    k_params, k_src, k_trg = jax.random.split(key, 3)
    params = init_params(k_params, vocab_size, max_len, n_layers, d_model, d_ff)
    cparams = to_compute_params(params)

    src = jax.random.randint(k_src, (B, S_src), 1, vocab_size, dtype=jnp.int32)
    trg = jax.random.randint(k_trg, (B, S_trg), 1, vocab_size, dtype=jnp.int32)
    # introduce some padding to exercise the masks
    src = src.at[1, -2:].set(pad_idx)
    trg = trg.at[1, -3:].set(pad_idx)

    fwd = jax.jit(partial(transformer_forward, pad_idx=pad_idx,
                          n_heads=n_heads, d_model=d_model))
    out, atten_encs, atten_decs, atten_enc_decs = fwd(cparams, src, trg)

    jax.block_until_ready((out, atten_encs, atten_decs, atten_enc_decs))
    assert out.shape == (B, S_trg, vocab_size)
    assert atten_encs.shape == (n_layers, B, n_heads, S_src, S_src)
    assert atten_decs.shape == (n_layers, B, n_heads, S_trg, S_trg)
    assert atten_enc_decs.shape == (n_layers, B, n_heads, S_trg, S_src)
    print("KERNEL_OK")
</pallas_src>

<mosaic_0001>
module attributes {stable_mosaic.version = 11 : i64} {
  func.func @_matmul_bias_kernel(%arg0: i32, %arg1: i32, %arg2: i32, %arg3: memref<16x32xbf16, #tpu.memory_space<vmem>>, %arg4: memref<32x96xbf16, #tpu.memory_space<vmem>>, %arg5: memref<1x96xf32, #tpu.memory_space<vmem>>, %arg6: memref<16x96xbf16, #tpu.memory_space<vmem>>, %arg7: memref<16x96xf32, #tpu.memory_space<vmem>>) attributes {dimension_semantics = [#tpu.dimension_semantics<parallel>, #tpu.dimension_semantics<parallel>, #tpu.dimension_semantics<arbitrary>], iteration_bounds = array<i64: 1, 1, 1>, scalar_prefetch = 0 : i64, scratch_operands = 1 : i64, tpu.core_type = #tpu.core_type<tc>, window_params = [{transform_indices = @transform_0, window_bounds = array<i64: 16, 32>}, {transform_indices = @transform_1, window_bounds = array<i64: 32, 96>}, {transform_indices = @transform_2, window_bounds = array<i64: 1, 96>}, {transform_indices = @transform_3, window_bounds = array<i64: 16, 96>}]} {
    %c0_i32 = arith.constant 0 : i32
    %0 = arith.cmpi eq, %arg2, %c0_i32 : i32
    %1 = arith.extui %0 : i1 to i32
    %c0_i32_0 = arith.constant 0 : i32
    %2 = arith.cmpi ne, %1, %c0_i32_0 : i32
    scf.if %2 {
      %cst_10 = arith.constant 0.000000e+00 : f32
      %12 = vector.broadcast %cst_10 : f32 to vector<16x96xf32>
      %c0_11 = arith.constant 0 : index
      %c0_12 = arith.constant 0 : index
      %13 = vector.load %arg7[%c0_11, %c0_12] : memref<16x96xf32, #tpu.memory_space<vmem>>, vector<16x96xf32>
      tpu.vector_store %arg7[%c0_11, %c0_12], %12 {strides = array<i32>} : memref<16x96xf32, #tpu.memory_space<vmem>>, vector<16x96xf32>,
    } else {
    }
    %c0 = arith.constant 0 : index
    %c0_1 = arith.constant 0 : index
    %3 = vector.load %arg7[%c0, %c0_1] : memref<16x96xf32, #tpu.memory_space<vmem>>, vector<16x96xf32>
    %c0_2 = arith.constant 0 : index
    %c0_3 = arith.constant 0 : index
    %4 = vector.load %arg3[%c0_2, %c0_3] : memref<16x32xbf16, #tpu.memory_space<vmem>>, vector<16x32xbf16>
    %c0_4 = arith.constant 0 : index
    %c0_5 = arith.constant 0 : index
    %5 = vector.load %arg4[%c0_4, %c0_5] : memref<32x96xbf16, #tpu.memory_space<vmem>>, vector<32x96xbf16>
    %cst = arith.constant dense<0.000000e+00> : vector<16x96xf32>
    %6 = tpu.matmul %4, %5, %cst {dimension_numbers = #tpu.dot_dimension_numbers<[1], [0], [0], [1], [0, 0, 1, 1], [], []>} : vector<16x32xbf16>, vector<32x96xbf16>, vector<16x96xf32> -> vector<16x96xf32>
    %7 = arith.addf %3, %6 : vector<16x96xf32>
    %c0_6 = arith.constant 0 : index
    %c0_7 = arith.constant 0 : index
    %8 = vector.load %arg7[%c0_6, %c0_7] : memref<16x96xf32, #tpu.memory_space<vmem>>, vector<16x96xf32>
    tpu.vector_store %arg7[%c0_6, %c0_7], %7 {strides = array<i32>} : memref<16x96xf32, #tpu.memory_space<vmem>>, vector<16x96xf32>,
    %c0_i32_8 = arith.constant 0 : i32
    %9 = arith.cmpi eq, %arg2, %c0_i32_8 : i32
    %10 = arith.extui %9 : i1 to i32
    %c0_i32_9 = arith.constant 0 : i32
    %11 = arith.cmpi ne, %10, %c0_i32_9 : i32
    scf.if %11 {
      %c0_10 = arith.constant 0 : index
      %c0_11 = arith.constant 0 : index
      %12 = vector.load %arg7[%c0_10, %c0_11] : memref<16x96xf32, #tpu.memory_space<vmem>>, vector<16x96xf32>
      %c0_12 = arith.constant 0 : index
      %c0_13 = arith.constant 0 : index
      %13 = vector.load %arg5[%c0_12, %c0_13] : memref<1x96xf32, #tpu.memory_space<vmem>>, vector<1x96xf32>
      %14 = vector.broadcast %13 : vector<1x96xf32> to vector<16x96xf32>
      %15 = arith.addf %12, %14 : vector<16x96xf32>
      %16 = arith.truncf %15 : vector<16x96xf32> to vector<16x96xbf16>
      %c0_14 = arith.constant 0 : index
      %c0_15 = arith.constant 0 : index
      %17 = vector.load %arg6[%c0_14, %c0_15] : memref<16x96xbf16, #tpu.memory_space<vmem>>, vector<16x96xbf16>
      tpu.vector_store %arg6[%c0_14, %c0_15], %16 {strides = array<i32>} : memref<16x96xbf16, #tpu.memory_space<vmem>>, vector<16x96xbf16>,
    } else {
    }
    return
  }
  func.func @transform_0(%arg0: i32, %arg1: i32, %arg2: i32) -> (i32, i32) {
    %c0_i32 = arith.constant 0 : i32
    return %arg0, %arg2 : i32, i32
  }
  func.func @transform_1(%arg0: i32, %arg1: i32, %arg2: i32) -> (i32, i32) {
    %c0_i32 = arith.constant 0 : i32
    return %arg2, %arg1 : i32, i32
  }
  func.func @transform_2(%arg0: i32, %arg1: i32, %arg2: i32) -> (i32, i32) {
    %c0_i32 = arith.constant 0 : i32
    %c0_i32_0 = arith.constant 0 : i32
    return %c0_i32, %arg1 : i32, i32
  }
  func.func @transform_3(%arg0: i32, %arg1: i32, %arg2: i32) -> (i32, i32) {
    %c0_i32 = arith.constant 0 : i32
    return %arg0, %arg1 : i32, i32
  }
}

module attributes {stable_mosaic.version = 11 : i64} {
  func.func @_matmul_bias_kernel(%arg0: i32, %arg1: i32, %arg2: i32, %arg3: memref<16x32xbf16, #tpu.memory_space<vmem>>, %arg4: memref<32x32xbf16, #tpu.memory_space<vmem>>, %arg5: memref<1x32xf32, #tpu.memory_space<vmem>>, %arg6: memref<16x32xbf16, #tpu.memory_space<vmem>>, %arg7: memref<16x32xf32, #tpu.memory_space<vmem>>) attributes {dimension_semantics = [#tpu.dimension_semantics<parallel>, #tpu.dimension_semantics<parallel>, #tpu.dimension_semantics<arbitrary>], iteration_bounds = array<i64: 1, 1, 1>, scalar_prefetch = 0 : i64, scratch_operands = 1 : i64, tpu.core_type = #tpu.core_type<tc>, window_params = [{transform_indices = @transform_0, window_bounds = array<i64: 16, 32>}, {transform_indices = @transform_1, window_bounds = array<i64: 32, 32>}, {transform_indices = @transform_2, window_bounds = array<i64: 1, 32>}, {transform_indices = @transform_3, window_bounds = array<i64: 16, 32>}]} {
    %c0_i32 = arith.constant 0 : i32
    %0 = arith.cmpi eq, %arg2, %c0_i32 : i32
    %1 = arith.extui %0 : i1 to i32
    %c0_i32_0 = arith.constant 0 : i32
    %2 = arith.cmpi ne, %1, %c0_i32_0 : i32
    scf.if %2 {
      %cst_10 = arith.constant 0.000000e+00 : f32
      %12 = vector.broadcast %cst_10 : f32 to vector<16x32xf32>
      %c0_11 = arith.constant 0 : index
      %c0_12 = arith.constant 0 : index
      %13 = vector.load %arg7[%c0_11, %c0_12] : memref<16x32xf32, #tpu.memory_space<vmem>>, vector<16x32xf32>
      tpu.vector_store %arg7[%c0_11, %c0_12], %12 {strides = array<i32>} : memref<16x32xf32, #tpu.memory_space<vmem>>, vector<16x32xf32>,
    } else {
    }
    %c0 = arith.constant 0 : index
    %c0_1 = arith.constant 0 : index
    %3 = vector.load %arg7[%c0, %c0_1] : memref<16x32xf32, #tpu.memory_space<vmem>>, vector<16x32xf32>
    %c0_2 = arith.constant 0 : index
    %c0_3 = arith.constant 0 : index
    %4 = vector.load %arg3[%c0_2, %c0_3] : memref<16x32xbf16, #tpu.memory_space<vmem>>, vector<16x32xbf16>
    %c0_4 = arith.constant 0 : index
    %c0_5 = arith.constant 0 : index
    %5 = vector.load %arg4[%c0_4, %c0_5] : memref<32x32xbf16, #tpu.memory_space<vmem>>, vector<32x32xbf16>
    %cst = arith.constant dense<0.000000e+00> : vector<16x32xf32>
    %6 = tpu.matmul %4, %5, %cst {dimension_numbers = #tpu.dot_dimension_numbers<[1], [0], [0], [1], [0, 0, 1, 1], [], []>} : vector<16x32xbf16>, vector<32x32xbf16>, vector<16x32xf32> -> vector<16x32xf32>
    %7 = arith.addf %3, %6 : vector<16x32xf32>
    %c0_6 = arith.constant 0 : index
    %c0_7 = arith.constant 0 : index
    %8 = vector.load %arg7[%c0_6, %c0_7] : memref<16x32xf32, #tpu.memory_space<vmem>>, vector<16x32xf32>
    tpu.vector_store %arg7[%c0_6, %c0_7], %7 {strides = array<i32>} : memref<16x32xf32, #tpu.memory_space<vmem>>, vector<16x32xf32>,
    %c0_i32_8 = arith.constant 0 : i32
    %9 = arith.cmpi eq, %arg2, %c0_i32_8 : i32
    %10 = arith.extui %9 : i1 to i32
    %c0_i32_9 = arith.constant 0 : i32
    %11 = arith.cmpi ne, %10, %c0_i32_9 : i32
    scf.if %11 {
      %c0_10 = arith.constant 0 : index
      %c0_11 = arith.constant 0 : index
      %12 = vector.load %arg7[%c0_10, %c0_11] : memref<16x32xf32, #tpu.memory_space<vmem>>, vector<16x32xf32>
      %c0_12 = arith.constant 0 : index
      %c0_13 = arith.constant 0 : index
      %13 = vector.load %arg5[%c0_12, %c0_13] : memref<1x32xf32, #tpu.memory_space<vmem>>, vector<1x32xf32>
      %14 = vector.broadcast %13 : vector<1x32xf32> to vector<16x32xf32>
      %15 = arith.addf %12, %14 : vector<16x32xf32>
      %16 = arith.truncf %15 : vector<16x32xf32> to vector<16x32xbf16>
      %c0_14 = arith.constant 0 : index
      %c0_15 = arith.constant 0 : index
      %17 = vector.load %arg6[%c0_14, %c0_15] : memref<16x32xbf16, #tpu.memory_space<vmem>>, vector<16x32xbf16>
      tpu.vector_store %arg6[%c0_14, %c0_15], %16 {strides = array<i32>} : memref<16x32xbf16, #tpu.memory_space<vmem>>, vector<16x32xbf16>,
    } else {
    }
    return
  }
  func.func @transform_0(%arg0: i32, %arg1: i32, %arg2: i32) -> (i32, i32) {
    %c0_i32 = arith.constant 0 : i32
    return %arg0, %arg2 : i32, i32
  }
  func.func @transform_1(%arg0: i32, %arg1: i32, %arg2: i32) -> (i32, i32) {
    %c0_i32 = arith.constant 0 : i32
    return %arg2, %arg1 : i32, i32
  }
  func.func @transform_2(%arg0: i32, %arg1: i32, %arg2: i32) -> (i32, i32) {
    %c0_i32 = arith.constant 0 : i32
    %c0_i32_0 = arith.constant 0 : i32
    return %c0_i32, %arg1 : i32, i32
  }
  func.func @transform_3(%arg0: i32, %arg1: i32, %arg2: i32) -> (i32, i32) {
    %c0_i32 = arith.constant 0 : i32
    return %arg0, %arg1 : i32, i32
  }
}

module attributes {stable_mosaic.version = 11 : i64} {
  func.func @_attention_kernel(%arg0: i32, %arg1: memref<1x1x8xf32, #tpu.memory_space<vmem>>, %arg2: memref<1x8x32xbf16, #tpu.memory_space<vmem>>, %arg3: memref<1x8x32xbf16, #tpu.memory_space<vmem>>, %arg4: memref<1x8x32xbf16, #tpu.memory_space<vmem>>, %arg5: memref<1x8x32xbf16, #tpu.memory_space<vmem>>, %arg6: memref<1x4x8x8xf32, #tpu.memory_space<vmem>>) attributes {dimension_semantics = [#tpu.dimension_semantics<parallel>], iteration_bounds = array<i64: 2>, scalar_prefetch = 0 : i64, scratch_operands = 0 : i64, tpu.core_type = #tpu.core_type<tc>, window_params = [{transform_indices = @transform_0, window_bounds = array<i64: 1, 1, 8>}, {transform_indices = @transform_1, window_bounds = array<i64: 1, 8, 32>}, {transform_indices = @transform_2, window_bounds = array<i64: 1, 8, 32>}, {transform_indices = @transform_3, window_bounds = array<i64: 1, 8, 32>}, {transform_indices = @transform_4, window_bounds = array<i64: 1, 8, 32>}, {transform_indices = @transform_5, window_bounds = array<i64: 1, 4, 8, 8>}]} {
    %c0 = arith.constant 0 : index
    %c0_0 = arith.constant 0 : index
    %c0_1 = arith.constant 0 : index
    %0 = vector.load %arg1[%c0, %c0_0, %c0_1] : memref<1x1x8xf32, #tpu.memory_space<vmem>>, vector<1x1x8xf32>
    %1 = vector.shape_cast %0 : vector<1x1x8xf32> to vector<1x8xf32>
    %cst = arith.constant 0.000000e+00 : f32
    %2 = vector.broadcast %cst : f32 to vector<1x8xf32>
    %3 = arith.cmpf ogt, %1, %2 : vector<1x8xf32>
    %cst_2 = arith.constant -1.000000e+09 : f32
    %cst_3 = arith.constant 0.000000e+00 : f32
    %4 = vector.broadcast %cst_2 : f32 to vector<1x8xf32>
    %5 = vector.broadcast %cst_3 : f32 to vector<1x8xf32>
    %6 = arith.select %3, %4, %5 : vector<1x8xi1>, vector<1x8xf32>
    %7 = vector.shape_cast %6 : vector<1x8xf32> to vector<1x8xf32>
    %8 = vector.broadcast %7 : vector<1x8xf32> to vector<8x8xf32>
    %9 = tpu.iota {dimensions = array<i32: 0>} : vector<8x8xi32>
    %10 = tpu.iota {dimensions = array<i32: 1>} : vector<8x8xi32>
    %11 = arith.cmpi sgt, %10, %9 : vector<8x8xi32>
    %cst_4 = arith.constant -1.000000e+09 : f32
    %12 = vector.broadcast %cst_4 : f32 to vector<8x8xf32>
    %13 = arith.select %11, %12, %8 : vector<8x8xi1>, vector<8x8xf32>
    %c0_5 = arith.constant 0 : index
    %c0_6 = arith.constant 0 : index
    %c0_7 = arith.constant 0 : index
    %14 = vector.load %arg2[%c0_5, %c0_6, %c0_7] : memref<1x8x32xbf16, #tpu.memory_space<vmem>>, vector<1x8x32xbf16>
    %15 = vector.shape_cast %14 : vector<1x8x32xbf16> to vector<8x32xbf16>
    %16 = arith.extf %15 : vector<8x32xbf16> to vector<8x32xf32>
    %cst_8 = arith.constant 0.353553385 : f32
    %17 = vector.broadcast %cst_8 : f32 to vector<8x32xf32>
    %18 = arith.mulf %16, %17 : vector<8x32xf32>
    %19 = arith.truncf %18 : vector<8x32xf32> to vector<8x32xbf16>
    %c0_9 = arith.constant 0 : index
    %c0_10 = arith.constant 0 : index
    %c0_11 = arith.constant 0 : index
    %20 = vector.load %arg3[%c0_9, %c0_10, %c0_11] : memref<1x8x32xbf16, #tpu.memory_space<vmem>>, vector<1x8x32xbf16>
    %21 = vector.shape_cast %20 : vector<1x8x32xbf16> to vector<8x32xbf16>
    %c0_12 = arith.constant 0 : index
    %c0_13 = arith.constant 0 : index
    %c0_14 = arith.constant 0 : index
    %22 = vector.load %arg4[%c0_12, %c0_13, %c0_14] : memref<1x8x32xbf16, #tpu.memory_space<vmem>>, vector<1x8x32xbf16>
    %23 = vector.shape_cast %22 : vector<1x8x32xbf16> to vector<8x32xbf16>
    %24 = vector.extract_strided_slice %19 {offsets = [0, 0], sizes = [8, 8], strides = [1, 1]} : vector<8x32xbf16> to vector<8x8xbf16>
    %25 = vector.extract_strided_slice %21 {offsets = [0, 0], sizes = [8, 8], strides = [1, 1]} : vector<8x32xbf16> to vector<8x8xbf16>
    %cst_15 = arith.constant dense<0.000000e+00> : vector<8x8xf32>
    %26 = tpu.matmul %24, %25, %cst_15 {dimension_numbers = #tpu.dot_dimension_numbers<[1], [1], [0], [0], [0, 0, 1, 0], [], []>} : vector<8x8xbf16>, vector<8x8xbf16>, vector<8x8xf32> -> vector<8x8xf32>
    %27 = arith.addf %26, %13 : vector<8x8xf32>
    %cst_16 = arith.constant dense<0xFF800000> : vector<8xf32>
    %28 = vector.multi_reduction <maximumf>, %27, %cst_16 [1] : vector<8x8xf32> to vector<8xf32>
    %29 = vector.shape_cast %28 : vector<8xf32> to vector<8x1xf32>
    %30 = vector.broadcast %29 : vector<8x1xf32> to vector<8x8xf32>
    %31 = arith.subf %27, %30 : vector<8x8xf32>
    %32 = math.exp %31 : vector<8x8xf32>
    %cst_17 = arith.constant dense<0.000000e+00> : vector<8xf32>
    %33 = vector.multi_reduction <add>, %32, %cst_17 [1] : vector<8x8xf32> to vector<8xf32>
    %34 = vector.shape_cast %33 : vector<8xf32> to vector<8x1xf32>
    %35 = tpu.reciprocal %34 {approx = true} : vector<8x1xf32> -> vector<8x1xf32>
    %36 = vector.broadcast %35 : vector<8x1xf32> to vector<8x8xf32>
    %37 = arith.mulf %32, %36 : vector<8x8xf32>
    %c0_18 = arith.constant 0 : index
    %c0_19 = arith.constant 0 : index
    %c0_20 = arith.constant 0 : index
    %c0_21 = arith.constant 0 : index
    %38 = vector.load %arg6[%c0_18, %c0_19, %c0_20, %c0_21] : memref<1x4x8x8xf32, #tpu.memory_space<vmem>>, vector<1x1x8x8xf32>
    %39 = vector.shape_cast %38 : vector<1x1x8x8xf32> to vector<8x8xf32>
    %40 = vector.shape_cast %37 : vector<8x8xf32> to vector<1x1x8x8xf32>
    tpu.vector_store %arg6[%c0_18, %c0_19, %c0_20, %c0_21], %40 {strides = array<i32>} : memref<1x4x8x8xf32, #tpu.memory_space<vmem>>, vector<1x1x8x8xf32>,
    %41 = arith.truncf %37 : vector<8x8xf32> to vector<8x8xbf16>
    %42 = vector.extract_strided_slice %23 {offsets = [0, 0], sizes = [8, 8], strides = [1, 1]} : vector<8x32xbf16> to vector<8x8xbf16>
    %cst_22 = arith.constant dense<0.000000e+00> : vector<8x8xf32>
    %43 = tpu.matmul %41, %42, %cst_22 {dimension_numbers = #tpu.dot_dimension_numbers<[1], [0], [0], [1], [0, 0, 1, 1], [], []>} : vector<8x8xbf16>, vector<8x8xbf16>, vector<8x8xf32> -> vector<8x8xf32>
    %44 = vector.extract_strided_slice %19 {offsets = [0, 8], sizes = [8, 8], strides = [1, 1]} : vector<8x32xbf16> to vector<8x8xbf16>
    %45 = vector.extract_strided_slice %21 {offsets = [0, 8], sizes = [8, 8], strides = [1, 1]} : vector<8x32xbf16> to vector<8x8xbf16>
    %cst_23 = arith.constant dense<0.000000e+00> : vector<8x8xf32>
    %46 = tpu.matmul %44, %45, %cst_23 {dimension_numbers = #tpu.dot_dimension_numbers<[1], [1], [0], [0], [0, 0, 1, 0], [], []>} : vector<8x8xbf16>, vector<8x8xbf16>, vector<8x8xf32> -> vector<8x8xf32>
    %47 = arith.addf %46, %13 : vector<8x8xf32>
    %cst_24 = arith.constant dense<0xFF800000> : vector<8xf32>
    %48 = vector.multi_reduction <maximumf>, %47, %cst_24 [1] : vector<8x8xf32> to vector<8xf32>
    %49 = vector.shape_cast %48 : vector<8xf32> to vector<8x1xf32>
    %50 = vector.broadcast %49 : vector<8x1xf32> to vector<8x8xf32>
    %51 = arith.subf %47, %50 : vector<8x8xf32>
    %52 = math.exp %51 : vector<8x8xf32>
    %cst_25 = arith.constant dense<0.000000e+00> : vector<8xf32>
    %53 = vector.multi_reduction <add>, %52, %cst_25 [1] : vector<8x8xf32> to vector<8xf32>
    %54 = vector.shape_cast %53 : vector<8xf32> to vector<8x1xf32>
    %55 = tpu.reciprocal %54 {approx = true} : vector<8x1xf32> -> vector<8x1xf32>
    %56 = vector.broadcast %55 : vector<8x1xf32> to vector<8x8xf32>
    %57 = arith.mulf %52, %56 : vector<8x8xf32>
    %c0_26 = arith.constant 0 : index
    %c1 = arith.constant 1 : index
    %c0_27 = arith.constant 0 : index
    %c0_28 = arith.constant 0 : index
    %58 = vector.load %arg6[%c0_26, %c1, %c0_27, %c0_28] : memref<1x4x8x8xf32, #tpu.memory_space<vmem>>, vector<1x1x8x8xf32>
    %59 = vector.shape_cast %58 : vector<1x1x8x8xf32> to vector<8x8xf32>
    %60 = vector.shape_cast %57 : vector<8x8xf32> to vector<1x1x8x8xf32>
    tpu.vector_store %arg6[%c0_26, %c1, %c0_27, %c0_28], %60 {strides = array<i32>} : memref<1x4x8x8xf32, #tpu.memory_space<vmem>>, vector<1x1x8x8xf32>,
    %61 = arith.truncf %57 : vector<8x8xf32> to vector<8x8xbf16>
    %62 = vector.extract_strided_slice %23 {offsets = [0, 8], sizes = [8, 8], strides = [1, 1]} : vector<8x32xbf16> to vector<8x8xbf16>
    %cst_29 = arith.constant dense<0.000000e+00> : vector<8x8xf32>
    %63 = tpu.matmul %61, %62, %cst_29 {dimension_numbers = #tpu.dot_dimension_numbers<[1], [0], [0], [1], [0, 0, 1, 1], [], []>} : vector<8x8xbf16>, vector<8x8xbf16>, vector<8x8xf32> -> vector<8x8xf32>
    %64 = vector.extract_strided_slice %19 {offsets = [0, 16], sizes = [8, 8], strides = [1, 1]} : vector<8x32xbf16> to vector<8x8xbf16>
    %65 = vector.extract_strided_slice %21 {offsets = [0, 16], sizes = [8, 8], strides = [1, 1]} : vector<8x32xbf16> to vector<8x8xbf16>
    %cst_30 = arith.constant dense<0.000000e+00> : vector<8x8xf32>
    %66 = tpu.matmul %64, %65, %cst_30 {dimension_numbers = #tpu.dot_dimension_numbers<[1], [1], [0], [0], [0, 0, 1, 0], [], []>} : vector<8x8xbf16>, vector<8x8xbf16>, vector<8x8xf32> -> vector<8x8xf32>
    %67 = arith.addf %66, %13 : vector<8x8xf32>
    %cst_31 = arith.constant dense<0xFF800000> : vector<8xf32>
    %68 = vector.multi_reduction <maximumf>, %67, %cst_31 [1] : vector<8x8xf32> to vector<8xf32>
    %69 = vector.shape_cast %68 : vector<8xf32> to vector<8x1xf32>
    %70 = vector.broadcast %69 : vector<8x1xf32> to vector<8x8xf32>
    %71 = arith.subf %67, %70 : vector<8x8xf32>
    %72 = math.exp %71 : vector<8x8xf32>
    %cst_32 = arith.constant dense<0.000000e+00> : vector<8xf32>
    %73 = vector.multi_reduction <add>, %72, %cst_32 [1] : vector<8x8xf32> to vector<8xf32>
    %74 = vector.shape_cast %73 : vector<8xf32> to vector<8x1xf32>
    %75 = tpu.reciprocal %74 {approx = true} : vector<8x1xf32> -> vector<8x1xf32>
    %76 = vector.broadcast %75 : vector<8x1xf32> to vector<8x8xf32>
    %77 = arith.mulf %72, %76 : vector<8x8xf32>
    %c0_33 = arith.constant 0 : index
    %c2 = arith.constant 2 : index
    %c0_34 = arith.constant 0 : index
    %c0_35 = arith.constant 0 : index
    %78 = vector.load %arg6[%c0_33, %c2, %c0_34, %c0_35] : memref<1x4x8x8xf32, #tpu.memory_space<vmem>>, vector<1x1x8x8xf32>
    %79 = vector.shape_cast %78 : vector<1x1x8x8xf32> to vector<8x8xf32>
    %80 = vector.shape_cast %77 : vector<8x8xf32> to vector<1x1x8x8xf32>
    tpu.vector_store %arg6[%c0_33, %c2, %c0_34, %c0_35], %80 {strides = array<i32>} : memref<1x4x8x8xf32, #tpu.memory_space<vmem>>, vector<1x1x8x8xf32>,
    %81 = arith.truncf %77 : vector<8x8xf32> to vector<8x8xbf16>
    %82 = vector.extract_strided_slice %23 {offsets = [0, 16], sizes = [8, 8], strides = [1, 1]} : vector<8x32xbf16> to vector<8x8xbf16>
    %cst_36 = arith.constant dense<0.000000e+00> : vector<8x8xf32>
    %83 = tpu.matmul %81, %82, %cst_36 {dimension_numbers = #tpu.dot_dimension_numbers<[1], [0], [0], [1], [0, 0, 1, 1], [], []>} : vector<8x8xbf16>, vector<8x8xbf16>, vector<8x8xf32> -> vector<8x8xf32>
    %84 = vector.extract_strided_slice %19 {offsets = [0, 24], sizes = [8, 8], strides = [1, 1]} : vector<8x32xbf16> to vector<8x8xbf16>
    %85 = vector.extract_strided_slice %21 {offsets = [0, 24], sizes = [8, 8], strides = [1, 1]} : vector<8x32xbf16> to vector<8x8xbf16>
    %cst_37 = arith.constant dense<0.000000e+00> : vector<8x8xf32>
    %86 = tpu.matmul %84, %85, %cst_37 {dimension_numbers = #tpu.dot_dimension_numbers<[1], [1], [0], [0], [0, 0, 1, 0], [], []>} : vector<8x8xbf16>, vector<8x8xbf16>, vector<8x8xf32> -> vector<8x8xf32>
    %87 = arith.addf %86, %13 : vector<8x8xf32>
    %cst_38 = arith.constant dense<0xFF800000> : vector<8xf32>
    %88 = vector.multi_reduction <maximumf>, %87, %cst_38 [1] : vector<8x8xf32> to vector<8xf32>
    %89 = vector.shape_cast %88 : vector<8xf32> to vector<8x1xf32>
    %90 = vector.broadcast %89 : vector<8x1xf32> to vector<8x8xf32>
    %91 = arith.subf %87, %90 : vector<8x8xf32>
    %92 = math.exp %91 : vector<8x8xf32>
    %cst_39 = arith.constant dense<0.000000e+00> : vector<8xf32>
    %93 = vector.multi_reduction <add>, %92, %cst_39 [1] : vector<8x8xf32> to vector<8xf32>
    %94 = vector.shape_cast %93 : vector<8xf32> to vector<8x1xf32>
    %95 = tpu.reciprocal %94 {approx = true} : vector<8x1xf32> -> vector<8x1xf32>
    %96 = vector.broadcast %95 : vector<8x1xf32> to vector<8x8xf32>
    %97 = arith.mulf %92, %96 : vector<8x8xf32>
    %c0_40 = arith.constant 0 : index
    %c3 = arith.constant 3 : index
    %c0_41 = arith.constant 0 : index
    %c0_42 = arith.constant 0 : index
    %98 = vector.load %arg6[%c0_40, %c3, %c0_41, %c0_42] : memref<1x4x8x8xf32, #tpu.memory_space<vmem>>, vector<1x1x8x8xf32>
    %99 = vector.shape_cast %98 : vector<1x1x8x8xf32> to vector<8x8xf32>
    %100 = vector.shape_cast %97 : vector<8x8xf32> to vector<1x1x8x8xf32>
    tpu.vector_store %arg6[%c0_40, %c3, %c0_41, %c0_42], %100 {strides = array<i32>} : memref<1x4x8x8xf32, #tpu.memory_space<vmem>>, vector<1x1x8x8xf32>,
    %101 = arith.truncf %97 : vector<8x8xf32> to vector<8x8xbf16>
    %102 = vector.extract_strided_slice %23 {offsets = [0, 24], sizes = [8, 8], strides = [1, 1]} : vector<8x32xbf16> to vector<8x8xbf16>
    %cst_43 = arith.constant dense<0.000000e+00> : vector<8x8xf32>
    %103 = tpu.matmul %101, %102, %cst_43 {dimension_numbers = #tpu.dot_dimension_numbers<[1], [0], [0], [1], [0, 0, 1, 1], [], []>} : vector<8x8xbf16>, vector<8x8xbf16>, vector<8x8xf32> -> vector<8x8xf32>
    %104 = tpu.concatenate %43, %63, %83, %103 in 1 : vector<8x8xf32>, vector<8x8xf32>, vector<8x8xf32>, vector<8x8xf32> -> vector<8x32xf32>
    %105 = arith.truncf %104 : vector<8x32xf32> to vector<8x32xbf16>
    %c0_44 = arith.constant 0 : index
    %c0_45 = arith.constant 0 : index
    %c0_46 = arith.constant 0 : index
    %106 = vector.load %arg5[%c0_44, %c0_45, %c0_46] : memref<1x8x32xbf16, #tpu.memory_space<vmem>>, vector<1x8x32xbf16>
    %107 = vector.shape_cast %106 : vector<1x8x32xbf16> to vector<8x32xbf16>
    %108 = vector.shape_cast %105 : vector<8x32xbf16> to vector<1x8x32xbf16>
    tpu.vector_store %arg5[%c0_44, %c0_45, %c0_46], %108 {strides = array<i32>} : memref<1x8x32xbf16, #tpu.memory_space<vmem>>, vector<1x8x32xbf16>,
    return
  }
  func.func @transform_0(%arg0: i32) -> (i32, i32, i32) {
    %c0_i32 = arith.constant 0 : i32
    %c0_i32_0 = arith.constant 0 : i32
    %c0_i32_1 = arith.constant 0 : i32
    return %arg0, %c0_i32, %c0_i32_0 : i32, i32, i32
  }
  func.func @transform_1(%arg0: i32) -> (i32, i32, i32) {
    %c0_i32 = arith.constant 0 : i32
    %c0_i32_0 = arith.constant 0 : i32
    %c0_i32_1 = arith.constant 0 : i32
    return %arg0, %c0_i32, %c0_i32_0 : i32, i32, i32
  }
  func.func @transform_2(%arg0: i32) -> (i32, i32, i32) {
    %c0_i32 = arith.constant 0 : i32
    %c0_i32_0 = arith.constant 0 : i32
    %c0_i32_1 = arith.constant 0 : i32
    return %arg0, %c0_i32, %c0_i32_0 : i32, i32, i32
  }
  func.func @transform_3(%arg0: i32) -> (i32, i32, i32) {
    %c0_i32 = arith.constant 0 : i32
    %c0_i32_0 = arith.constant 0 : i32
    %c0_i32_1 = arith.constant 0 : i32
    return %arg0, %c0_i32, %c0_i32_0 : i32, i32, i32
  }
  func.func @transform_4(%arg0: i32) -> (i32, i32, i32) {
    %c0_i32 = arith.constant 0 : i32
    %c0_i32_0 = arith.constant 0 : i32
    %c0_i32_1 = arith.constant 0 : i32
    return %arg0, %c0_i32, %c0_i32_0 : i32, i32, i32
  }
  func.func @transform_5(%arg0: i32) -> (i32, i32, i32, i32) {
    %c0_i32 = arith.constant 0 : i32
    %c0_i32_0 = arith.constant 0 : i32
    %c0_i32_1 = arith.constant 0 : i32
    %c0_i32_2 = arith.constant 0 : i32
    return %arg0, %c0_i32, %c0_i32_0, %c0_i32_1 : i32, i32, i32, i32
  }
}

module attributes {stable_mosaic.version = 11 : i64} {
  func.func @_matmul_res_ln_kernel(%arg0: i32, %arg1: i32, %arg2: memref<16x32xbf16, #tpu.memory_space<vmem>>, %arg3: memref<32x32xbf16, #tpu.memory_space<vmem>>, %arg4: memref<1x32xf32, #tpu.memory_space<vmem>>, %arg5: memref<16x32xf32, #tpu.memory_space<vmem>>, %arg6: memref<1x32xf32, #tpu.memory_space<vmem>>, %arg7: memref<1x32xf32, #tpu.memory_space<vmem>>, %arg8: memref<16x32xf32, #tpu.memory_space<vmem>>, %arg9: memref<16x32xbf16, #tpu.memory_space<vmem>>, %arg10: memref<16x32xf32, #tpu.memory_space<vmem>>) attributes {dimension_semantics = [#tpu.dimension_semantics<parallel>, #tpu.dimension_semantics<arbitrary>], iteration_bounds = array<i64: 1, 1>, scalar_prefetch = 0 : i64, scratch_operands = 1 : i64, tpu.core_type = #tpu.core_type<tc>, window_params = [{transform_indices = @transform_0, window_bounds = array<i64: 16, 32>}, {transform_indices = @transform_1, window_bounds = array<i64: 32, 32>}, {pipeline_mode = #tpu.pipeline_mode<synchronous>, transform_indices = @transform_2, window_bounds = array<i64: 1, 32>}, {transform_indices = @transform_3, window_bounds = array<i64: 16, 32>}, {pipeline_mode = #tpu.pipeline_mode<synchronous>, transform_indices = @transform_4, window_bounds = array<i64: 1, 32>}, {pipeline_mode = #tpu.pipeline_mode<synchronous>, transform_indices = @transform_5, window_bounds = array<i64: 1, 32>}, {transform_indices = @transform_6, window_bounds = array<i64: 16, 32>}, {transform_indices = @transform_7, window_bounds = array<i64: 16, 32>}]} {
    %c0_i32 = arith.constant 0 : i32
    %0 = arith.cmpi eq, %arg1, %c0_i32 : i32
    %1 = arith.extui %0 : i1 to i32
    %c0_i32_0 = arith.constant 0 : i32
    %2 = arith.cmpi ne, %1, %c0_i32_0 : i32
    scf.if %2 {
      %cst_10 = arith.constant 0.000000e+00 : f32
      %12 = vector.broadcast %cst_10 : f32 to vector<16x32xf32>
      %c0_11 = arith.constant 0 : index
      %c0_12 = arith.constant 0 : index
      %13 = vector.load %arg10[%c0_11, %c0_12] : memref<16x32xf32, #tpu.memory_space<vmem>>, vector<16x32xf32>
      tpu.vector_store %arg10[%c0_11, %c0_12], %12 {strides = array<i32>} : memref<16x32xf32, #tpu.memory_space<vmem>>, vector<16x32xf32>,
    } else {
    }
    %c0 = arith.constant 0 : index
    %c0_1 = arith.constant 0 : index
    %3 = vector.load %arg10[%c0, %c0_1] : memref<16x32xf32, #tpu.memory_space<vmem>>, vector<16x32xf32>
    %c0_2 = arith.constant 0 : index
    %c0_3 = arith.constant 0 : index
    %4 = vector.load %arg2[%c0_2, %c0_3] : memref<16x32xbf16, #tpu.memory_space<vmem>>, vector<16x32xbf16>
    %c0_4 = arith.constant 0 : index
    %c0_5 = arith.constant 0 : index
    %5 = vector.load %arg3[%c0_4, %c0_5] : memref<32x32xbf16, #tpu.memory_space<vmem>>, vector<32x32xbf16>
    %cst = arith.constant dense<0.000000e+00> : vector<16x32xf32>
    %6 = tpu.matmul %4, %5, %cst {dimension_numbers = #tpu.dot_dimension_numbers<[1], [0], [0], [1], [0, 0, 1, 1], [], []>} : vector<16x32xbf16>, vector<32x32xbf16>, vector<16x32xf32> -> vector<16x32xf32>
    %7 = arith.addf %3, %6 : vector<16x32xf32>
    %c0_6 = arith.constant 0 : index
    %c0_7 = arith.constant 0 : index
    %8 = vector.load %arg10[%c0_6, %c0_7] : memref<16x32xf32, #tpu.memory_space<vmem>>, vector<16x32xf32>
    tpu.vector_store %arg10[%c0_6, %c0_7], %7 {strides = array<i32>} : memref<16x32xf32, #tpu.memory_space<vmem>>, vector<16x32xf32>,
    %c0_i32_8 = arith.constant 0 : i32
    %9 = arith.cmpi eq, %arg1, %c0_i32_8 : i32
    %10 = arith.extui %9 : i1 to i32
    %c0_i32_9 = arith.constant 0 : i32
    %11 = arith.cmpi ne, %10, %c0_i32_9 : i32
    scf.if %11 {
      %c0_10 = arith.constant 0 : index
      %c0_11 = arith.constant 0 : index
      %12 = vector.load %arg10[%c0_10, %c0_11] : memref<16x32xf32, #tpu.memory_space<vmem>>, vector<16x32xf32>
      %c0_12 = arith.constant 0 : index
      %c0_13 = arith.constant 0 : index
      %13 = vector.load %arg4[%c0_12, %c0_13] : memref<1x32xf32, #tpu.memory_space<vmem>>, vector<1x32xf32>
      %14 = vector.broadcast %13 : vector<1x32xf32> to vector<16x32xf32>
      %15 = arith.addf %12, %14 : vector<16x32xf32>
      %c0_14 = arith.constant 0 : index
      %c0_15 = arith.constant 0 : index
      %16 = vector.load %arg5[%c0_14, %c0_15] : memref<16x32xf32, #tpu.memory_space<vmem>>, vector<16x32xf32>
      %17 = arith.addf %15, %16 : vector<16x32xf32>
      %cst_16 = arith.constant dense<0.000000e+00> : vector<16xf32>
      %18 = vector.multi_reduction <add>, %17, %cst_16 [1] : vector<16x32xf32> to vector<16xf32>
      %19 = vector.shape_cast %18 : vector<16xf32> to vector<16x1xf32>
      %cst_17 = arith.constant 3.200000e+01 : f32
      %20 = vector.broadcast %cst_17 : f32 to vector<16x1xf32>
      %21 = arith.divf %19, %20 : vector<16x1xf32>
      %22 = vector.broadcast %21 : vector<16x1xf32> to vector<16x32xf32>
      %23 = arith.subf %17, %22 : vector<16x32xf32>
      %24 = arith.mulf %23, %23 : vector<16x32xf32>
      %cst_18 = arith.constant dense<0.000000e+00> : vector<16xf32>
      %25 = vector.multi_reduction <add>, %24, %cst_18 [1] : vector<16x32xf32> to vector<16xf32>
      %26 = vector.shape_cast %25 : vector<16xf32> to vector<16x1xf32>
      %cst_19 = arith.constant 3.200000e+01 : f32
      %27 = vector.broadcast %cst_19 : f32 to vector<16x1xf32>
      %28 = arith.divf %26, %27 : vector<16x1xf32>
      %29 = vector.broadcast %21 : vector<16x1xf32> to vector<16x32xf32>
      %30 = arith.subf %17, %29 : vector<16x32xf32>
      %cst_20 = arith.constant 9.99999974E-6 : f32
      %31 = vector.broadcast %cst_20 : f32 to vector<16x1xf32>
      %32 = arith.addf %28, %31 : vector<16x1xf32>
      %33 = math.rsqrt %32 : vector<16x1xf32>
      %34 = vector.broadcast %33 : vector<16x1xf32> to vector<16x32xf32>
      %35 = arith.mulf %30, %34 : vector<16x32xf32>
      %c0_21 = arith.constant 0 : index
      %c0_22 = arith.constant 0 : index
      %36 = vector.load %arg6[%c0_21, %c0_22] : memref<1x32xf32, #tpu.memory_space<vmem>>, vector<1x32xf32>
      %37 = vector.broadcast %36 : vector<1x32xf32> to vector<16x32xf32>
      %38 = arith.mulf %35, %37 : vector<16x32xf32>
      %c0_23 = arith.constant 0 : index
      %c0_24 = arith.constant 0 : index
      %39 = vector.load %arg7[%c0_23, %c0_24] : memref<1x32xf32, #tpu.memory_space<vmem>>, vector<1x32xf32>
      %40 = vector.broadcast %39 : vector<1x32xf32> to vector<16x32xf32>
      %41 = arith.addf %38, %40 : vector<16x32xf32>
      %c0_25 = arith.constant 0 : index
      %c0_26 = arith.constant 0 : index
      %42 = vector.load %arg8[%c0_25, %c0_26] : memref<16x32xf32, #tpu.memory_space<vmem>>, vector<16x32xf32>
      tpu.vector_store %arg8[%c0_25, %c0_26], %41 {strides = array<i32>} : memref<16x32xf32, #tpu.memory_space<vmem>>, vector<16x32xf32>,
      %43 = arith.truncf %41 : vector<16x32xf32> to vector<16x32xbf16>
      %c0_27 = arith.constant 0 : index
      %c0_28 = arith.constant 0 : index
      %44 = vector.load %arg9[%c0_27, %c0_28] : memref<16x32xbf16, #tpu.memory_space<vmem>>, vector<16x32xbf16>
      tpu.vector_store %arg9[%c0_27, %c0_28], %43 {strides = array<i32>} : memref<16x32xbf16, #tpu.memory_space<vmem>>, vector<16x32xbf16>,
    } else {
    }
    return
  }
  func.func @transform_0(%arg0: i32, %arg1: i32) -> (i32, i32) {
    %c0_i32 = arith.constant 0 : i32
    return %arg0, %arg1 : i32, i32
  }
  func.func @transform_1(%arg0: i32, %arg1: i32) -> (i32, i32) {
    %c0_i32 = arith.constant 0 : i32
    %c0_i32_0 = arith.constant 0 : i32
    return %arg1, %c0_i32 : i32, i32
  }
  func.func @transform_2(%arg0: i32, %arg1: i32) -> (i32, i32) {
    %c0_i32 = arith.constant 0 : i32
    %c0_i32_0 = arith.constant 0 : i32
    %c0_i32_1 = arith.constant 0 : i32
    return %c0_i32, %c0_i32_0 : i32, i32
  }
  func.func @transform_3(%arg0: i32, %arg1: i32) -> (i32, i32) {
    %c0_i32 = arith.constant 0 : i32
    %c0_i32_0 = arith.constant 0 : i32
    return %arg0, %c0_i32 : i32, i32
  }
  func.func @transform_4(%arg0: i32, %arg1: i32) -> (i32, i32) {
    %c0_i32 = arith.constant 0 : i32
    %c0_i32_0 = arith.constant 0 : i32
    %c0_i32_1 = arith.constant 0 : i32
    return %c0_i32, %c0_i32_0 : i32, i32
  }
  func.func @transform_5(%arg0: i32, %arg1: i32) -> (i32, i32) {
    %c0_i32 = arith.constant 0 : i32
    %c0_i32_0 = arith.constant 0 : i32
    %c0_i32_1 = arith.constant 0 : i32
    return %c0_i32, %c0_i32_0 : i32, i32
  }
  func.func @transform_6(%arg0: i32, %arg1: i32) -> (i32, i32) {
    %c0_i32 = arith.constant 0 : i32
    %c0_i32_0 = arith.constant 0 : i32
    return %arg0, %c0_i32 : i32, i32
  }
  func.func @transform_7(%arg0: i32, %arg1: i32) -> (i32, i32) {
    %c0_i32 = arith.constant 0 : i32
    %c0_i32_0 = arith.constant 0 : i32
    return %arg0, %c0_i32 : i32, i32
  }
}

module attributes {stable_mosaic.version = 11 : i64} {
  func.func @_ffn_res_ln_kernel(%arg0: i32, %arg1: memref<16x32xbf16, #tpu.memory_space<vmem>>, %arg2: memref<32x64xbf16, #tpu.memory_space<vmem>>, %arg3: memref<1x64xf32, #tpu.memory_space<vmem>>, %arg4: memref<64x32xbf16, #tpu.memory_space<vmem>>, %arg5: memref<1x32xf32, #tpu.memory_space<vmem>>, %arg6: memref<16x32xf32, #tpu.memory_space<vmem>>, %arg7: memref<1x32xf32, #tpu.memory_space<vmem>>, %arg8: memref<1x32xf32, #tpu.memory_space<vmem>>, %arg9: memref<16x32xf32, #tpu.memory_space<vmem>>, %arg10: memref<16x32xbf16, #tpu.memory_space<vmem>>) attributes {dimension_semantics = [#tpu.dimension_semantics<parallel>], iteration_bounds = array<i64: 1>, scalar_prefetch = 0 : i64, scratch_operands = 0 : i64, tpu.core_type = #tpu.core_type<tc>, window_params = [{transform_indices = @transform_0, window_bounds = array<i64: 16, 32>}, {pipeline_mode = #tpu.pipeline_mode<synchronous>, transform_indices = @transform_1, window_bounds = array<i64: 32, 64>}, {pipeline_mode = #tpu.pipeline_mode<synchronous>, transform_indices = @transform_2, window_bounds = array<i64: 1, 64>}, {pipeline_mode = #tpu.pipeline_mode<synchronous>, transform_indices = @transform_3, window_bounds = array<i64: 64, 32>}, {pipeline_mode = #tpu.pipeline_mode<synchronous>, transform_indices = @transform_4, window_bounds = array<i64: 1, 32>}, {transform_indices = @transform_5, window_bounds = array<i64: 16, 32>}, {pipeline_mode = #tpu.pipeline_mode<synchronous>, transform_indices = @transform_6, window_bounds = array<i64: 1, 32>}, {pipeline_mode = #tpu.pipeline_mode<synchronous>, transform_indices = @transform_7, window_bounds = array<i64: 1, 32>}, {transform_indices = @transform_8, window_bounds = array<i64: 16, 32>}, {transform_indices = @transform_9, window_bounds = array<i64: 16, 32>}]} {
    %c0 = arith.constant 0 : index
    %c0_0 = arith.constant 0 : index
    %0 = vector.load %arg1[%c0, %c0_0] : memref<16x32xbf16, #tpu.memory_space<vmem>>, vector<16x32xbf16>
    %c0_1 = arith.constant 0 : index
    %c0_2 = arith.constant 0 : index
    %1 = vector.load %arg2[%c0_1, %c0_2] : memref<32x64xbf16, #tpu.memory_space<vmem>>, vector<32x64xbf16>
    %cst = arith.constant dense<0.000000e+00> : vector<16x64xf32>
    %2 = tpu.matmul %0, %1, %cst {dimension_numbers = #tpu.dot_dimension_numbers<[1], [0], [0], [1], [0, 0, 1, 1], [], []>} : vector<16x32xbf16>, vector<32x64xbf16>, vector<16x64xf32> -> vector<16x64xf32>
    %c0_3 = arith.constant 0 : index
    %c0_4 = arith.constant 0 : index
    %3 = vector.load %arg3[%c0_3, %c0_4] : memref<1x64xf32, #tpu.memory_space<vmem>>, vector<1x64xf32>
    %4 = vector.broadcast %3 : vector<1x64xf32> to vector<16x64xf32>
    %5 = arith.addf %2, %4 : vector<16x64xf32>
    %cst_5 = arith.constant 0.000000e+00 : f32
    %6 = vector.broadcast %cst_5 : f32 to vector<16x64xf32>
    %7 = arith.maximumf %5, %6 : vector<16x64xf32>
    %8 = arith.truncf %7 : vector<16x64xf32> to vector<16x64xbf16>
    %c0_6 = arith.constant 0 : index
    %c0_7 = arith.constant 0 : index
    %9 = vector.load %arg4[%c0_6, %c0_7] : memref<64x32xbf16, #tpu.memory_space<vmem>>, vector<64x32xbf16>
    %cst_8 = arith.constant dense<0.000000e+00> : vector<16x32xf32>
    %10 = tpu.matmul %8, %9, %cst_8 {dimension_numbers = #tpu.dot_dimension_numbers<[1], [0], [0], [1], [0, 0, 1, 1], [], []>} : vector<16x64xbf16>, vector<64x32xbf16>, vector<16x32xf32> -> vector<16x32xf32>
    %c0_9 = arith.constant 0 : index
    %c0_10 = arith.constant 0 : index
    %11 = vector.load %arg5[%c0_9, %c0_10] : memref<1x32xf32, #tpu.memory_space<vmem>>, vector<1x32xf32>
    %12 = vector.broadcast %11 : vector<1x32xf32> to vector<16x32xf32>
    %13 = arith.addf %10, %12 : vector<16x32xf32>
    %c0_11 = arith.constant 0 : index
    %c0_12 = arith.constant 0 : index
    %14 = vector.load %arg6[%c0_11, %c0_12] : memref<16x32xf32, #tpu.memory_space<vmem>>, vector<16x32xf32>
    %15 = arith.addf %13, %14 : vector<16x32xf32>
    %cst_13 = arith.constant dense<0.000000e+00> : vector<16xf32>
    %16 = vector.multi_reduction <add>, %15, %cst_13 [1] : vector<16x32xf32> to vector<16xf32>
    %17 = vector.shape_cast %16 : vector<16xf32> to vector<16x1xf32>
    %cst_14 = arith.constant 3.200000e+01 : f32
    %18 = vector.broadcast %cst_14 : f32 to vector<16x1xf32>
    %19 = arith.divf %17, %18 : vector<16x1xf32>
    %20 = vector.broadcast %19 : vector<16x1xf32> to vector<16x32xf32>
    %21 = arith.subf %15, %20 : vector<16x32xf32>
    %22 = arith.mulf %21, %21 : vector<16x32xf32>
    %cst_15 = arith.constant dense<0.000000e+00> : vector<16xf32>
    %23 = vector.multi_reduction <add>, %22, %cst_15 [1] : vector<16x32xf32> to vector<16xf32>
    %24 = vector.shape_cast %23 : vector<16xf32> to vector<16x1xf32>
    %cst_16 = arith.constant 3.200000e+01 : f32
    %25 = vector.broadcast %cst_16 : f32 to vector<16x1xf32>
    %26 = arith.divf %24, %25 : vector<16x1xf32>
    %27 = vector.broadcast %19 : vector<16x1xf32> to vector<16x32xf32>
    %28 = arith.subf %15, %27 : vector<16x32xf32>
    %cst_17 = arith.constant 9.99999974E-6 : f32
    %29 = vector.broadcast %cst_17 : f32 to vector<16x1xf32>
    %30 = arith.addf %26, %29 : vector<16x1xf32>
    %31 = math.rsqrt %30 : vector<16x1xf32>
    %32 = vector.broadcast %31 : vector<16x1xf32> to vector<16x32xf32>
    %33 = arith.mulf %28, %32 : vector<16x32xf32>
    %c0_18 = arith.constant 0 : index
    %c0_19 = arith.constant 0 : index
    %34 = vector.load %arg7[%c0_18, %c0_19] : memref<1x32xf32, #tpu.memory_space<vmem>>, vector<1x32xf32>
    %35 = vector.broadcast %34 : vector<1x32xf32> to vector<16x32xf32>
    %36 = arith.mulf %33, %35 : vector<16x32xf32>
    %c0_20 = arith.constant 0 : index
    %c0_21 = arith.constant 0 : index
    %37 = vector.load %arg8[%c0_20, %c0_21] : memref<1x32xf32, #tpu.memory_space<vmem>>, vector<1x32xf32>
    %38 = vector.broadcast %37 : vector<1x32xf32> to vector<16x32xf32>
    %39 = arith.addf %36, %38 : vector<16x32xf32>
    %c0_22 = arith.constant 0 : index
    %c0_23 = arith.constant 0 : index
    %40 = vector.load %arg9[%c0_22, %c0_23] : memref<16x32xf32, #tpu.memory_space<vmem>>, vector<16x32xf32>
    tpu.vector_store %arg9[%c0_22, %c0_23], %39 {strides = array<i32>} : memref<16x32xf32, #tpu.memory_space<vmem>>, vector<16x32xf32>,
    %41 = arith.truncf %39 : vector<16x32xf32> to vector<16x32xbf16>
    %c0_24 = arith.constant 0 : index
    %c0_25 = arith.constant 0 : index
    %42 = vector.load %arg10[%c0_24, %c0_25] : memref<16x32xbf16, #tpu.memory_space<vmem>>, vector<16x32xbf16>
    tpu.vector_store %arg10[%c0_24, %c0_25], %41 {strides = array<i32>} : memref<16x32xbf16, #tpu.memory_space<vmem>>, vector<16x32xbf16>,
    return
  }
  func.func @transform_0(%arg0: i32) -> (i32, i32) {
    %c0_i32 = arith.constant 0 : i32
    %c0_i32_0 = arith.constant 0 : i32
    return %arg0, %c0_i32 : i32, i32
  }
  func.func @transform_1(%arg0: i32) -> (i32, i32) {
    %c0_i32 = arith.constant 0 : i32
    %c0_i32_0 = arith.constant 0 : i32
    %c0_i32_1 = arith.constant 0 : i32
    return %c0_i32, %c0_i32_0 : i32, i32
  }
  func.func @transform_2(%arg0: i32) -> (i32, i32) {
    %c0_i32 = arith.constant 0 : i32
    %c0_i32_0 = arith.constant 0 : i32
    %c0_i32_1 = arith.constant 0 : i32
    return %c0_i32, %c0_i32_0 : i32, i32
  }
  func.func @transform_3(%arg0: i32) -> (i32, i32) {
    %c0_i32 = arith.constant 0 : i32
    %c0_i32_0 = arith.constant 0 : i32
    %c0_i32_1 = arith.constant 0 : i32
    return %c0_i32, %c0_i32_0 : i32, i32
  }
  func.func @transform_4(%arg0: i32) -> (i32, i32) {
    %c0_i32 = arith.constant 0 : i32
    %c0_i32_0 = arith.constant 0 : i32
    %c0_i32_1 = arith.constant 0 : i32
    return %c0_i32, %c0_i32_0 : i32, i32
  }
  func.func @transform_5(%arg0: i32) -> (i32, i32) {
    %c0_i32 = arith.constant 0 : i32
    %c0_i32_0 = arith.constant 0 : i32
    return %arg0, %c0_i32 : i32, i32
  }
  func.func @transform_6(%arg0: i32) -> (i32, i32) {
    %c0_i32 = arith.constant 0 : i32
    %c0_i32_0 = arith.constant 0 : i32
    %c0_i32_1 = arith.constant 0 : i32
    return %c0_i32, %c0_i32_0 : i32, i32
  }
  func.func @transform_7(%arg0: i32) -> (i32, i32) {
    %c0_i32 = arith.constant 0 : i32
    %c0_i32_0 = arith.constant 0 : i32
    %c0_i32_1 = arith.constant 0 : i32
    return %c0_i32, %c0_i32_0 : i32, i32
  }
  func.func @transform_8(%arg0: i32) -> (i32, i32) {
    %c0_i32 = arith.constant 0 : i32
    %c0_i32_0 = arith.constant 0 : i32
    return %arg0, %c0_i32 : i32, i32
  }
  func.func @transform_9(%arg0: i32) -> (i32, i32) {
    %c0_i32 = arith.constant 0 : i32
    %c0_i32_0 = arith.constant 0 : i32
    return %arg0, %c0_i32 : i32, i32
  }
}

module attributes {stable_mosaic.version = 11 : i64} {
  func.func @_attention_kernel(%arg0: i32, %arg1: memref<1x1x8xf32, #tpu.memory_space<vmem>>, %arg2: memref<1x8x32xbf16, #tpu.memory_space<vmem>>, %arg3: memref<1x8x32xbf16, #tpu.memory_space<vmem>>, %arg4: memref<1x8x32xbf16, #tpu.memory_space<vmem>>, %arg5: memref<1x8x32xbf16, #tpu.memory_space<vmem>>, %arg6: memref<1x4x8x8xf32, #tpu.memory_space<vmem>>) attributes {dimension_semantics = [#tpu.dimension_semantics<parallel>], iteration_bounds = array<i64: 2>, scalar_prefetch = 0 : i64, scratch_operands = 0 : i64, tpu.core_type = #tpu.core_type<tc>, window_params = [{transform_indices = @transform_0, window_bounds = array<i64: 1, 1, 8>}, {transform_indices = @transform_1, window_bounds = array<i64: 1, 8, 32>}, {transform_indices = @transform_2, window_bounds = array<i64: 1, 8, 32>}, {transform_indices = @transform_3, window_bounds = array<i64: 1, 8, 32>}, {transform_indices = @transform_4, window_bounds = array<i64: 1, 8, 32>}, {transform_indices = @transform_5, window_bounds = array<i64: 1, 4, 8, 8>}]} {
    %c0 = arith.constant 0 : index
    %c0_0 = arith.constant 0 : index
    %c0_1 = arith.constant 0 : index
    %0 = vector.load %arg1[%c0, %c0_0, %c0_1] : memref<1x1x8xf32, #tpu.memory_space<vmem>>, vector<1x1x8xf32>
    %1 = vector.shape_cast %0 : vector<1x1x8xf32> to vector<1x8xf32>
    %cst = arith.constant 0.000000e+00 : f32
    %2 = vector.broadcast %cst : f32 to vector<1x8xf32>
    %3 = arith.cmpf ogt, %1, %2 : vector<1x8xf32>
    %cst_2 = arith.constant -1.000000e+09 : f32
    %cst_3 = arith.constant 0.000000e+00 : f32
    %4 = vector.broadcast %cst_2 : f32 to vector<1x8xf32>
    %5 = vector.broadcast %cst_3 : f32 to vector<1x8xf32>
    %6 = arith.select %3, %4, %5 : vector<1x8xi1>, vector<1x8xf32>
    %7 = vector.shape_cast %6 : vector<1x8xf32> to vector<1x8xf32>
    %8 = vector.broadcast %7 : vector<1x8xf32> to vector<8x8xf32>
    %c0_4 = arith.constant 0 : index
    %c0_5 = arith.constant 0 : index
    %c0_6 = arith.constant 0 : index
    %9 = vector.load %arg2[%c0_4, %c0_5, %c0_6] : memref<1x8x32xbf16, #tpu.memory_space<vmem>>, vector<1x8x32xbf16>
    %10 = vector.shape_cast %9 : vector<1x8x32xbf16> to vector<8x32xbf16>
    %11 = arith.extf %10 : vector<8x32xbf16> to vector<8x32xf32>
    %cst_7 = arith.constant 0.353553385 : f32
    %12 = vector.broadcast %cst_7 : f32 to vector<8x32xf32>
    %13 = arith.mulf %11, %12 : vector<8x32xf32>
    %14 = arith.truncf %13 : vector<8x32xf32> to vector<8x32xbf16>
    %c0_8 = arith.constant 0 : index
    %c0_9 = arith.constant 0 : index
    %c0_10 = arith.constant 0 : index
    %15 = vector.load %arg3[%c0_8, %c0_9, %c0_10] : memref<1x8x32xbf16, #tpu.memory_space<vmem>>, vector<1x8x32xbf16>
    %16 = vector.shape_cast %15 : vector<1x8x32xbf16> to vector<8x32xbf16>
    %c0_11 = arith.constant 0 : index
    %c0_12 = arith.constant 0 : index
    %c0_13 = arith.constant 0 : index
    %17 = vector.load %arg4[%c0_11, %c0_12, %c0_13] : memref<1x8x32xbf16, #tpu.memory_space<vmem>>, vector<1x8x32xbf16>
    %18 = vector.shape_cast %17 : vector<1x8x32xbf16> to vector<8x32xbf16>
    %19 = vector.extract_strided_slice %14 {offsets = [0, 0], sizes = [8, 8], strides = [1, 1]} : vector<8x32xbf16> to vector<8x8xbf16>
    %20 = vector.extract_strided_slice %16 {offsets = [0, 0], sizes = [8, 8], strides = [1, 1]} : vector<8x32xbf16> to vector<8x8xbf16>
    %cst_14 = arith.constant dense<0.000000e+00> : vector<8x8xf32>
    %21 = tpu.matmul %19, %20, %cst_14 {dimension_numbers = #tpu.dot_dimension_numbers<[1], [1], [0], [0], [0, 0, 1, 0], [], []>} : vector<8x8xbf16>, vector<8x8xbf16>, vector<8x8xf32> -> vector<8x8xf32>
    %22 = arith.addf %21, %8 : vector<8x8xf32>
    %cst_15 = arith.constant dense<0xFF800000> : vector<8xf32>
    %23 = vector.multi_reduction <maximumf>, %22, %cst_15 [1] : vector<8x8xf32> to vector<8xf32>
    %24 = vector.shape_cast %23 : vector<8xf32> to vector<8x1xf32>
    %25 = vector.broadcast %24 : vector<8x1xf32> to vector<8x8xf32>
    %26 = arith.subf %22, %25 : vector<8x8xf32>
    %27 = math.exp %26 : vector<8x8xf32>
    %cst_16 = arith.constant dense<0.000000e+00> : vector<8xf32>
    %28 = vector.multi_reduction <add>, %27, %cst_16 [1] : vector<8x8xf32> to vector<8xf32>
    %29 = vector.shape_cast %28 : vector<8xf32> to vector<8x1xf32>
    %30 = tpu.reciprocal %29 {approx = true} : vector<8x1xf32> -> vector<8x1xf32>
    %31 = vector.broadcast %30 : vector<8x1xf32> to vector<8x8xf32>
    %32 = arith.mulf %27, %31 : vector<8x8xf32>
    %c0_17 = arith.constant 0 : index
    %c0_18 = arith.constant 0 : index
    %c0_19 = arith.constant 0 : index
    %c0_20 = arith.constant 0 : index
    %33 = vector.load %arg6[%c0_17, %c0_18, %c0_19, %c0_20] : memref<1x4x8x8xf32, #tpu.memory_space<vmem>>, vector<1x1x8x8xf32>
    %34 = vector.shape_cast %33 : vector<1x1x8x8xf32> to vector<8x8xf32>
    %35 = vector.shape_cast %32 : vector<8x8xf32> to vector<1x1x8x8xf32>
    tpu.vector_store %arg6[%c0_17, %c0_18, %c0_19, %c0_20], %35 {strides = array<i32>} : memref<1x4x8x8xf32, #tpu.memory_space<vmem>>, vector<1x1x8x8xf32>,
    %36 = arith.truncf %32 : vector<8x8xf32> to vector<8x8xbf16>
    %37 = vector.extract_strided_slice %18 {offsets = [0, 0], sizes = [8, 8], strides = [1, 1]} : vector<8x32xbf16> to vector<8x8xbf16>
    %cst_21 = arith.constant dense<0.000000e+00> : vector<8x8xf32>
    %38 = tpu.matmul %36, %37, %cst_21 {dimension_numbers = #tpu.dot_dimension_numbers<[1], [0], [0], [1], [0, 0, 1, 1], [], []>} : vector<8x8xbf16>, vector<8x8xbf16>, vector<8x8xf32> -> vector<8x8xf32>
    %39 = vector.extract_strided_slice %14 {offsets = [0, 8], sizes = [8, 8], strides = [1, 1]} : vector<8x32xbf16> to vector<8x8xbf16>
    %40 = vector.extract_strided_slice %16 {offsets = [0, 8], sizes = [8, 8], strides = [1, 1]} : vector<8x32xbf16> to vector<8x8xbf16>
    %cst_22 = arith.constant dense<0.000000e+00> : vector<8x8xf32>
    %41 = tpu.matmul %39, %40, %cst_22 {dimension_numbers = #tpu.dot_dimension_numbers<[1], [1], [0], [0], [0, 0, 1, 0], [], []>} : vector<8x8xbf16>, vector<8x8xbf16>, vector<8x8xf32> -> vector<8x8xf32>
    %42 = arith.addf %41, %8 : vector<8x8xf32>
    %cst_23 = arith.constant dense<0xFF800000> : vector<8xf32>
    %43 = vector.multi_reduction <maximumf>, %42, %cst_23 [1] : vector<8x8xf32> to vector<8xf32>
    %44 = vector.shape_cast %43 : vector<8xf32> to vector<8x1xf32>
    %45 = vector.broadcast %44 : vector<8x1xf32> to vector<8x8xf32>
    %46 = arith.subf %42, %45 : vector<8x8xf32>
    %47 = math.exp %46 : vector<8x8xf32>
    %cst_24 = arith.constant dense<0.000000e+00> : vector<8xf32>
    %48 = vector.multi_reduction <add>, %47, %cst_24 [1] : vector<8x8xf32> to vector<8xf32>
    %49 = vector.shape_cast %48 : vector<8xf32> to vector<8x1xf32>
    %50 = tpu.reciprocal %49 {approx = true} : vector<8x1xf32> -> vector<8x1xf32>
    %51 = vector.broadcast %50 : vector<8x1xf32> to vector<8x8xf32>
    %52 = arith.mulf %47, %51 : vector<8x8xf32>
    %c0_25 = arith.constant 0 : index
    %c1 = arith.constant 1 : index
    %c0_26 = arith.constant 0 : index
    %c0_27 = arith.constant 0 : index
    %53 = vector.load %arg6[%c0_25, %c1, %c0_26, %c0_27] : memref<1x4x8x8xf32, #tpu.memory_space<vmem>>, vector<1x1x8x8xf32>
    %54 = vector.shape_cast %53 : vector<1x1x8x8xf32> to vector<8x8xf32>
    %55 = vector.shape_cast %52 : vector<8x8xf32> to vector<1x1x8x8xf32>
    tpu.vector_store %arg6[%c0_25, %c1, %c0_26, %c0_27], %55 {strides = array<i32>} : memref<1x4x8x8xf32, #tpu.memory_space<vmem>>, vector<1x1x8x8xf32>,
    %56 = arith.truncf %52 : vector<8x8xf32> to vector<8x8xbf16>
    %57 = vector.extract_strided_slice %18 {offsets = [0, 8], sizes = [8, 8], strides = [1, 1]} : vector<8x32xbf16> to vector<8x8xbf16>
    %cst_28 = arith.constant dense<0.000000e+00> : vector<8x8xf32>
    %58 = tpu.matmul %56, %57, %cst_28 {dimension_numbers = #tpu.dot_dimension_numbers<[1], [0], [0], [1], [0, 0, 1, 1], [], []>} : vector<8x8xbf16>, vector<8x8xbf16>, vector<8x8xf32> -> vector<8x8xf32>
    %59 = vector.extract_strided_slice %14 {offsets = [0, 16], sizes = [8, 8], strides = [1, 1]} : vector<8x32xbf16> to vector<8x8xbf16>
    %60 = vector.extract_strided_slice %16 {offsets = [0, 16], sizes = [8, 8], strides = [1, 1]} : vector<8x32xbf16> to vector<8x8xbf16>
    %cst_29 = arith.constant dense<0.000000e+00> : vector<8x8xf32>
    %61 = tpu.matmul %59, %60, %cst_29 {dimension_numbers = #tpu.dot_dimension_numbers<[1], [1], [0], [0], [0, 0, 1, 0], [], []>} : vector<8x8xbf16>, vector<8x8xbf16>, vector<8x8xf32> -> vector<8x8xf32>
    %62 = arith.addf %61, %8 : vector<8x8xf32>
    %cst_30 = arith.constant dense<0xFF800000> : vector<8xf32>
    %63 = vector.multi_reduction <maximumf>, %62, %cst_30 [1] : vector<8x8xf32> to vector<8xf32>
    %64 = vector.shape_cast %63 : vector<8xf32> to vector<8x1xf32>
    %65 = vector.broadcast %64 : vector<8x1xf32> to vector<8x8xf32>
    %66 = arith.subf %62, %65 : vector<8x8xf32>
    %67 = math.exp %66 : vector<8x8xf32>
    %cst_31 = arith.constant dense<0.000000e+00> : vector<8xf32>
    %68 = vector.multi_reduction <add>, %67, %cst_31 [1] : vector<8x8xf32> to vector<8xf32>
    %69 = vector.shape_cast %68 : vector<8xf32> to vector<8x1xf32>
    %70 = tpu.reciprocal %69 {approx = true} : vector<8x1xf32> -> vector<8x1xf32>
    %71 = vector.broadcast %70 : vector<8x1xf32> to vector<8x8xf32>
    %72 = arith.mulf %67, %71 : vector<8x8xf32>
    %c0_32 = arith.constant 0 : index
    %c2 = arith.constant 2 : index
    %c0_33 = arith.constant 0 : index
    %c0_34 = arith.constant 0 : index
    %73 = vector.load %arg6[%c0_32, %c2, %c0_33, %c0_34] : memref<1x4x8x8xf32, #tpu.memory_space<vmem>>, vector<1x1x8x8xf32>
    %74 = vector.shape_cast %73 : vector<1x1x8x8xf32> to vector<8x8xf32>
    %75 = vector.shape_cast %72 : vector<8x8xf32> to vector<1x1x8x8xf32>
    tpu.vector_store %arg6[%c0_32, %c2, %c0_33, %c0_34], %75 {strides = array<i32>} : memref<1x4x8x8xf32, #tpu.memory_space<vmem>>, vector<1x1x8x8xf32>,
    %76 = arith.truncf %72 : vector<8x8xf32> to vector<8x8xbf16>
    %77 = vector.extract_strided_slice %18 {offsets = [0, 16], sizes = [8, 8], strides = [1, 1]} : vector<8x32xbf16> to vector<8x8xbf16>
    %cst_35 = arith.constant dense<0.000000e+00> : vector<8x8xf32>
    %78 = tpu.matmul %76, %77, %cst_35 {dimension_numbers = #tpu.dot_dimension_numbers<[1], [0], [0], [1], [0, 0, 1, 1], [], []>} : vector<8x8xbf16>, vector<8x8xbf16>, vector<8x8xf32> -> vector<8x8xf32>
    %79 = vector.extract_strided_slice %14 {offsets = [0, 24], sizes = [8, 8], strides = [1, 1]} : vector<8x32xbf16> to vector<8x8xbf16>
    %80 = vector.extract_strided_slice %16 {offsets = [0, 24], sizes = [8, 8], strides = [1, 1]} : vector<8x32xbf16> to vector<8x8xbf16>
    %cst_36 = arith.constant dense<0.000000e+00> : vector<8x8xf32>
    %81 = tpu.matmul %79, %80, %cst_36 {dimension_numbers = #tpu.dot_dimension_numbers<[1], [1], [0], [0], [0, 0, 1, 0], [], []>} : vector<8x8xbf16>, vector<8x8xbf16>, vector<8x8xf32> -> vector<8x8xf32>
    %82 = arith.addf %81, %8 : vector<8x8xf32>
    %cst_37 = arith.constant dense<0xFF800000> : vector<8xf32>
    %83 = vector.multi_reduction <maximumf>, %82, %cst_37 [1] : vector<8x8xf32> to vector<8xf32>
    %84 = vector.shape_cast %83 : vector<8xf32> to vector<8x1xf32>
    %85 = vector.broadcast %84 : vector<8x1xf32> to vector<8x8xf32>
    %86 = arith.subf %82, %85 : vector<8x8xf32>
    %87 = math.exp %86 : vector<8x8xf32>
    %cst_38 = arith.constant dense<0.000000e+00> : vector<8xf32>
    %88 = vector.multi_reduction <add>, %87, %cst_38 [1] : vector<8x8xf32> to vector<8xf32>
    %89 = vector.shape_cast %88 : vector<8xf32> to vector<8x1xf32>
    %90 = tpu.reciprocal %89 {approx = true} : vector<8x1xf32> -> vector<8x1xf32>
    %91 = vector.broadcast %90 : vector<8x1xf32> to vector<8x8xf32>
    %92 = arith.mulf %87, %91 : vector<8x8xf32>
    %c0_39 = arith.constant 0 : index
    %c3 = arith.constant 3 : index
    %c0_40 = arith.constant 0 : index
    %c0_41 = arith.constant 0 : index
    %93 = vector.load %arg6[%c0_39, %c3, %c0_40, %c0_41] : memref<1x4x8x8xf32, #tpu.memory_space<vmem>>, vector<1x1x8x8xf32>
    %94 = vector.shape_cast %93 : vector<1x1x8x8xf32> to vector<8x8xf32>
    %95 = vector.shape_cast %92 : vector<8x8xf32> to vector<1x1x8x8xf32>
    tpu.vector_store %arg6[%c0_39, %c3, %c0_40, %c0_41], %95 {strides = array<i32>} : memref<1x4x8x8xf32, #tpu.memory_space<vmem>>, vector<1x1x8x8xf32>,
    %96 = arith.truncf %92 : vector<8x8xf32> to vector<8x8xbf16>
    %97 = vector.extract_strided_slice %18 {offsets = [0, 24], sizes = [8, 8], strides = [1, 1]} : vector<8x32xbf16> to vector<8x8xbf16>
    %cst_42 = arith.constant dense<0.000000e+00> : vector<8x8xf32>
    %98 = tpu.matmul %96, %97, %cst_42 {dimension_numbers = #tpu.dot_dimension_numbers<[1], [0], [0], [1], [0, 0, 1, 1], [], []>} : vector<8x8xbf16>, vector<8x8xbf16>, vector<8x8xf32> -> vector<8x8xf32>
    %99 = tpu.concatenate %38, %58, %78, %98 in 1 : vector<8x8xf32>, vector<8x8xf32>, vector<8x8xf32>, vector<8x8xf32> -> vector<8x32xf32>
    %100 = arith.truncf %99 : vector<8x32xf32> to vector<8x32xbf16>
    %c0_43 = arith.constant 0 : index
    %c0_44 = arith.constant 0 : index
    %c0_45 = arith.constant 0 : index
    %101 = vector.load %arg5[%c0_43, %c0_44, %c0_45] : memref<1x8x32xbf16, #tpu.memory_space<vmem>>, vector<1x8x32xbf16>
    %102 = vector.shape_cast %101 : vector<1x8x32xbf16> to vector<8x32xbf16>
    %103 = vector.shape_cast %100 : vector<8x32xbf16> to vector<1x8x32xbf16>
    tpu.vector_store %arg5[%c0_43, %c0_44, %c0_45], %103 {strides = array<i32>} : memref<1x8x32xbf16, #tpu.memory_space<vmem>>, vector<1x8x32xbf16>,
    return
  }
  func.func @transform_0(%arg0: i32) -> (i32, i32, i32) {
    %c0_i32 = arith.constant 0 : i32
    %c0_i32_0 = arith.constant 0 : i32
    %c0_i32_1 = arith.constant 0 : i32
    return %arg0, %c0_i32, %c0_i32_0 : i32, i32, i32
  }
  func.func @transform_1(%arg0: i32) -> (i32, i32, i32) {
    %c0_i32 = arith.constant 0 : i32
    %c0_i32_0 = arith.constant 0 : i32
    %c0_i32_1 = arith.constant 0 : i32
    return %arg0, %c0_i32, %c0_i32_0 : i32, i32, i32
  }
  func.func @transform_2(%arg0: i32) -> (i32, i32, i32) {
    %c0_i32 = arith.constant 0 : i32
    %c0_i32_0 = arith.constant 0 : i32
    %c0_i32_1 = arith.constant 0 : i32
    return %arg0, %c0_i32, %c0_i32_0 : i32, i32, i32
  }
  func.func @transform_3(%arg0: i32) -> (i32, i32, i32) {
    %c0_i32 = arith.constant 0 : i32
    %c0_i32_0 = arith.constant 0 : i32
    %c0_i32_1 = arith.constant 0 : i32
    return %arg0, %c0_i32, %c0_i32_0 : i32, i32, i32
  }
  func.func @transform_4(%arg0: i32) -> (i32, i32, i32) {
    %c0_i32 = arith.constant 0 : i32
    %c0_i32_0 = arith.constant 0 : i32
    %c0_i32_1 = arith.constant 0 : i32
    return %arg0, %c0_i32, %c0_i32_0 : i32, i32, i32
  }
  func.func @transform_5(%arg0: i32) -> (i32, i32, i32, i32) {
    %c0_i32 = arith.constant 0 : i32
    %c0_i32_0 = arith.constant 0 : i32
    %c0_i32_1 = arith.constant 0 : i32
    %c0_i32_2 = arith.constant 0 : i32
    return %arg0, %c0_i32, %c0_i32_0, %c0_i32_1 : i32, i32, i32, i32
  }
}

module attributes {stable_mosaic.version = 11 : i64} {
  func.func @_ffn_res_ln_kernel(%arg0: i32, %arg1: memref<16x32xbf16, #tpu.memory_space<vmem>>, %arg2: memref<32x64xbf16, #tpu.memory_space<vmem>>, %arg3: memref<1x64xf32, #tpu.memory_space<vmem>>, %arg4: memref<64x32xbf16, #tpu.memory_space<vmem>>, %arg5: memref<1x32xf32, #tpu.memory_space<vmem>>, %arg6: memref<16x32xf32, #tpu.memory_space<vmem>>, %arg7: memref<1x32xf32, #tpu.memory_space<vmem>>, %arg8: memref<1x32xf32, #tpu.memory_space<vmem>>, %arg9: memref<16x32xf32, #tpu.memory_space<vmem>>, %arg10: memref<16x32xbf16, #tpu.memory_space<vmem>>) attributes {dimension_semantics = [#tpu.dimension_semantics<parallel>], iteration_bounds = array<i64: 1>, scalar_prefetch = 0 : i64, scratch_operands = 0 : i64, tpu.core_type = #tpu.core_type<tc>, window_params = [{transform_indices = @transform_0, window_bounds = array<i64: 16, 32>}, {pipeline_mode = #tpu.pipeline_mode<synchronous>, transform_indices = @transform_1, window_bounds = array<i64: 32, 64>}, {pipeline_mode = #tpu.pipeline_mode<synchronous>, transform_indices = @transform_2, window_bounds = array<i64: 1, 64>}, {pipeline_mode = #tpu.pipeline_mode<synchronous>, transform_indices = @transform_3, window_bounds = array<i64: 64, 32>}, {pipeline_mode = #tpu.pipeline_mode<synchronous>, transform_indices = @transform_4, window_bounds = array<i64: 1, 32>}, {transform_indices = @transform_5, window_bounds = array<i64: 16, 32>}, {pipeline_mode = #tpu.pipeline_mode<synchronous>, transform_indices = @transform_6, window_bounds = array<i64: 1, 32>}, {pipeline_mode = #tpu.pipeline_mode<synchronous>, transform_indices = @transform_7, window_bounds = array<i64: 1, 32>}, {transform_indices = @transform_8, window_bounds = array<i64: 16, 32>}, {transform_indices = @transform_9, window_bounds = array<i64: 16, 32>}]} {
    %c0 = arith.constant 0 : index
    %c0_0 = arith.constant 0 : index
    %0 = vector.load %arg1[%c0, %c0_0] : memref<16x32xbf16, #tpu.memory_space<vmem>>, vector<16x32xbf16>
    %c0_1 = arith.constant 0 : index
    %c0_2 = arith.constant 0 : index
    %1 = vector.load %arg2[%c0_1, %c0_2] : memref<32x64xbf16, #tpu.memory_space<vmem>>, vector<32x64xbf16>
    %cst = arith.constant dense<0.000000e+00> : vector<16x64xf32>
    %2 = tpu.matmul %0, %1, %cst {dimension_numbers = #tpu.dot_dimension_numbers<[1], [0], [0], [1], [0, 0, 1, 1], [], []>} : vector<16x32xbf16>, vector<32x64xbf16>, vector<16x64xf32> -> vector<16x64xf32>
    %c0_3 = arith.constant 0 : index
    %c0_4 = arith.constant 0 : index
    %3 = vector.load %arg3[%c0_3, %c0_4] : memref<1x64xf32, #tpu.memory_space<vmem>>, vector<1x64xf32>
    %4 = vector.broadcast %3 : vector<1x64xf32> to vector<16x64xf32>
    %5 = arith.addf %2, %4 : vector<16x64xf32>
    %cst_5 = arith.constant 0.000000e+00 : f32
    %6 = vector.broadcast %cst_5 : f32 to vector<16x64xf32>
    %7 = arith.maximumf %5, %6 : vector<16x64xf32>
    %8 = arith.truncf %7 : vector<16x64xf32> to vector<16x64xbf16>
    %c0_6 = arith.constant 0 : index
    %c0_7 = arith.constant 0 : index
    %9 = vector.load %arg4[%c0_6, %c0_7] : memref<64x32xbf16, #tpu.memory_space<vmem>>, vector<64x32xbf16>
    %cst_8 = arith.constant dense<0.000000e+00> : vector<16x32xf32>
    %10 = tpu.matmul %8, %9, %cst_8 {dimension_numbers = #tpu.dot_dimension_numbers<[1], [0], [0], [1], [0, 0, 1, 1], [], []>} : vector<16x64xbf16>, vector<64x32xbf16>, vector<16x32xf32> -> vector<16x32xf32>
    %c0_9 = arith.constant 0 : index
    %c0_10 = arith.constant 0 : index
    %11 = vector.load %arg5[%c0_9, %c0_10] : memref<1x32xf32, #tpu.memory_space<vmem>>, vector<1x32xf32>
    %12 = vector.broadcast %11 : vector<1x32xf32> to vector<16x32xf32>
    %13 = arith.addf %10, %12 : vector<16x32xf32>
    %c0_11 = arith.constant 0 : index
    %c0_12 = arith.constant 0 : index
    %14 = vector.load %arg6[%c0_11, %c0_12] : memref<16x32xf32, #tpu.memory_space<vmem>>, vector<16x32xf32>
    %15 = arith.addf %13, %14 : vector<16x32xf32>
    %cst_13 = arith.constant dense<0.000000e+00> : vector<16xf32>
    %16 = vector.multi_reduction <add>, %15, %cst_13 [1] : vector<16x32xf32> to vector<16xf32>
    %17 = vector.shape_cast %16 : vector<16xf32> to vector<16x1xf32>
    %cst_14 = arith.constant 3.200000e+01 : f32
    %18 = vector.broadcast %cst_14 : f32 to vector<16x1xf32>
    %19 = arith.divf %17, %18 : vector<16x1xf32>
    %20 = vector.broadcast %19 : vector<16x1xf32> to vector<16x32xf32>
    %21 = arith.subf %15, %20 : vector<16x32xf32>
    %22 = arith.mulf %21, %21 : vector<16x32xf32>
    %cst_15 = arith.constant dense<0.000000e+00> : vector<16xf32>
    %23 = vector.multi_reduction <add>, %22, %cst_15 [1] : vector<16x32xf32> to vector<16xf32>
    %24 = vector.shape_cast %23 : vector<16xf32> to vector<16x1xf32>
    %cst_16 = arith.constant 3.200000e+01 : f32
    %25 = vector.broadcast %cst_16 : f32 to vector<16x1xf32>
    %26 = arith.divf %24, %25 : vector<16x1xf32>
    %27 = vector.broadcast %19 : vector<16x1xf32> to vector<16x32xf32>
    %28 = arith.subf %15, %27 : vector<16x32xf32>
    %cst_17 = arith.constant 9.99999974E-6 : f32
    %29 = vector.broadcast %cst_17 : f32 to vector<16x1xf32>
    %30 = arith.addf %26, %29 : vector<16x1xf32>
    %31 = math.rsqrt %30 : vector<16x1xf32>
    %32 = vector.broadcast %31 : vector<16x1xf32> to vector<16x32xf32>
    %33 = arith.mulf %28, %32 : vector<16x32xf32>
    %c0_18 = arith.constant 0 : index
    %c0_19 = arith.constant 0 : index
    %34 = vector.load %arg7[%c0_18, %c0_19] : memref<1x32xf32, #tpu.memory_space<vmem>>, vector<1x32xf32>
    %35 = vector.broadcast %34 : vector<1x32xf32> to vector<16x32xf32>
    %36 = arith.mulf %33, %35 : vector<16x32xf32>
    %c0_20 = arith.constant 0 : index
    %c0_21 = arith.constant 0 : index
    %37 = vector.load %arg8[%c0_20, %c0_21] : memref<1x32xf32, #tpu.memory_space<vmem>>, vector<1x32xf32>
    %38 = vector.broadcast %37 : vector<1x32xf32> to vector<16x32xf32>
    %39 = arith.addf %36, %38 : vector<16x32xf32>
    %c0_22 = arith.constant 0 : index
    %c0_23 = arith.constant 0 : index
    %40 = vector.load %arg9[%c0_22, %c0_23] : memref<16x32xf32, #tpu.memory_space<vmem>>, vector<16x32xf32>
    tpu.vector_store %arg9[%c0_22, %c0_23], %39 {strides = array<i32>} : memref<16x32xf32, #tpu.memory_space<vmem>>, vector<16x32xf32>,
    %41 = arith.truncf %39 : vector<16x32xf32> to vector<16x32xbf16>
    %c0_24 = arith.constant 0 : index
    %c0_25 = arith.constant 0 : index
    %42 = vector.load %arg10[%c0_24, %c0_25] : memref<16x32xbf16, #tpu.memory_space<vmem>>, vector<16x32xbf16>
    tpu.vector_store %arg10[%c0_24, %c0_25], %41 {strides = array<i32>} : memref<16x32xbf16, #tpu.memory_space<vmem>>, vector<16x32xbf16>,
    return
  }
  func.func @transform_0(%arg0: i32) -> (i32, i32) {
    %c0_i32 = arith.constant 0 : i32
    %c0_i32_0 = arith.constant 0 : i32
    return %arg0, %c0_i32 : i32, i32
  }
  func.func @transform_1(%arg0: i32) -> (i32, i32) {
    %c0_i32 = arith.constant 0 : i32
    %c0_i32_0 = arith.constant 0 : i32
    %c0_i32_1 = arith.constant 0 : i32
    return %c0_i32, %c0_i32_0 : i32, i32
  }
  func.func @transform_2(%arg0: i32) -> (i32, i32) {
    %c0_i32 = arith.constant 0 : i32
    %c0_i32_0 = arith.constant 0 : i32
    %c0_i32_1 = arith.constant 0 : i32
    return %c0_i32, %c0_i32_0 : i32, i32
  }
  func.func @transform_3(%arg0: i32) -> (i32, i32) {
    %c0_i32 = arith.constant 0 : i32
    %c0_i32_0 = arith.constant 0 : i32
    %c0_i32_1 = arith.constant 0 : i32
    return %c0_i32, %c0_i32_0 : i32, i32
  }
  func.func @transform_4(%arg0: i32) -> (i32, i32) {
    %c0_i32 = arith.constant 0 : i32
    %c0_i32_0 = arith.constant 0 : i32
    %c0_i32_1 = arith.constant 0 : i32
    return %c0_i32, %c0_i32_0 : i32, i32
  }
  func.func @transform_5(%arg0: i32) -> (i32, i32) {
    %c0_i32 = arith.constant 0 : i32
    %c0_i32_0 = arith.constant 0 : i32
    return %arg0, %c0_i32 : i32, i32
  }
  func.func @transform_6(%arg0: i32) -> (i32, i32) {
    %c0_i32 = arith.constant 0 : i32
    %c0_i32_0 = arith.constant 0 : i32
    %c0_i32_1 = arith.constant 0 : i32
    return %c0_i32, %c0_i32_0 : i32, i32
  }
  func.func @transform_7(%arg0: i32) -> (i32, i32) {
    %c0_i32 = arith.constant 0 : i32
    %c0_i32_0 = arith.constant 0 : i32
    %c0_i32_1 = arith.constant 0 : i32
    return %c0_i32, %c0_i32_0 : i32, i32
  }
  func.func @transform_8(%arg0: i32) -> (i32, i32) {
    %c0_i32 = arith.constant 0 : i32
    %c0_i32_0 = arith.constant 0 : i32
    return %arg0, %c0_i32 : i32, i32
  }
  func.func @transform_9(%arg0: i32) -> (i32, i32) {
    %c0_i32 = arith.constant 0 : i32
    %c0_i32_0 = arith.constant 0 : i32
    return %arg0, %c0_i32 : i32, i32
  }
}

module attributes {stable_mosaic.version = 11 : i64} {
  func.func @_matmul_bias_kernel(%arg0: i32, %arg1: i32, %arg2: i32, %arg3: memref<16x32xbf16, #tpu.memory_space<vmem>>, %arg4: memref<32x64xbf16, #tpu.memory_space<vmem>>, %arg5: memref<1x64xf32, #tpu.memory_space<vmem>>, %arg6: memref<16x64xbf16, #tpu.memory_space<vmem>>, %arg7: memref<16x64xf32, #tpu.memory_space<vmem>>) attributes {dimension_semantics = [#tpu.dimension_semantics<parallel>, #tpu.dimension_semantics<parallel>, #tpu.dimension_semantics<arbitrary>], iteration_bounds = array<i64: 1, 1, 1>, scalar_prefetch = 0 : i64, scratch_operands = 1 : i64, tpu.core_type = #tpu.core_type<tc>, window_params = [{transform_indices = @transform_0, window_bounds = array<i64: 16, 32>}, {transform_indices = @transform_1, window_bounds = array<i64: 32, 64>}, {transform_indices = @transform_2, window_bounds = array<i64: 1, 64>}, {transform_indices = @transform_3, window_bounds = array<i64: 16, 64>}]} {
    %c0_i32 = arith.constant 0 : i32
    %0 = arith.cmpi eq, %arg2, %c0_i32 : i32
    %1 = arith.extui %0 : i1 to i32
    %c0_i32_0 = arith.constant 0 : i32
    %2 = arith.cmpi ne, %1, %c0_i32_0 : i32
    scf.if %2 {
      %cst_10 = arith.constant 0.000000e+00 : f32
      %12 = vector.broadcast %cst_10 : f32 to vector<16x64xf32>
      %c0_11 = arith.constant 0 : index
      %c0_12 = arith.constant 0 : index
      %13 = vector.load %arg7[%c0_11, %c0_12] : memref<16x64xf32, #tpu.memory_space<vmem>>, vector<16x64xf32>
      tpu.vector_store %arg7[%c0_11, %c0_12], %12 {strides = array<i32>} : memref<16x64xf32, #tpu.memory_space<vmem>>, vector<16x64xf32>,
    } else {
    }
    %c0 = arith.constant 0 : index
    %c0_1 = arith.constant 0 : index
    %3 = vector.load %arg7[%c0, %c0_1] : memref<16x64xf32, #tpu.memory_space<vmem>>, vector<16x64xf32>
    %c0_2 = arith.constant 0 : index
    %c0_3 = arith.constant 0 : index
    %4 = vector.load %arg3[%c0_2, %c0_3] : memref<16x32xbf16, #tpu.memory_space<vmem>>, vector<16x32xbf16>
    %c0_4 = arith.constant 0 : index
    %c0_5 = arith.constant 0 : index
    %5 = vector.load %arg4[%c0_4, %c0_5] : memref<32x64xbf16, #tpu.memory_space<vmem>>, vector<32x64xbf16>
    %cst = arith.constant dense<0.000000e+00> : vector<16x64xf32>
    %6 = tpu.matmul %4, %5, %cst {dimension_numbers = #tpu.dot_dimension_numbers<[1], [0], [0], [1], [0, 0, 1, 1], [], []>} : vector<16x32xbf16>, vector<32x64xbf16>, vector<16x64xf32> -> vector<16x64xf32>
    %7 = arith.addf %3, %6 : vector<16x64xf32>
    %c0_6 = arith.constant 0 : index
    %c0_7 = arith.constant 0 : index
    %8 = vector.load %arg7[%c0_6, %c0_7] : memref<16x64xf32, #tpu.memory_space<vmem>>, vector<16x64xf32>
    tpu.vector_store %arg7[%c0_6, %c0_7], %7 {strides = array<i32>} : memref<16x64xf32, #tpu.memory_space<vmem>>, vector<16x64xf32>,
    %c0_i32_8 = arith.constant 0 : i32
    %9 = arith.cmpi eq, %arg2, %c0_i32_8 : i32
    %10 = arith.extui %9 : i1 to i32
    %c0_i32_9 = arith.constant 0 : i32
    %11 = arith.cmpi ne, %10, %c0_i32_9 : i32
    scf.if %11 {
      %c0_10 = arith.constant 0 : index
      %c0_11 = arith.constant 0 : index
      %12 = vector.load %arg7[%c0_10, %c0_11] : memref<16x64xf32, #tpu.memory_space<vmem>>, vector<16x64xf32>
      %c0_12 = arith.constant 0 : index
      %c0_13 = arith.constant 0 : index
      %13 = vector.load %arg5[%c0_12, %c0_13] : memref<1x64xf32, #tpu.memory_space<vmem>>, vector<1x64xf32>
      %14 = vector.broadcast %13 : vector<1x64xf32> to vector<16x64xf32>
      %15 = arith.addf %12, %14 : vector<16x64xf32>
      %16 = arith.truncf %15 : vector<16x64xf32> to vector<16x64xbf16>
      %c0_14 = arith.constant 0 : index
      %c0_15 = arith.constant 0 : index
      %17 = vector.load %arg6[%c0_14, %c0_15] : memref<16x64xbf16, #tpu.memory_space<vmem>>, vector<16x64xbf16>
      tpu.vector_store %arg6[%c0_14, %c0_15], %16 {strides = array<i32>} : memref<16x64xbf16, #tpu.memory_space<vmem>>, vector<16x64xbf16>,
    } else {
    }
    return
  }
  func.func @transform_0(%arg0: i32, %arg1: i32, %arg2: i32) -> (i32, i32) {
    %c0_i32 = arith.constant 0 : i32
    return %arg0, %arg2 : i32, i32
  }
  func.func @transform_1(%arg0: i32, %arg1: i32, %arg2: i32) -> (i32, i32) {
    %c0_i32 = arith.constant 0 : i32
    return %arg2, %arg1 : i32, i32
  }
  func.func @transform_2(%arg0: i32, %arg1: i32, %arg2: i32) -> (i32, i32) {
    %c0_i32 = arith.constant 0 : i32
    %c0_i32_0 = arith.constant 0 : i32
    return %c0_i32, %arg1 : i32, i32
  }
  func.func @transform_3(%arg0: i32, %arg1: i32, %arg2: i32) -> (i32, i32) {
    %c0_i32 = arith.constant 0 : i32
    return %arg0, %arg1 : i32, i32
  }
}

module attributes {stable_mosaic.version = 11 : i64} {
  func.func @_matmul_bias_kernel(%arg0: i32, %arg1: i32, %arg2: i32, %arg3: memref<16x32xbf16, #tpu.memory_space<vmem>>, %arg4: memref<32x50xbf16, #tpu.memory_space<vmem>>, %arg5: memref<1x50xf32, #tpu.memory_space<vmem>>, %arg6: memref<16x50xf32, #tpu.memory_space<vmem>>, %arg7: memref<16x50xf32, #tpu.memory_space<vmem>>) attributes {dimension_semantics = [#tpu.dimension_semantics<parallel>, #tpu.dimension_semantics<parallel>, #tpu.dimension_semantics<arbitrary>], iteration_bounds = array<i64: 1, 1, 1>, scalar_prefetch = 0 : i64, scratch_operands = 1 : i64, tpu.core_type = #tpu.core_type<tc>, window_params = [{transform_indices = @transform_0, window_bounds = array<i64: 16, 32>}, {transform_indices = @transform_1, window_bounds = array<i64: 32, 50>}, {transform_indices = @transform_2, window_bounds = array<i64: 1, 50>}, {transform_indices = @transform_3, window_bounds = array<i64: 16, 50>}]} {
    %c0_i32 = arith.constant 0 : i32
    %0 = arith.cmpi eq, %arg2, %c0_i32 : i32
    %1 = arith.extui %0 : i1 to i32
    %c0_i32_0 = arith.constant 0 : i32
    %2 = arith.cmpi ne, %1, %c0_i32_0 : i32
    scf.if %2 {
      %cst_10 = arith.constant 0.000000e+00 : f32
      %12 = vector.broadcast %cst_10 : f32 to vector<16x50xf32>
      %c0_11 = arith.constant 0 : index
      %c0_12 = arith.constant 0 : index
      %13 = vector.load %arg7[%c0_11, %c0_12] : memref<16x50xf32, #tpu.memory_space<vmem>>, vector<16x50xf32>
      tpu.vector_store %arg7[%c0_11, %c0_12], %12 {strides = array<i32>} : memref<16x50xf32, #tpu.memory_space<vmem>>, vector<16x50xf32>,
    } else {
    }
    %c0 = arith.constant 0 : index
    %c0_1 = arith.constant 0 : index
    %3 = vector.load %arg7[%c0, %c0_1] : memref<16x50xf32, #tpu.memory_space<vmem>>, vector<16x50xf32>
    %c0_2 = arith.constant 0 : index
    %c0_3 = arith.constant 0 : index
    %4 = vector.load %arg3[%c0_2, %c0_3] : memref<16x32xbf16, #tpu.memory_space<vmem>>, vector<16x32xbf16>
    %c0_4 = arith.constant 0 : index
    %c0_5 = arith.constant 0 : index
    %5 = vector.load %arg4[%c0_4, %c0_5] : memref<32x50xbf16, #tpu.memory_space<vmem>>, vector<32x50xbf16>
    %cst = arith.constant dense<0.000000e+00> : vector<16x50xf32>
    %6 = tpu.matmul %4, %5, %cst {dimension_numbers = #tpu.dot_dimension_numbers<[1], [0], [0], [1], [0, 0, 1, 1], [], []>} : vector<16x32xbf16>, vector<32x50xbf16>, vector<16x50xf32> -> vector<16x50xf32>
    %7 = arith.addf %3, %6 : vector<16x50xf32>
    %c0_6 = arith.constant 0 : index
    %c0_7 = arith.constant 0 : index
    %8 = vector.load %arg7[%c0_6, %c0_7] : memref<16x50xf32, #tpu.memory_space<vmem>>, vector<16x50xf32>
    tpu.vector_store %arg7[%c0_6, %c0_7], %7 {strides = array<i32>} : memref<16x50xf32, #tpu.memory_space<vmem>>, vector<16x50xf32>,
    %c0_i32_8 = arith.constant 0 : i32
    %9 = arith.cmpi eq, %arg2, %c0_i32_8 : i32
    %10 = arith.extui %9 : i1 to i32
    %c0_i32_9 = arith.constant 0 : i32
    %11 = arith.cmpi ne, %10, %c0_i32_9 : i32
    scf.if %11 {
      %c0_10 = arith.constant 0 : index
      %c0_11 = arith.constant 0 : index
      %12 = vector.load %arg7[%c0_10, %c0_11] : memref<16x50xf32, #tpu.memory_space<vmem>>, vector<16x50xf32>
      %c0_12 = arith.constant 0 : index
      %c0_13 = arith.constant 0 : index
      %13 = vector.load %arg5[%c0_12, %c0_13] : memref<1x50xf32, #tpu.memory_space<vmem>>, vector<1x50xf32>
      %14 = vector.broadcast %13 : vector<1x50xf32> to vector<16x50xf32>
      %15 = arith.addf %12, %14 : vector<16x50xf32>
      %c0_14 = arith.constant 0 : index
      %c0_15 = arith.constant 0 : index
      %16 = vector.load %arg6[%c0_14, %c0_15] : memref<16x50xf32, #tpu.memory_space<vmem>>, vector<16x50xf32>
      tpu.vector_store %arg6[%c0_14, %c0_15], %15 {strides = array<i32>} : memref<16x50xf32, #tpu.memory_space<vmem>>, vector<16x50xf32>,
    } else {
    }
    return
  }
  func.func @transform_0(%arg0: i32, %arg1: i32, %arg2: i32) -> (i32, i32) {
    %c0_i32 = arith.constant 0 : i32
    return %arg0, %arg2 : i32, i32
  }
  func.func @transform_1(%arg0: i32, %arg1: i32, %arg2: i32) -> (i32, i32) {
    %c0_i32 = arith.constant 0 : i32
    return %arg2, %arg1 : i32, i32
  }
  func.func @transform_2(%arg0: i32, %arg1: i32, %arg2: i32) -> (i32, i32) {
    %c0_i32 = arith.constant 0 : i32
    %c0_i32_0 = arith.constant 0 : i32
    return %c0_i32, %arg1 : i32, i32
  }
  func.func @transform_3(%arg0: i32, %arg1: i32, %arg2: i32) -> (i32, i32) {
    %c0_i32 = arith.constant 0 : i32
    return %arg0, %arg1 : i32, i32
  }
}

</mosaic_0001>

<llo_original>
// kernel: transformer_forward.36
$region0: #{transformer_forward.36}
  #allocation0 [shape = 'u32[]', space=smem, size = 0x4, offset = 0x4, fixed_abs, tag = 'smem constant byte address 0x4 - core index']
  #allocation1 [shape = 'u32[144,128]{1,0:T(1,128)}', space=vmem, size = 0x12000, scoped, tag = 'internal scratch']
  #allocation2 [shape = 'f32[16,32]{1,0:T(8,128)}', space=vmem, size = 0x2000, scoped, tag = 'scratch operand']
  %s0 = inlined_call_operand.vmem [shape: bf16[16,32], index: 0, kind: input, shape index: {}]
  %s1 = inlined_call_operand.vmem [shape: bf16[32,32], index: 1, kind: input, shape index: {}]
  %s2 = inlined_call_operand.vmem [shape: f32[1,32], index: 2, kind: input, shape index: {}]
  %s3 = inlined_call_operand.vmem [shape: bf16[16,32], index: 3, kind: output, shape index: {}]
  %s4 = sld [smem:[#allocation0]]
  $region30: #{transformer_forward.36} parent=0
    _
  %s6 = ssub.s32 1, %s4
  %s7 = scalar_select 0, %s6, %s4
  // Predicated region
  $region2: #{transformer_forward.36} parent=0 // pred_check
    _
  $region3: #{transformer_forward.36} parent=0 // pred_check_branch
    %9 = sbr.rel (0) target = $region5
  $region4: #{transformer_forward.36} parent=0 // pred_region
    _
  $region5: #{transformer_forward.36} parent=0 // pred_fallthru
    _
  // Predicated region
  $region6: #{transformer_forward.36} parent=0 // pred_check
    _
  $region7: #{transformer_forward.36} parent=0 // pred_check_branch
    %11 = sbr.rel (0) target = $region9
  $region8: #{transformer_forward.36} parent=0 // pred_region
    _
  $region9: #{transformer_forward.36} parent=0 // pred_fallthru
    _
  // Predicated region
  $region10: #{transformer_forward.36} parent=0 // pred_check
    _
  $region11: #{transformer_forward.36} parent=0 // pred_check_branch
    %13 = sbr.rel (0) target = $region13
  $region12: #{transformer_forward.36} parent=0 // pred_region
    _
  $region13: #{transformer_forward.36} parent=0 // pred_fallthru
    _
  %p15 = scmp.eq.s32.totalorder 0, 0
  // Predicated region
  $region14: #{transformer_forward.36} parent=0 // pred_check
    %p16 = pneg %p15
  $region15: #{transformer_forward.36} parent=0 // pred_check_branch
    %18 = sbr.rel (%p16) target = $region17
  $region16: #{transformer_forward.36} parent=0 // pred_region
    %vm19 = vcmask 261120
    %20 = vst.msk [vmem:[#allocation2] sm:$0xff] %vm19, 0.0
    %21 = vst.msk [vmem:[#allocation2 + $0x8] sm:$0xff] %vm19, 0.0
  $region17: #{transformer_forward.36} parent=0 // pred_fallthru
    _
  %v22 = vld [vmem:[#allocation2] sm:$0xff]
  %v23 = vld [vmem:[#allocation2 + $0x8] sm:$0xff]
  %v24 = vld [vmem:[%s0] sm:$0xf]
  %v25 = vld [vmem:[%s0 + $0x4] sm:$0xf]
  %v26 = vld [vmem:[%s1] sm:$0xf]
  %v27 = vld [vmem:[%s1 + $0x4] sm:$0xf]
  %v28 = vld [vmem:[%s1 + $0x8] sm:$0xf]
  %v29 = vld [vmem:[%s1 + $0xc] sm:$0xf]
  %v32 = vunpack.c.l.b16 %v24
  %v33 = vunpack.c.l.b16 %v25
  %v34 = vpack.c.b16 %v33, %v32
  %v39 = vunpack.c.l.b16 %v26
  %v40 = vunpack.c.l.b16 %v27
  %v41 = vunpack.c.l.b16 %v28
  %v42 = vunpack.c.l.b16 %v29
  %v43 = vpack.c.b16 %v40, %v39
  %v44 = vpack.c.b16 %v42, %v41
  %vm47 = vcmask 261120
  %v49 = vsel %vm47, %v34, 0
  %51 = vmatprep.subr.bf16.mxu0 0
  %52 = vmatpush1.bf16.msra.mxu0 0
  %53 = vmatprep.subr.bf16.mxu0 0
  %54 = vmatpush1.bf16.msra.mxu0 0
  %55 = vmatprep.subr.bf16.mxu0 0
  %56 = vmatpush1.bf16.msra.mxu0 0
  %57 = vmatprep.subr.bf16.mxu0 0
  %58 = vmatpush1.bf16.msra.mxu0 0
  %59 = vmatprep.subr.bf16.mxu0 0
  %60 = vmatpush1.bf16.msra.mxu0 0
  %61 = vmatprep.subr.bf16.mxu0 0
  %62 = vmatpush1.bf16.msra.mxu0 0
  %63 = vmatprep.subr.bf16.mxu0 0
  %64 = vmatpush1.bf16.msra.mxu0 %v44
  %65 = vmatprep.subr.bf16.mxu0 0
  %66 = vmatpush1.bf16.msra.mxu0 %v43
  %67 = vmatprep.subr.bf16.mxu0 0
  %68 = vmatpush2.bf16.msra.mxu0 0
  %69 = vmatprep.subr.bf16.mxu0 0
  %70 = vmatpush2.bf16.msra.mxu0 0
  %71 = vmatprep.subr.bf16.mxu0 0
  %72 = vmatpush2.bf16.msra.mxu0 0
  %73 = vmatprep.subr.bf16.mxu0 0
  %74 = vmatpush2.bf16.msra.mxu0 0
  %75 = vmatprep.subr.bf16.mxu0 0
  %76 = vmatpush2.bf16.msra.mxu0 0
  %77 = vmatprep.subr.bf16.mxu0 0
  %78 = vmatpush2.bf16.msra.mxu0 0
  %79 = vmatprep.subr.bf16.mxu0 0
  %80 = vmatpush2.bf16.msra.mxu0 0
  %81 = vmatprep.subr.bf16.mxu0 0
  %82 = vmatpush2.bf16.msra.mxu0 0
  %83 = vmatprep.mubr.bf16.mxu0 0
  %84 = vmatmul.mubr.bf16.gmra.mxu0 %v49
  %v85 = vpop.f32.mrf.mxu0
  %v86 = vadd.f32 0.0, %v85
  %v87 = vpop.f32.mrf.mxu0
  %v88 = vpop.f32.mrf.mxu0
  %v89 = vadd.f32 0.0, %v88
  %v90 = vpop.f32.mrf.mxu0
  %91 = vdwg.mxu0
  %v92 = vadd.f32 %v22, %v86
  %v93 = vadd.f32 %v23, %v89
  %94 = vst.msk [vmem:[#allocation2] sm:$0xff] %vm47, %v92
  %95 = vst.msk [vmem:[#allocation2 + $0x8] sm:$0xff] %vm47, %v93
  // Predicated region
  $region18: #{transformer_forward.36} parent=0 // pred_check
    %p96 = pneg %p15
  $region19: #{transformer_forward.36} parent=0 // pred_check_branch
    %98 = sbr.rel (%p96) target = $region21
  $region20: #{transformer_forward.36} parent=0 // pred_region
    %v99 = vld [vmem:[#allocation2] sm:$0xff]
    %v100 = vld [vmem:[#allocation2 + $0x8] sm:$0xff]
    %v101 = vld [vmem:[%s2] sm:$0x1]
    %v103 = vlaneseq
    %v104 = vshrl.u32 %v103, 7
    %v105 = vsub.s32 0, %v104
    %v106 = vrot.slane %v101, %v105
    %v108 = vadd.f32 %v99, %v106
    %v109 = vadd.f32 %v100, %v106
    %v110 = vpack.c.bf16 %v109, %v108
    %v112 = vunpack.c.l.b16 %v110
    %v113 = vunpack.c.h.b16 %v110
    %v114 = vpack.c.b16 %v112, %v112
    %v115 = vpack.c.b16 %v113, %v113
    %vm118 = vcmask 257024
    %119 = vst.msk [vmem:[%s3] sm:$0xf] %vm118, %v114
    %120 = vst.msk [vmem:[%s3 + $0x4] sm:$0xf] %vm118, %v115
  $region21: #{transformer_forward.36} parent=0 // pred_fallthru
    _
  // Predicated region
  $region22: #{transformer_forward.36} parent=0 // pred_check
    _
  $region23: #{transformer_forward.36} parent=0 // pred_check_branch
    %122 = sbr.rel (0) target = $region25
  $region24: #{transformer_forward.36} parent=0 // pred_region
    _
  $region25: #{transformer_forward.36} parent=0 // pred_fallthru
    _
  // Predicated region
  $region26: #{transformer_forward.36} parent=0 // pred_check
    _
  $region27: #{transformer_forward.36} parent=0 // pred_check_branch
    %124 = sbr.rel (0) target = $region29
  $region28: #{transformer_forward.36} parent=0 // pred_region
    _
  $region29: #{transformer_forward.36} parent=0 // pred_fallthru
    _

// kernel: transformer_forward.33
$region0: #{transformer_forward.33}
  #allocation0 [shape = 'u32[]', space=smem, size = 0x4, offset = 0x4, fixed_abs, tag = 'smem constant byte address 0x4 - core index']
  #allocation1 [shape = 'u32[144,128]{1,0:T(1,128)}', space=vmem, size = 0x12000, scoped, tag = 'internal scratch']
  #allocation2 [shape = 'f32[16,96]{1,0:T(8,128)}', space=vmem, size = 0x2000, scoped, tag = 'scratch operand']
  %s0 = inlined_call_operand.vmem [shape: bf16[16,32], index: 0, kind: input, shape index: {}]
  %s1 = inlined_call_operand.vmem [shape: bf16[32,96], index: 1, kind: input, shape index: {}]
  %s2 = inlined_call_operand.vmem [shape: f32[1,96], index: 2, kind: input, shape index: {}]
  %s3 = inlined_call_operand.vmem [shape: bf16[16,96], index: 3, kind: output, shape index: {}]
  %s4 = sld [smem:[#allocation0]]
  $region30: #{transformer_forward.33} parent=0
    _
  %s6 = ssub.s32 1, %s4
  %s7 = scalar_select 0, %s6, %s4
  // Predicated region
  $region2: #{transformer_forward.33} parent=0 // pred_check
    _
  $region3: #{transformer_forward.33} parent=0 // pred_check_branch
    %9 = sbr.rel (0) target = $region5
  $region4: #{transformer_forward.33} parent=0 // pred_region
    _
  $region5: #{transformer_forward.33} parent=0 // pred_fallthru
    _
  // Predicated region
  $region6: #{transformer_forward.33} parent=0 // pred_check
    _
  $region7: #{transformer_forward.33} parent=0 // pred_check_branch
    %11 = sbr.rel (0) target = $region9
  $region8: #{transformer_forward.33} parent=0 // pred_region
    _
  $region9: #{transformer_forward.33} parent=0 // pred_fallthru
    _
  // Predicated region
  $region10: #{transformer_forward.33} parent=0 // pred_check
    _
  $region11: #{transformer_forward.33} parent=0 // pred_check_branch
    %13 = sbr.rel (0) target = $region13
  $region12: #{transformer_forward.33} parent=0 // pred_region
    _
  $region13: #{transformer_forward.33} parent=0 // pred_fallthru
    _
  %p15 = scmp.eq.s32.totalorder 0, 0
  // Predicated region
  $region14: #{transformer_forward.33} parent=0 // pred_check
    %p16 = pneg %p15
  $region15: #{transformer_forward.33} parent=0 // pred_check_branch
    %18 = sbr.rel (%p16) target = $region17
  $region16: #{transformer_forward.33} parent=0 // pred_region
    %vm19 = vcmask 785408
    %20 = vst.msk [vmem:[#allocation2] sm:$0xff] %vm19, 0.0
    %21 = vst.msk [vmem:[#allocation2 + $0x8] sm:$0xff] %vm19, 0.0
  $region17: #{transformer_forward.33} parent=0 // pred_fallthru
    _
  %v22 = vld [vmem:[#allocation2] sm:$0xff]
  %v23 = vld [vmem:[#allocation2 + $0x8] sm:$0xff]
  %v24 = vld [vmem:[%s0] sm:$0xf]
  %v25 = vld [vmem:[%s0 + $0x4] sm:$0xf]
  %v26 = vld [vmem:[%s1] sm:$0xf]
  %v27 = vld [vmem:[%s1 + $0x4] sm:$0xf]
  %v28 = vld [vmem:[%s1 + $0x8] sm:$0xf]
  %v29 = vld [vmem:[%s1 + $0xc] sm:$0xf]
  %v32 = vunpack.c.l.b16 %v24
  %v33 = vunpack.c.l.b16 %v25
  %v34 = vpack.c.b16 %v33, %v32
  %v39 = vunpack.c.l.b16 %v26
  %v40 = vunpack.c.l.b16 %v27
  %v41 = vunpack.c.l.b16 %v28
  %v42 = vunpack.c.l.b16 %v29
  %v43 = vpack.c.b16 %v40, %v39
  %v44 = vpack.c.b16 %v42, %v41
  %vm47 = vcmask 261120
  %v49 = vsel %vm47, %v34, 0
  %51 = vmatprep.subr.bf16.mxu0 0
  %52 = vmatpush1.bf16.msra.mxu0 0
  %53 = vmatprep.subr.bf16.mxu0 0
  %54 = vmatpush1.bf16.msra.mxu0 0
  %55 = vmatprep.subr.bf16.mxu0 0
  %56 = vmatpush1.bf16.msra.mxu0 0
  %57 = vmatprep.subr.bf16.mxu0 0
  %58 = vmatpush1.bf16.msra.mxu0 0
  %59 = vmatprep.subr.bf16.mxu0 0
  %60 = vmatpush1.bf16.msra.mxu0 0
  %61 = vmatprep.subr.bf16.mxu0 0
  %62 = vmatpush1.bf16.msra.mxu0 0
  %63 = vmatprep.subr.bf16.mxu0 0
  %64 = vmatpush1.bf16.msra.mxu0 %v44
  %65 = vmatprep.subr.bf16.mxu0 0
  %66 = vmatpush1.bf16.msra.mxu0 %v43
  %67 = vmatprep.subr.bf16.mxu0 0
  %68 = vmatpush2.bf16.msra.mxu0 0
  %69 = vmatprep.subr.bf16.mxu0 0
  %70 = vmatpush2.bf16.msra.mxu0 0
  %71 = vmatprep.subr.bf16.mxu0 0
  %72 = vmatpush2.bf16.msra.mxu0 0
  %73 = vmatprep.subr.bf16.mxu0 0
  %74 = vmatpush2.bf16.msra.mxu0 0
  %75 = vmatprep.subr.bf16.mxu0 0
  %76 = vmatpush2.bf16.msra.mxu0 0
  %77 = vmatprep.subr.bf16.mxu0 0
  %78 = vmatpush2.bf16.msra.mxu0 0
  %79 = vmatprep.subr.bf16.mxu0 0
  %80 = vmatpush2.bf16.msra.mxu0 0
  %81 = vmatprep.subr.bf16.mxu0 0
  %82 = vmatpush2.bf16.msra.mxu0 0
  %83 = vmatprep.mubr.bf16.mxu0 0
  %84 = vmatmul.mubr.bf16.gmra.mxu0 %v49
  %v85 = vpop.f32.mrf.mxu0
  %v86 = vadd.f32 0.0, %v85
  %v87 = vpop.f32.mrf.mxu0
  %v88 = vpop.f32.mrf.mxu0
  %v89 = vadd.f32 0.0, %v88
  %v90 = vpop.f32.mrf.mxu0
  %91 = vdwg.mxu0
  %v92 = vadd.f32 %v22, %v86
  %v93 = vadd.f32 %v23, %v89
  %vm94 = vcmask 785408
  %95 = vst.msk [vmem:[#allocation2] sm:$0xff] %vm94, %v92
  %96 = vst.msk [vmem:[#allocation2 + $0x8] sm:$0xff] %vm94, %v93
  // Predicated region
  $region18: #{transformer_forward.33} parent=0 // pred_check
    %p97 = pneg %p15
  $region19: #{transformer_forward.33} parent=0 // pred_check_branch
    %99 = sbr.rel (%p97) target = $region21
  $region20: #{transformer_forward.33} parent=0 // pred_region
    %v100 = vld [vmem:[#allocation2] sm:$0xff]
    %v101 = vld [vmem:[#allocation2 + $0x8] sm:$0xff]
    %v102 = vld [vmem:[%s2] sm:$0x1]
    %v104 = vlaneseq
    %v105 = vshrl.u32 %v104, 7
    %v106 = vsub.s32 0, %v105
    %v107 = vrot.slane %v102, %v106
    %v109 = vadd.f32 %v100, %v107
    %v110 = vadd.f32 %v101, %v107
    %v111 = vpack.c.bf16 %v110, %v109
    %v113 = vunpack.c.l.b16 %v111
    %v114 = vunpack.c.h.b16 %v111
    %v115 = vpack.c.b16 %v113, %v113
    %v116 = vpack.c.b16 %v114, %v114
    %vm119 = vcmask 781312
    %120 = vst.msk [vmem:[%s3] sm:$0xf] %vm119, %v115
    %121 = vst.msk [vmem:[%s3 + $0x4] sm:$0xf] %vm119, %v116
  $region21: #{transformer_forward.33} parent=0 // pred_fallthru
    _
  // Predicated region
  $region22: #{transformer_forward.33} parent=0 // pred_check
    _
  $region23: #{transformer_forward.33} parent=0 // pred_check_branch
    %123 = sbr.rel (0) target = $region25
  $region24: #{transformer_forward.33} parent=0 // pred_region
    _
  $region25: #{transformer_forward.33} parent=0 // pred_fallthru
    _
  // Predicated region
  $region26: #{transformer_forward.33} parent=0 // pred_check
    _
  $region27: #{transformer_forward.33} parent=0 // pred_check_branch
    %125 = sbr.rel (0) target = $region29
  $region28: #{transformer_forward.33} parent=0 // pred_region
    _
  $region29: #{transformer_forward.33} parent=0 // pred_fallthru
    _

// kernel: transformer_forward.35
$region0: #{transformer_forward.35}
  #allocation0 [shape = 'u32[]', space=smem, size = 0x4, offset = 0x4, fixed_abs, tag = 'smem constant byte address 0x4 - core index']
  #allocation1 [shape = 'u32[144,128]{1,0:T(1,128)}', space=vmem, size = 0x12000, scoped, tag = 'internal scratch']
  #allocation2 [shape = 'f32[16,32]{1,0:T(8,128)}', space=vmem, size = 0x2000, scoped, tag = 'scratch operand']
  %s0 = inlined_call_operand.vmem [shape: bf16[16,32], index: 0, kind: input, shape index: {}]
  %s1 = inlined_call_operand.vmem [shape: bf16[32,32], index: 1, kind: input, shape index: {}]
  %s2 = inlined_call_operand.vmem [shape: f32[1,32], index: 2, kind: input, shape index: {}]
  %s3 = inlined_call_operand.vmem [shape: f32[16,32], index: 3, kind: input, shape index: {}]
  %s4 = inlined_call_operand.vmem [shape: f32[1,32], index: 4, kind: input, shape index: {}]
  %s5 = inlined_call_operand.vmem [shape: f32[1,32], index: 5, kind: input, shape index: {}]
  %s6 = inlined_call_operand.vmem [shape: f32[16,32], index: 6, kind: output, shape index: {0}]
  %s7 = inlined_call_operand.vmem [shape: bf16[16,32], index: 7, kind: output, shape index: {1}]
  %8 = xla_tuple %s6, %s7
  %s9 = sld [smem:[#allocation0]]
  $region50: #{transformer_forward.35} parent=0
    _
  %s11 = ssub.s32 1, %s9
  %s12 = scalar_select 0, %s11, %s9
  // Predicated region
  $region2: #{transformer_forward.35} parent=0 // pred_check
    _
  $region3: #{transformer_forward.35} parent=0 // pred_check_branch
    %14 = sbr.rel (0) target = $region5
  $region4: #{transformer_forward.35} parent=0 // pred_region
    _
  $region5: #{transformer_forward.35} parent=0 // pred_fallthru
    _
  // Predicated region
  $region6: #{transformer_forward.35} parent=0 // pred_check
    _
  $region7: #{transformer_forward.35} parent=0 // pred_check_branch
    %16 = sbr.rel (0) target = $region9
  $region8: #{transformer_forward.35} parent=0 // pred_region
    _
  $region9: #{transformer_forward.35} parent=0 // pred_fallthru
    _
  // Predicated region
  $region10: #{transformer_forward.35} parent=0 // pred_check
    _
  $region11: #{transformer_forward.35} parent=0 // pred_check_branch
    %18 = sbr.rel (0) target = $region13
  $region12: #{transformer_forward.35} parent=0 // pred_region
    _
  $region13: #{transformer_forward.35} parent=0 // pred_fallthru
    _
  // Predicated region
  $region14: #{transformer_forward.35} parent=0 // pred_check
    _
  $region15: #{transformer_forward.35} parent=0 // pred_check_branch
    %20 = sbr.rel (0) target = $region17
  $region16: #{transformer_forward.35} parent=0 // pred_region
    _
  $region17: #{transformer_forward.35} parent=0 // pred_fallthru
    _
  // Predicated region
  $region18: #{transformer_forward.35} parent=0 // pred_check
    _
  $region19: #{transformer_forward.35} parent=0 // pred_check_branch
    %22 = sbr.rel (0) target = $region21
  $region20: #{transformer_forward.35} parent=0 // pred_region
    _
  $region21: #{transformer_forward.35} parent=0 // pred_fallthru
    _
  // Predicated region
  $region22: #{transformer_forward.35} parent=0 // pred_check
    _
  $region23: #{transformer_forward.35} parent=0 // pred_check_branch
    %24 = sbr.rel (0) target = $region25
  $region24: #{transformer_forward.35} parent=0 // pred_region
    _
  $region25: #{transformer_forward.35} parent=0 // pred_fallthru
    _
  %p26 = scmp.eq.s32.totalorder 0, 0
  // Predicated region
  $region26: #{transformer_forward.35} parent=0 // pred_check
    %p27 = pneg %p26
  $region27: #{transformer_forward.35} parent=0 // pred_check_branch
    %29 = sbr.rel (%p27) target = $region29
  $region28: #{transformer_forward.35} parent=0 // pred_region
    %vm30 = vcmask 261120
    %31 = vst.msk [vmem:[#allocation2] sm:$0xff] %vm30, 0.0
    %32 = vst.msk [vmem:[#allocation2 + $0x8] sm:$0xff] %vm30, 0.0
  $region29: #{transformer_forward.35} parent=0 // pred_fallthru
    _
  %v33 = vld [vmem:[#allocation2] sm:$0xff]
  %v34 = vld [vmem:[#allocation2 + $0x8] sm:$0xff]
  %v35 = vld [vmem:[%s0] sm:$0xf]
  %v36 = vld [vmem:[%s0 + $0x4] sm:$0xf]
  %v37 = vld [vmem:[%s1] sm:$0xf]
  %v38 = vld [vmem:[%s1 + $0x4] sm:$0xf]
  %v39 = vld [vmem:[%s1 + $0x8] sm:$0xf]
  %v40 = vld [vmem:[%s1 + $0xc] sm:$0xf]
  %v43 = vunpack.c.l.b16 %v35
  %v44 = vunpack.c.l.b16 %v36
  %v45 = vpack.c.b16 %v44, %v43
  %v50 = vunpack.c.l.b16 %v37
  %v51 = vunpack.c.l.b16 %v38
  %v52 = vunpack.c.l.b16 %v39
  %v53 = vunpack.c.l.b16 %v40
  %v54 = vpack.c.b16 %v51, %v50
  %v55 = vpack.c.b16 %v53, %v52
  %vm58 = vcmask 261120
  %v60 = vsel %vm58, %v45, 0
  %62 = vmatprep.subr.bf16.mxu0 0
  %63 = vmatpush1.bf16.msra.mxu0 0
  %64 = vmatprep.subr.bf16.mxu0 0
  %65 = vmatpush1.bf16.msra.mxu0 0
  %66 = vmatprep.subr.bf16.mxu0 0
  %67 = vmatpush1.bf16.msra.mxu0 0
  %68 = vmatprep.subr.bf16.mxu0 0
  %69 = vmatpush1.bf16.msra.mxu0 0
  %70 = vmatprep.subr.bf16.mxu0 0
  %71 = vmatpush1.bf16.msra.mxu0 0
  %72 = vmatprep.subr.bf16.mxu0 0
  %73 = vmatpush1.bf16.msra.mxu0 0
  %74 = vmatprep.subr.bf16.mxu0 0
  %75 = vmatpush1.bf16.msra.mxu0 %v55
  %76 = vmatprep.subr.bf16.mxu0 0
  %77 = vmatpush1.bf16.msra.mxu0 %v54
  %78 = vmatprep.subr.bf16.mxu0 0
  %79 = vmatpush2.bf16.msra.mxu0 0
  %80 = vmatprep.subr.bf16.mxu0 0
  %81 = vmatpush2.bf16.msra.mxu0 0
  %82 = vmatprep.subr.bf16.mxu0 0
  %83 = vmatpush2.bf16.msra.mxu0 0
  %84 = vmatprep.subr.bf16.mxu0 0
  %85 = vmatpush2.bf16.msra.mxu0 0
  %86 = vmatprep.subr.bf16.mxu0 0
  %87 = vmatpush2.bf16.msra.mxu0 0
  %88 = vmatprep.subr.bf16.mxu0 0
  %89 = vmatpush2.bf16.msra.mxu0 0
  %90 = vmatprep.subr.bf16.mxu0 0
  %91 = vmatpush2.bf16.msra.mxu0 0
  %92 = vmatprep.subr.bf16.mxu0 0
  %93 = vmatpush2.bf16.msra.mxu0 0
  %94 = vmatprep.mubr.bf16.mxu0 0
  %95 = vmatmul.mubr.bf16.gmra.mxu0 %v60
  %v96 = vpop.f32.mrf.mxu0
  %v97 = vadd.f32 0.0, %v96
  %v98 = vpop.f32.mrf.mxu0
  %v99 = vpop.f32.mrf.mxu0
  %v100 = vadd.f32 0.0, %v99
  %v101 = vpop.f32.mrf.mxu0
  %102 = vdwg.mxu0
  %v103 = vadd.f32 %v33, %v97
  %v104 = vadd.f32 %v34, %v100
  %105 = vst.msk [vmem:[#allocation2] sm:$0xff] %vm58, %v103
  %106 = vst.msk [vmem:[#allocation2 + $0x8] sm:$0xff] %vm58, %v104
  // Predicated region
  $region30: #{transformer_forward.35} parent=0 // pred_check
    %p107 = pneg %p26
  $region31: #{transformer_forward.35} parent=0 // pred_check_branch
    %109 = sbr.rel (%p107) target = $region33
  $region32: #{transformer_forward.35} parent=0 // pred_region
    %v110 = vld [vmem:[#allocation2] sm:$0xff]
    %v111 = vld [vmem:[#allocation2 + $0x8] sm:$0xff]
    %v112 = vld [vmem:[%s2] sm:$0x1]
    %v114 = vlaneseq
    %v115 = vshrl.u32 %v114, 7
    %v116 = vsub.s32 0, %v115
    %v117 = vrot.slane %v112, %v116
    %v119 = vadd.f32 %v110, %v117
    %v120 = vadd.f32 %v111, %v117
    %v121 = vld [vmem:[%s3] sm:$0xff]
    %v122 = vld [vmem:[%s3 + $0x8] sm:$0xff]
    %v123 = vadd.f32 %v119, %v121
    %v124 = vadd.f32 %v120, %v122
    %v125 = vsel %vm58, %v123, 0.0
    %126 = vadd.xlane.f32.xlu0 %v125
    %v127 = vpop.xlane.xlu0 %126
    %v128 = vsel %vm58, %v124, 0.0
    %129 = vadd.xlane.f32.xlu0 %v128
    %v130 = vpop.xlane.xlu0 %129
    %v131 = vrcp.pop 32.0
    %v132 = vmul.f32 %v127, %v131
    %v133 = vmul.f32 %v130, %v131
    %v134 = vsub.f32 %v123, %v132
    %v135 = vsub.f32 %v124, %v133
    %v136 = vmul.f32 %v134, %v134
    %v137 = vmul.f32 %v135, %v135
    %v138 = vsel %vm58, %v136, 0.0
    %139 = vadd.xlane.f32.xlu0 %v138
    %v140 = vpop.xlane.xlu0 %139
    %v141 = vsel %vm58, %v137, 0.0
    %142 = vadd.xlane.f32.xlu0 %v141
    %v143 = vpop.xlane.xlu0 %142
    %v144 = vmul.f32 %v140, %v131
    %v145 = vmul.f32 %v143, %v131
    %v146 = vadd.f32 %v144, 1e-05
    %v147 = vadd.f32 %v145, 1e-05
    %v148 = vrsqrt.pop %v146
    %v149 = vrsqrt.pop %v147
    %v150 = vmul.f32 %v134, %v148
    %v151 = vmul.f32 %v135, %v149
    %v152 = vld [vmem:[%s4] sm:$0x1]
    %v154 = vlaneseq
    %v155 = vshrl.u32 %v154, 7
    %v156 = vsub.s32 0, %v155
    %v157 = vrot.slane %v152, %v156
    %v159 = vmul.f32 %v150, %v157
    %v160 = vmul.f32 %v151, %v157
    %v161 = vld [vmem:[%s5] sm:$0x1]
    %v163 = vlaneseq
    %v164 = vshrl.u32 %v163, 7
    %v165 = vsub.s32 0, %v164
    %v166 = vrot.slane %v161, %v165
    %v168 = vadd.f32 %v159, %v166
    %v169 = vadd.f32 %v160, %v166
    %170 = vst.msk [vmem:[%s6] sm:$0xff] %vm58, %v168
    %171 = vst.msk [vmem:[%s6 + $0x8] sm:$0xff] %vm58, %v169
    %v172 = vpack.c.bf16 %v169, %v168
    %v174 = vunpack.c.l.b16 %v172
    %v175 = vunpack.c.h.b16 %v172
    %v176 = vpack.c.b16 %v174, %v174
    %v177 = vpack.c.b16 %v175, %v175
    %vm180 = vcmask 257024
    %181 = vst.msk [vmem:[%s7] sm:$0xf] %vm180, %v176
    %182 = vst.msk [vmem:[%s7 + $0x4] sm:$0xf] %vm180, %v177
  $region33: #{transformer_forward.35} parent=0 // pred_fallthru
    _
  // Predicated region
  $region34: #{transformer_forward.35} parent=0 // pred_check
    _
  $region35: #{transformer_forward.35} parent=0 // pred_check_branch
    %184 = sbr.rel (0) target = $region37
  $region36: #{transformer_forward.35} parent=0 // pred_region
    _
  $region37: #{transformer_forward.35} parent=0 // pred_fallthru
    _
  // Predicated region
  $region38: #{transformer_forward.35} parent=0 // pred_check
    _
  $region39: #{transformer_forward.35} parent=0 // pred_check_branch
    %186 = sbr.rel (0) target = $region41
  $region40: #{transformer_forward.35} parent=0 // pred_region
    _
  $region41: #{transformer_forward.35} parent=0 // pred_fallthru
    _
  // Predicated region
  $region42: #{transformer_forward.35} parent=0 // pred_check
    _
  $region43: #{transformer_forward.35} parent=0 // pred_check_branch
    %188 = sbr.rel (0) target = $region45
  $region44: #{transformer_forward.35} parent=0 // pred_region
    _
  $region45: #{transformer_forward.35} parent=0 // pred_fallthru
    _
  // Predicated region
  $region46: #{transformer_forward.35} parent=0 // pred_check
    _
  $region47: #{transformer_forward.35} parent=0 // pred_check_branch
    %190 = sbr.rel (0) target = $region49
  $region48: #{transformer_forward.35} parent=0 // pred_region
    _
  $region49: #{transformer_forward.35} parent=0 // pred_fallthru
    _

// kernel: transformer_forward.34
$region0: #{transformer_forward.34}
  #allocation0 [shape = 'u32[]', space=smem, size = 0x4, offset = 0x4, fixed_abs, tag = 'smem constant byte address 0x4 - core index']
  #allocation1 [shape = 'u32[144,128]{1,0:T(1,128)}', space=vmem, size = 0x12000, scoped, tag = 'internal scratch']
  %s0 = inlined_call_operand.vmem [shape: f32[2,1,8], index: 0, kind: input, shape index: {}]
  %s1 = inlined_call_operand.vmem [shape: bf16[2,8,32], index: 1, kind: input, shape index: {}]
  %s2 = inlined_call_operand.vmem [shape: bf16[2,8,32], index: 2, kind: input, shape index: {}]
  %s3 = inlined_call_operand.vmem [shape: bf16[2,8,32], index: 3, kind: input, shape index: {}]
  %s4 = inlined_call_operand.vmem [shape: bf16[2,8,32], index: 4, kind: output, shape index: {0}]
  %s5 = inlined_call_operand.vmem [shape: f32[2,4,8,8], index: 5, kind: output, shape index: {1}]
  %6 = xla_tuple %s4, %s5
  %s7 = sld [smem:[#allocation0]]
  $region57: #{transformer_forward.34} parent=0
    _
  %s9 = ssub.s32 1, %s7
  %s10 = scalar_select 0, %s9, %s7
  loop: start=0, step=1, limit=4
  $region2: #{transformer_forward.34} parent=0 // loop_pre_header
    _
  $region3: #{transformer_forward.34} parent=0 // loop_header
    %s12 = sphi 0, %s16
    %p13 = scmp.ge.s32.totalorder %s12, 4
    %s22 = sphi 0, %s24
    %s25 = sphi 0, %s22
    %s26 = sphi 0, %s25
    %s42 = sphi 0, %s26
    %s48 = sphi 0, %s50
    %s51 = sphi 0, %s48
    %s52 = sphi 0, %s51
    %s68 = sphi 0, %s52
    %s74 = sphi 0, %s76
    %s77 = sphi 0, %s74
    %s78 = sphi 0, %s77
    %s94 = sphi 0, %s78
    %s100 = sphi 0, %s102
    %s103 = sphi 0, %s100
    %s104 = sphi 0, %s103
    %s120 = sphi 0, %s104
    %s126 = sphi 0, %s128
    %s129 = sphi 0, %s126
    %s130 = sphi 0, %s129
    %s146 = sphi 0, %s130
    %s152 = sphi 0, %s154
    %s155 = sphi 0, %s152
    %s156 = sphi 0, %s155
    %s172 = sphi 0, %s156
  $region4: #{transformer_forward.34} parent=0 // loop_header_branch
    %15 = sbr.rel (%p13) target = $region8
  $region5: #{transformer_forward.34} parent=0 // loop_body
    %s17 = ssub.s32 %s12, 1
    %s18 = ssub.s32 %s12, 2
    %s19 = sadd.s32 %s12, 1
    %s20 = ssub.s32 %s12, %s19
    %p21 = scmp.eq.s32.totalorder %s20, 0
    %s23 = sadd.s32 %s22, 1
    %s24 = scalar_select %p21, %s22, %s23
    %p27 = pneg %p21
    %p28 = scmp.eq.s32.totalorder %s12, 1
    %p29 = por %p27, %p28
    %p30 = scmp.ne.s32.totalorder %s22, %s25
    %p31 = scmp.eq.s32.totalorder %s12, 0
    %p32 = por %p30, %p31
    %p33 = scmp.ne.s32.totalorder %s22, %s25
    %p34 = scmp.eq.s32.totalorder %s17, 1
    %p35 = por %p33, %p34
    %p36 = scmp.ne.s32.totalorder %s25, %s26
    %p37 = scmp.eq.s32.totalorder %s17, 0
    %p38 = por %p36, %p37
    %p39 = scmp.ne.s32.totalorder %s25, %s26
    %p40 = scmp.eq.s32.totalorder %s18, 1
    %p41 = por %p39, %p40
    %p43 = scmp.ne.s32.totalorder %s26, %s42
    %p44 = scmp.eq.s32.totalorder %s18, 0
    %p45 = por %p43, %p44
    %s46 = ssub.s32 %s12, %s19
    %p47 = scmp.eq.s32.totalorder %s46, 0
    %s49 = sadd.s32 %s48, 1
    %s50 = scalar_select %p47, %s48, %s49
    %p53 = pneg %p47
    %p54 = scmp.eq.s32.totalorder %s12, 1
    %p55 = por %p53, %p54
    %p56 = scmp.ne.s32.totalorder %s48, %s51
    %p57 = scmp.eq.s32.totalorder %s12, 0
    %p58 = por %p56, %p57
    %p59 = scmp.ne.s32.totalorder %s48, %s51
    %p60 = scmp.eq.s32.totalorder %s17, 1
    %p61 = por %p59, %p60
    %p62 = scmp.ne.s32.totalorder %s51, %s52
    %p63 = scmp.eq.s32.totalorder %s17, 0
    %p64 = por %p62, %p63
    %p65 = scmp.ne.s32.totalorder %s51, %s52
    %p66 = scmp.eq.s32.totalorder %s18, 1
    %p67 = por %p65, %p66
    %p69 = scmp.ne.s32.totalorder %s52, %s68
    %p70 = scmp.eq.s32.totalorder %s18, 0
    %p71 = por %p69, %p70
    %s72 = ssub.s32 %s12, %s19
    %p73 = scmp.eq.s32.totalorder %s72, 0
    %s75 = sadd.s32 %s74, 1
    %s76 = scalar_select %p73, %s74, %s75
    %p79 = pneg %p73
    %p80 = scmp.eq.s32.totalorder %s12, 1
    %p81 = por %p79, %p80
    %p82 = scmp.ne.s32.totalorder %s74, %s77
    %p83 = scmp.eq.s32.totalorder %s12, 0
    %p84 = por %p82, %p83
    %p85 = scmp.ne.s32.totalorder %s74, %s77
    %p86 = scmp.eq.s32.totalorder %s17, 1
    %p87 = por %p85, %p86
    %p88 = scmp.ne.s32.totalorder %s77, %s78
    %p89 = scmp.eq.s32.totalorder %s17, 0
    %p90 = por %p88, %p89
    %p91 = scmp.ne.s32.totalorder %s77, %s78
    %p92 = scmp.eq.s32.totalorder %s18, 1
    %p93 = por %p91, %p92
    %p95 = scmp.ne.s32.totalorder %s78, %s94
    %p96 = scmp.eq.s32.totalorder %s18, 0
    %p97 = por %p95, %p96
    %s98 = ssub.s32 %s12, %s19
    %p99 = scmp.eq.s32.totalorder %s98, 0
    %s101 = sadd.s32 %s100, 1
    %s102 = scalar_select %p99, %s100, %s101
    %p105 = pneg %p99
    %p106 = scmp.eq.s32.totalorder %s12, 1
    %p107 = por %p105, %p106
    %p108 = scmp.ne.s32.totalorder %s100, %s103
    %p109 = scmp.eq.s32.totalorder %s12, 0
    %p110 = por %p108, %p109
    %p111 = scmp.ne.s32.totalorder %s100, %s103
    %p112 = scmp.eq.s32.totalorder %s17, 1
    %p113 = por %p111, %p112
    %p114 = scmp.ne.s32.totalorder %s103, %s104
    %p115 = scmp.eq.s32.totalorder %s17, 0
    %p116 = por %p114, %p115
    %p117 = scmp.ne.s32.totalorder %s103, %s104
    %p118 = scmp.eq.s32.totalorder %s18, 1
    %p119 = por %p117, %p118
    %p121 = scmp.ne.s32.totalorder %s104, %s120
    %p122 = scmp.eq.s32.totalorder %s18, 0
    %p123 = por %p121, %p122
    %s124 = ssub.s32 %s12, %s19
    %p125 = scmp.eq.s32.totalorder %s124, 0
    %s127 = sadd.s32 %s126, 1
    %s128 = scalar_select %p125, %s126, %s127
    %p131 = pneg %p125
    %p132 = scmp.eq.s32.totalorder %s12, 1
    %p133 = por %p131, %p132
    %p134 = scmp.ne.s32.totalorder %s126, %s129
    %p135 = scmp.eq.s32.totalorder %s12, 0
    %p136 = por %p134, %p135
    %p137 = scmp.ne.s32.totalorder %s126, %s129
    %p138 = scmp.eq.s32.totalorder %s17, 1
    %p139 = por %p137, %p138
    %p140 = scmp.ne.s32.totalorder %s129, %s130
    %p141 = scmp.eq.s32.totalorder %s17, 0
    %p142 = por %p140, %p141
    %p143 = scmp.ne.s32.totalorder %s129, %s130
    %p144 = scmp.eq.s32.totalorder %s18, 1
    %p145 = por %p143, %p144
    %p147 = scmp.ne.s32.totalorder %s130, %s146
    %p148 = scmp.eq.s32.totalorder %s18, 0
    %p149 = por %p147, %p148
    %s150 = ssub.s32 %s12, %s19
    %p151 = scmp.eq.s32.totalorder %s150, 0
    %s153 = sadd.s32 %s152, 1
    %s154 = scalar_select %p151, %s152, %s153
    %p157 = pneg %p151
    %p158 = scmp.eq.s32.totalorder %s12, 1
    %p159 = por %p157, %p158
    %p160 = scmp.ne.s32.totalorder %s152, %s155
    %p161 = scmp.eq.s32.totalorder %s12, 0
    %p162 = por %p160, %p161
    %p163 = scmp.ne.s32.totalorder %s152, %s155
    %p164 = scmp.eq.s32.totalorder %s17, 1
    %p165 = por %p163, %p164
    %p166 = scmp.ne.s32.totalorder %s155, %s156
    %p167 = scmp.eq.s32.totalorder %s17, 0
    %p168 = por %p166, %p167
    %p169 = scmp.ne.s32.totalorder %s155, %s156
    %p170 = scmp.eq.s32.totalorder %s18, 1
    %p171 = por %p169, %p170
    %p173 = scmp.ne.s32.totalorder %s156, %s172
    %p174 = scmp.eq.s32.totalorder %s18, 0
    %p175 = por %p173, %p174
    %p176 = scmp.le.s32.totalorder 1, %s12
    %p177 = scmp.lt.s32.totalorder %s12, 3
    %p178 = pnand %p176, %p177
    %p179 = pneg %p178
    // Predicated region
    $region9: #{transformer_forward.34} parent=5 // pred_check
      _
    $region10: #{transformer_forward.34} parent=5 // pred_check_branch
      %181 = sbr.rel (%p178) target = $region12
    $region11: #{transformer_forward.34} parent=5 // pred_region
      %s182 = ssub.s32 %s12, 1
    $region12: #{transformer_forward.34} parent=5 // pred_fallthru
      _
    %p183 = scmp.lt.s32.totalorder %s12, 2
    // Predicated region
    $region13: #{transformer_forward.34} parent=5 // pred_check
      %p184 = pneg %p183
    $region14: #{transformer_forward.34} parent=5 // pred_check_branch
      %186 = sbr.rel (%p184) target = $region16
    $region15: #{transformer_forward.34} parent=5 // pred_region
      // Predicated region
      $region17: #{transformer_forward.34} parent=15 // pred_check
        %p187 = pneg %p32
      $region18: #{transformer_forward.34} parent=15 // pred_check_branch
        %189 = sbr.rel (%p187) target = $region20
      $region19: #{transformer_forward.34} parent=15 // pred_region
        %p190 = scmp.lt.s32.totalorder %s12, 1
        %s191 = scalar_select %p190, %s12, 1
        %s192 = scalar_lea.vmem %s0, %s191
      $region20: #{transformer_forward.34} parent=15 // pred_fallthru
        _
      // Predicated region
      $region21: #{transformer_forward.34} parent=15 // pred_check
        %p193 = pneg %p58
      $region22: #{transformer_forward.34} parent=15 // pred_check_branch
        %195 = sbr.rel (%p193) target = $region24
      $region23: #{transformer_forward.34} parent=15 // pred_region
        %p196 = scmp.lt.s32.totalorder %s12, 1
        %s197 = scalar_select %p196, %s12, 1
        %s198 = smul.addr %s197, 4
        %s199 = scalar_lea.vmem %s1, %s198
      $region24: #{transformer_forward.34} parent=15 // pred_fallthru
        _
      // Predicated region
      $region25: #{transformer_forward.34} parent=15 // pred_check
        %p200 = pneg %p84
      $region26: #{transformer_forward.34} parent=15 // pred_check_branch
        %202 = sbr.rel (%p200) target = $region28
      $region27: #{transformer_forward.34} parent=15 // pred_region
        %p203 = scmp.lt.s32.totalorder %s12, 1
        %s204 = scalar_select %p203, %s12, 1
        %s205 = smul.addr %s204, 4
        %s206 = scalar_lea.vmem %s2, %s205
      $region28: #{transformer_forward.34} parent=15 // pred_fallthru
        _
      // Predicated region
      $region29: #{transformer_forward.34} parent=15 // pred_check
        %p207 = pneg %p110
      $region30: #{transformer_forward.34} parent=15 // pred_check_branch
        %209 = sbr.rel (%p207) target = $region32
      $region31: #{transformer_forward.34} parent=15 // pred_region
        %p210 = scmp.lt.s32.totalorder %s12, 1
        %s211 = scalar_select %p210, %s12, 1
        %s212 = smul.addr %s211, 4
        %s213 = scalar_lea.vmem %s3, %s212
      $region32: #{transformer_forward.34} parent=15 // pred_fallthru
        _
    $region16: #{transformer_forward.34} parent=5 // pred_fallthru
      _
    %p214 = scmp.le.s32.totalorder 1, %s12
    %p215 = scmp.lt.s32.totalorder %s12, 3
    %p216 = pnand %p214, %p215
    %p217 = pneg %p216
    // Predicated region
    $region33: #{transformer_forward.34} parent=5 // pred_check
      _
    $region34: #{transformer_forward.34} parent=5 // pred_check_branch
      %219 = sbr.rel (%p216) target = $region36
    $region35: #{transformer_forward.34} parent=5 // pred_region
      %s220 = ssub.s32 %s12, 1
      %p221 = scmp.lt.s32.totalorder %s17, 1
      %s222 = scalar_select %p221, %s17, 1
      %s223 = scalar_lea.vmem %s0, %s222
      %p224 = pneg %p38
      %p225 = pneg %p35
      %p226 = scmp.lt.s32.totalorder %s17, 1
      %s227 = scalar_select %p226, %s17, 1
      %s228 = smul.addr %s227, 4
      %s229 = scalar_lea.vmem %s1, %s228
      %p230 = pneg %p64
      %p231 = pneg %p61
      %p232 = scmp.lt.s32.totalorder %s17, 1
      %s233 = scalar_select %p232, %s17, 1
      %s234 = smul.addr %s233, 4
      %s235 = scalar_lea.vmem %s2, %s234
      %p236 = pneg %p90
      %p237 = pneg %p87
      %p238 = scmp.lt.s32.totalorder %s17, 1
      %s239 = scalar_select %p238, %s17, 1
      %s240 = smul.addr %s239, 4
      %s241 = scalar_lea.vmem %s3, %s240
      %p242 = pneg %p116
      %p243 = pneg %p113
      %p244 = pneg %p142
      %p245 = pneg %p139
      %p246 = scmp.lt.s32.totalorder %s17, 1
      %s247 = scalar_select %p246, %s17, 1
      %s248 = smul.addr %s247, 4
      %s249 = scalar_lea.vmem %s4, %s248
      %p250 = pneg %p168
      %p251 = pneg %p165
      %p252 = scmp.lt.s32.totalorder %s17, 1
      %s253 = scalar_select %p252, %s17, 1
      %s254 = smul.addr %s253, 4
      %s255 = smul.addr %s254, 8
      %s256 = scalar_lea.vmem %s5, %s255
      %p257 = scmp.lt.s32.totalorder %s17, 1
      %s258 = scalar_select %p257, %s17, 1
      %s259 = scalar_lea.vmem %s0, %s258
      %p260 = scmp.lt.s32.totalorder %s17, 1
      %s261 = scalar_select %p260, %s17, 1
      %s262 = smul.addr %s261, 4
      %s263 = scalar_lea.vmem %s1, %s262
      %p264 = scmp.lt.s32.totalorder %s17, 1
      %s265 = scalar_select %p264, %s17, 1
      %s266 = smul.addr %s265, 4
      %s267 = scalar_lea.vmem %s2, %s266
      %p268 = scmp.lt.s32.totalorder %s17, 1
      %s269 = scalar_select %p268, %s17, 1
      %s270 = smul.addr %s269, 4
      %s271 = scalar_lea.vmem %s3, %s270
      %p272 = scmp.lt.s32.totalorder %s17, 1
      %s273 = scalar_select %p272, %s17, 1
      %s274 = smul.addr %s273, 4
      %s275 = scalar_lea.vmem %s4, %s274
      %p276 = scmp.lt.s32.totalorder %s17, 1
      %s277 = scalar_select %p276, %s17, 1
      %s278 = smul.addr %s277, 4
      %s279 = smul.addr %s278, 8
      %s280 = scalar_lea.vmem %s5, %s279
      %v282 = vld [vmem:[%s259] sm:$0x1]
      %vm283 = vcmp.gt.f32.partialorder %v282, 0.0
      %v284 = vsel %vm283, -1e+09, 0.0
      %v286 = vlaneseq
      %v287 = vshrl.u32 %v286, 7
      %v288 = vsub.s32 0, %v287
      %v289 = vrot.slane %v284, %v288
      %v291 = vlaneseq
      %v292 = vshrl.u32 %v291, 7
      %v293 = vlaneseq
      %v294 = vand.u32 %v293, 127
      %vm295 = vcmp.gt.s32.totalorder %v294, %v292
      %v296 = vsel %vm295, -1e+09, %v289
      %v297 = vld [vmem:[%s263] sm:$0xf]
      %v298 = vunpack.c.l.bf16 %v297
      %v299 = vmul.f32 %v298, 0.35355338
      %v300 = vpack.c.bf16 %v299, %v299
      %v301 = vld [vmem:[%s267] sm:$0xf]
      %v302 = vld [vmem:[%s271] sm:$0xf]
      %vm303 = vcmask 64512
      %v305 = vsel %vm303, %v300, 0
      %v308 = vsel %vm303, %v301, 0
      %310 = vmatprep.subr.bf16.mxu0 0
      %311 = vmatpush1.bf16.xpose.msra.mxu0 0
      %312 = vmatprep.subr.bf16.mxu0 0
      %313 = vmatpush1.bf16.xpose.msra.mxu0 0
      %314 = vmatprep.subr.bf16.mxu0 0
      %315 = vmatpush1.bf16.xpose.msra.mxu0 0
      %316 = vmatprep.subr.bf16.mxu0 0
      %317 = vmatpush1.bf16.xpose.msra.mxu0 0
      %318 = vmatprep.subr.bf16.mxu0 0
      %319 = vmatpush1.bf16.xpose.msra.mxu0 0
      %320 = vmatprep.subr.bf16.mxu0 0
      %321 = vmatpush1.bf16.xpose.msra.mxu0 0
      %322 = vmatprep.subr.bf16.mxu0 0
      %323 = vmatpush1.bf16.xpose.msra.mxu0 0
      %324 = vmatprep.subr.bf16.mxu0 0
      %325 = vmatpush1.bf16.xpose.msra.mxu0 %v308
      %326 = vmatprep.subr.bf16.mxu0 0
      %327 = vmatpush2.bf16.xpose.msra.mxu0 0
      %328 = vmatprep.subr.bf16.mxu0 0
      %329 = vmatpush2.bf16.xpose.msra.mxu0 0
      %330 = vmatprep.subr.bf16.mxu0 0
      %331 = vmatpush2.bf16.xpose.msra.mxu0 0
      %332 = vmatprep.subr.bf16.mxu0 0
      %333 = vmatpush2.bf16.xpose.msra.mxu0 0
      %334 = vmatprep.subr.bf16.mxu0 0
      %335 = vmatpush2.bf16.xpose.msra.mxu0 0
      %336 = vmatprep.subr.bf16.mxu0 0
      %337 = vmatpush2.bf16.xpose.msra.mxu0 0
      %338 = vmatprep.subr.bf16.mxu0 0
      %339 = vmatpush2.bf16.xpose.msra.mxu0 0
      %340 = vmatprep.subr.bf16.mxu0 0
      %341 = vmatpush2.bf16.xpose.msra.mxu0 0
      %342 = vmatprep.mubr.bf16.mxu0 0
      %343 = vmatmul.mubr.bf16.gmra.mxu0 %v305
      %v344 = vpop.f32.mrf.mxu0
      %v345 = vadd.f32 %v296, %v344
      %v346 = vpop.f32.mrf.mxu0
      %v347 = vpop.f32.mrf.mxu0
      %v348 = vpop.f32.mrf.mxu0
      %349 = vdwg.mxu0
      %v350 = vsel %vm303, %v345, -inf
      %351 = vmax.xlane.f32.xlu0 %v350
      %v352 = vpop.xlane.xlu0 %351
      %v353 = vsub.f32 %v345, %v352
      %v354 = vmul.f32 %v353, 1.442695
      %v355 = vpow.pop %v354
      %v356 = vsel %vm303, %v355, 0.0
      %357 = vadd.xlane.f32.xlu0 %v356
      %v358 = vpop.xlane.xlu0 %357
      %v359 = vrcp.pop %v358
      %v360 = vmul.f32 %v355, %v359
      %361 = vst.msk [vmem:[%s280] sm:$0xff] %vm303, %v360
      %v362 = vpack.c.bf16 %v360, %v360
      %v364 = vsel %vm303, %v362, 0
      %vm366 = vcmask 1043456
      %v368 = vsel %vm366, %v302, 0
      %370 = vmatprep.subr.bf16.mxu0 0
      %371 = vmatpush1.bf16.msra.mxu0 0
      %372 = vmatprep.subr.bf16.mxu0 0
      %373 = vmatpush1.bf16.msra.mxu0 0
      %374 = vmatprep.subr.bf16.mxu0 0
      %375 = vmatpush1.bf16.msra.mxu0 0
      %376 = vmatprep.subr.bf16.mxu0 0
      %377 = vmatpush1.bf16.msra.mxu0 0
      %378 = vmatprep.subr.bf16.mxu0 0
      %379 = vmatpush1.bf16.msra.mxu0 0
      %380 = vmatprep.subr.bf16.mxu0 0
      %381 = vmatpush1.bf16.msra.mxu0 0
      %382 = vmatprep.subr.bf16.mxu0 0
      %383 = vmatpush1.bf16.msra.mxu0 0
      %384 = vmatprep.subr.bf16.mxu0 0
      %385 = vmatpush1.bf16.msra.mxu0 %v368
      %386 = vmatprep.subr.bf16.mxu0 0
      %387 = vmatpush2.bf16.msra.mxu0 0
      %388 = vmatprep.subr.bf16.mxu0 0
      %389 = vmatpush2.bf16.msra.mxu0 0
      %390 = vmatprep.subr.bf16.mxu0 0
      %391 = vmatpush2.bf16.msra.mxu0 0
      %392 = vmatprep.subr.bf16.mxu0 0
      %393 = vmatpush2.bf16.msra.mxu0 0
      %394 = vmatprep.subr.bf16.mxu0 0
      %395 = vmatpush2.bf16.msra.mxu0 0
      %396 = vmatprep.subr.bf16.mxu0 0
      %397 = vmatpush2.bf16.msra.mxu0 0
      %398 = vmatprep.subr.bf16.mxu0 0
      %399 = vmatpush2.bf16.msra.mxu0 0
      %400 = vmatprep.subr.bf16.mxu0 0
      %401 = vmatpush2.bf16.msra.mxu0 0
      %402 = vmatprep.mubr.bf16.mxu0 0
      %403 = vmatmul.mubr.bf16.gmra.mxu0 %v364
      %v404 = vpop.f32.mrf.mxu0
      %v405 = vadd.f32 0.0, %v404
      %v406 = vpop.f32.mrf.mxu0
      %v407 = vpop.f32.mrf.mxu0
      %v408 = vpop.f32.mrf.mxu0
      %409 = vdwg.mxu0
      %411 = vrot.lane.b32.xlu0 %v300, 120
      %v412 = vpop.permute.xlu0 %411
      %v414 = vunpack.c.l.b16 %v301
      %v415 = vpack.c.b16 %v414, %v414
      %416 = vrot.lane.b32.xlu0 %v415, 120
      %v417 = vpop.permute.xlu0 %416
      %v419 = vsel %vm303, %v412, 0
      %v422 = vsel %vm303, %v417, 0
      %424 = vmatprep.subr.bf16.mxu0 0
      %425 = vmatpush1.bf16.xpose.msra.mxu0 0
      %426 = vmatprep.subr.bf16.mxu0 0
      %427 = vmatpush1.bf16.xpose.msra.mxu0 0
      %428 = vmatprep.subr.bf16.mxu0 0
      %429 = vmatpush1.bf16.xpose.msra.mxu0 0
      %430 = vmatprep.subr.bf16.mxu0 0
      %431 = vmatpush1.bf16.xpose.msra.mxu0 0
      %432 = vmatprep.subr.bf16.mxu0 0
      %433 = vmatpush1.bf16.xpose.msra.mxu0 0
      %434 = vmatprep.subr.bf16.mxu0 0
      %435 = vmatpush1.bf16.xpose.msra.mxu0 0
      %436 = vmatprep.subr.bf16.mxu0 0
      %437 = vmatpush1.bf16.xpose.msra.mxu0 0
      %438 = vmatprep.subr.bf16.mxu0 0
      %439 = vmatpush1.bf16.xpose.msra.mxu0 %v422
      %440 = vmatprep.subr.bf16.mxu0 0
      %441 = vmatpush2.bf16.xpose.msra.mxu0 0
      %442 = vmatprep.subr.bf16.mxu0 0
      %443 = vmatpush2.bf16.xpose.msra.mxu0 0
      %444 = vmatprep.subr.bf16.mxu0 0
      %445 = vmatpush2.bf16.xpose.msra.mxu0 0
      %446 = vmatprep.subr.bf16.mxu0 0
      %447 = vmatpush2.bf16.xpose.msra.mxu0 0
      %448 = vmatprep.subr.bf16.mxu0 0
      %449 = vmatpush2.bf16.xpose.msra.mxu0 0
      %450 = vmatprep.subr.bf16.mxu0 0
      %451 = vmatpush2.bf16.xpose.msra.mxu0 0
      %452 = vmatprep.subr.bf16.mxu0 0
      %453 = vmatpush2.bf16.xpose.msra.mxu0 0
      %454 = vmatprep.subr.bf16.mxu0 0
      %455 = vmatpush2.bf16.xpose.msra.mxu0 0
      %456 = vmatprep.mubr.bf16.mxu0 0
      %457 = vmatmul.mubr.bf16.gmra.mxu0 %v419
      %v458 = vpop.f32.mrf.mxu0
      %v459 = vadd.f32 %v296, %v458
      %v460 = vpop.f32.mrf.mxu0
      %v461 = vpop.f32.mrf.mxu0
      %v462 = vpop.f32.mrf.mxu0
      %463 = vdwg.mxu0
      %v464 = vsel %vm303, %v459, -inf
      %465 = vmax.xlane.f32.xlu0 %v464
      %v466 = vpop.xlane.xlu0 %465
      %v467 = vsub.f32 %v459, %v466
      %v468 = vmul.f32 %v467, 1.442695
      %v469 = vpow.pop %v468
      %v470 = vsel %vm303, %v469, 0.0
      %471 = vadd.xlane.f32.xlu0 %v470
      %v472 = vpop.xlane.xlu0 %471
      %v473 = vrcp.pop %v472
      %v474 = vmul.f32 %v469, %v473
      %s475 = scalar_lea.vmem %s280, 8
      %476 = vst.msk [vmem:[%s475] sm:$0xff] %vm303, %v474
      %v477 = vpack.c.bf16 %v474, %v474
      %v479 = vunpack.c.l.b16 %v302
      %v480 = vpack.c.b16 %v479, %v479
      %481 = vrot.lane.b32.xlu0 %v480, 120
      %v482 = vpop.permute.xlu0 %481
      %v484 = vsel %vm303, %v477, 0
      %v487 = vsel %vm366, %v482, 0
      %489 = vmatprep.subr.bf16.mxu0 0
      %490 = vmatpush1.bf16.msra.mxu0 0
      %491 = vmatprep.subr.bf16.mxu0 0
      %492 = vmatpush1.bf16.msra.mxu0 0
      %493 = vmatprep.subr.bf16.mxu0 0
      %494 = vmatpush1.bf16.msra.mxu0 0
      %495 = vmatprep.subr.bf16.mxu0 0
      %496 = vmatpush1.bf16.msra.mxu0 0
      %497 = vmatprep.subr.bf16.mxu0 0
      %498 = vmatpush1.bf16.msra.mxu0 0
      %499 = vmatprep.subr.bf16.mxu0 0
      %500 = vmatpush1.bf16.msra.mxu0 0
      %501 = vmatprep.subr.bf16.mxu0 0
      %502 = vmatpush1.bf16.msra.mxu0 0
      %503 = vmatprep.subr.bf16.mxu0 0
      %504 = vmatpush1.bf16.msra.mxu0 %v487
      %505 = vmatprep.subr.bf16.mxu0 0
      %506 = vmatpush2.bf16.msra.mxu0 0
      %507 = vmatprep.subr.bf16.mxu0 0
      %508 = vmatpush2.bf16.msra.mxu0 0
      %509 = vmatprep.subr.bf16.mxu0 0
      %510 = vmatpush2.bf16.msra.mxu0 0
      %511 = vmatprep.subr.bf16.mxu0 0
      %512 = vmatpush2.bf16.msra.mxu0 0
      %513 = vmatprep.subr.bf16.mxu0 0
      %514 = vmatpush2.bf16.msra.mxu0 0
      %515 = vmatprep.subr.bf16.mxu0 0
      %516 = vmatpush2.bf16.msra.mxu0 0
      %517 = vmatprep.subr.bf16.mxu0 0
      %518 = vmatpush2.bf16.msra.mxu0 0
      %519 = vmatprep.subr.bf16.mxu0 0
      %520 = vmatpush2.bf16.msra.mxu0 0
      %521 = vmatprep.mubr.bf16.mxu0 0
      %522 = vmatmul.mubr.bf16.gmra.mxu0 %v484
      %v523 = vpop.f32.mrf.mxu0
      %v524 = vadd.f32 0.0, %v523
      %v525 = vpop.f32.mrf.mxu0
      %v526 = vpop.f32.mrf.mxu0
      %v527 = vpop.f32.mrf.mxu0
      %528 = vdwg.mxu0
      %529 = vrot.lane.b32.xlu0 %v300, 112
      %v530 = vpop.permute.xlu0 %529
      %531 = vrot.lane.b32.xlu0 %v415, 112
      %v532 = vpop.permute.xlu0 %531
      %v534 = vsel %vm303, %v530, 0
      %v537 = vsel %vm303, %v532, 0
      %539 = vmatprep.subr.bf16.mxu0 0
      %540 = vmatpush1.bf16.xpose.msra.mxu0 0
      %541 = vmatprep.subr.bf16.mxu0 0
      %542 = vmatpush1.bf16.xpose.msra.mxu0 0
      %543 = vmatprep.subr.bf16.mxu0 0
      %544 = vmatpush1.bf16.xpose.msra.mxu0 0
      %545 = vmatprep.subr.bf16.mxu0 0
      %546 = vmatpush1.bf16.xpose.msra.mxu0 0
      %547 = vmatprep.subr.bf16.mxu0 0
      %548 = vmatpush1.bf16.xpose.msra.mxu0 0
      %549 = vmatprep.subr.bf16.mxu0 0
      %550 = vmatpush1.bf16.xpose.msra.mxu0 0
      %551 = vmatprep.subr.bf16.mxu0 0
      %552 = vmatpush1.bf16.xpose.msra.mxu0 0
      %553 = vmatprep.subr.bf16.mxu0 0
      %554 = vmatpush1.bf16.xpose.msra.mxu0 %v537
      %555 = vmatprep.subr.bf16.mxu0 0
      %556 = vmatpush2.bf16.xpose.msra.mxu0 0
      %557 = vmatprep.subr.bf16.mxu0 0
      %558 = vmatpush2.bf16.xpose.msra.mxu0 0
      %559 = vmatprep.subr.bf16.mxu0 0
      %560 = vmatpush2.bf16.xpose.msra.mxu0 0
      %561 = vmatprep.subr.bf16.mxu0 0
      %562 = vmatpush2.bf16.xpose.msra.mxu0 0
      %563 = vmatprep.subr.bf16.mxu0 0
      %564 = vmatpush2.bf16.xpose.msra.mxu0 0
      %565 = vmatprep.subr.bf16.mxu0 0
      %566 = vmatpush2.bf16.xpose.msra.mxu0 0
      %567 = vmatprep.subr.bf16.mxu0 0
      %568 = vmatpush2.bf16.xpose.msra.mxu0 0
      %569 = vmatprep.subr.bf16.mxu0 0
      %570 = vmatpush2.bf16.xpose.msra.mxu0 0
      %571 = vmatprep.mubr.bf16.mxu0 0
      %572 = vmatmul.mubr.bf16.gmra.mxu0 %v534
      %v573 = vpop.f32.mrf.mxu0
      %v574 = vadd.f32 %v296, %v573
      %v575 = vpop.f32.mrf.mxu0
      %v576 = vpop.f32.mrf.mxu0
      %v577 = vpop.f32.mrf.mxu0
      %578 = vdwg.mxu0
      %v579 = vsel %vm303, %v574, -inf
      %580 = vmax.xlane.f32.xlu0 %v579
      %v581 = vpop.xlane.xlu0 %580
      %v582 = vsub.f32 %v574, %v581
      %v583 = vmul.f32 %v582, 1.442695
      %v584 = vpow.pop %v583
      %v585 = vsel %vm303, %v584, 0.0
      %586 = vadd.xlane.f32.xlu0 %v585
      %v587 = vpop.xlane.xlu0 %586
      %v588 = vrcp.pop %v587
      %v589 = vmul.f32 %v584, %v588
      %s590 = scalar_lea.vmem %s280, 16
      %591 = vst.msk [vmem:[%s590] sm:$0xff] %vm303, %v589
      %v592 = vpack.c.bf16 %v589, %v589
      %593 = vrot.lane.b32.xlu0 %v480, 112
      %v594 = vpop.permute.xlu0 %593
      %v596 = vsel %vm303, %v592, 0
      %v599 = vsel %vm366, %v594, 0
      %601 = vmatprep.subr.bf16.mxu0 0
      %602 = vmatpush1.bf16.msra.mxu0 0
      %603 = vmatprep.subr.bf16.mxu0 0
      %604 = vmatpush1.bf16.msra.mxu0 0
      %605 = vmatprep.subr.bf16.mxu0 0
      %606 = vmatpush1.bf16.msra.mxu0 0
      %607 = vmatprep.subr.bf16.mxu0 0
      %608 = vmatpush1.bf16.msra.mxu0 0
      %609 = vmatprep.subr.bf16.mxu0 0
      %610 = vmatpush1.bf16.msra.mxu0 0
      %611 = vmatprep.subr.bf16.mxu0 0
      %612 = vmatpush1.bf16.msra.mxu0 0
      %613 = vmatprep.subr.bf16.mxu0 0
      %614 = vmatpush1.bf16.msra.mxu0 0
      %615 = vmatprep.subr.bf16.mxu0 0
      %616 = vmatpush1.bf16.msra.mxu0 %v599
      %617 = vmatprep.subr.bf16.mxu0 0
      %618 = vmatpush2.bf16.msra.mxu0 0
      %619 = vmatprep.subr.bf16.mxu0 0
      %620 = vmatpush2.bf16.msra.mxu0 0
      %621 = vmatprep.subr.bf16.mxu0 0
      %622 = vmatpush2.bf16.msra.mxu0 0
      %623 = vmatprep.subr.bf16.mxu0 0
      %624 = vmatpush2.bf16.msra.mxu0 0
      %625 = vmatprep.subr.bf16.mxu0 0
      %626 = vmatpush2.bf16.msra.mxu0 0
      %627 = vmatprep.subr.bf16.mxu0 0
      %628 = vmatpush2.bf16.msra.mxu0 0
      %629 = vmatprep.subr.bf16.mxu0 0
      %630 = vmatpush2.bf16.msra.mxu0 0
      %631 = vmatprep.subr.bf16.mxu0 0
      %632 = vmatpush2.bf16.msra.mxu0 0
      %633 = vmatprep.mubr.bf16.mxu0 0
      %634 = vmatmul.mubr.bf16.gmra.mxu0 %v596
      %v635 = vpop.f32.mrf.mxu0
      %v636 = vadd.f32 0.0, %v635
      %v637 = vpop.f32.mrf.mxu0
      %v638 = vpop.f32.mrf.mxu0
      %v639 = vpop.f32.mrf.mxu0
      %640 = vdwg.mxu0
      %641 = vrot.lane.b32.xlu0 %v300, 104
      %v642 = vpop.permute.xlu0 %641
      %643 = vrot.lane.b32.xlu0 %v415, 104
      %v644 = vpop.permute.xlu0 %643
      %v646 = vsel %vm303, %v642, 0
      %v649 = vsel %vm303, %v644, 0
      %651 = vmatprep.subr.bf16.mxu0 0
      %652 = vmatpush1.bf16.xpose.msra.mxu0 0
      %653 = vmatprep.subr.bf16.mxu0 0
      %654 = vmatpush1.bf16.xpose.msra.mxu0 0
      %655 = vmatprep.subr.bf16.mxu0 0
      %656 = vmatpush1.bf16.xpose.msra.mxu0 0
      %657 = vmatprep.subr.bf16.mxu0 0
      %658 = vmatpush1.bf16.xpose.msra.mxu0 0
      %659 = vmatprep.subr.bf16.mxu0 0
      %660 = vmatpush1.bf16.xpose.msra.mxu0 0
      %661 = vmatprep.subr.bf16.mxu0 0
      %662 = vmatpush1.bf16.xpose.msra.mxu0 0
      %663 = vmatprep.subr.bf16.mxu0 0
      %664 = vmatpush1.bf16.xpose.msra.mxu0 0
      %665 = vmatprep.subr.bf16.mxu0 0
      %666 = vmatpush1.bf16.xpose.msra.mxu0 %v649
      %667 = vmatprep.subr.bf16.mxu0 0
      %668 = vmatpush2.bf16.xpose.msra.mxu0 0
      %669 = vmatprep.subr.bf16.mxu0 0
      %670 = vmatpush2.bf16.xpose.msra.mxu0 0
      %671 = vmatprep.subr.bf16.mxu0 0
      %672 = vmatpush2.bf16.xpose.msra.mxu0 0
      %673 = vmatprep.subr.bf16.mxu0 0
      %674 = vmatpush2.bf16.xpose.msra.mxu0 0
      %675 = vmatprep.subr.bf16.mxu0 0
      %676 = vmatpush2.bf16.xpose.msra.mxu0 0
      %677 = vmatprep.subr.bf16.mxu0 0
      %678 = vmatpush2.bf16.xpose.msra.mxu0 0
      %679 = vmatprep.subr.bf16.mxu0 0
      %680 = vmatpush2.bf16.xpose.msra.mxu0 0
      %681 = vmatprep.subr.bf16.mxu0 0
      %682 = vmatpush2.bf16.xpose.msra.mxu0 0
      %683 = vmatprep.mubr.bf16.mxu0 0
      %684 = vmatmul.mubr.bf16.gmra.mxu0 %v646
      %v685 = vpop.f32.mrf.mxu0
      %v686 = vadd.f32 %v296, %v685
      %v687 = vpop.f32.mrf.mxu0
      %v688 = vpop.f32.mrf.mxu0
      %v689 = vpop.f32.mrf.mxu0
      %690 = vdwg.mxu0
      %v691 = vsel %vm303, %v686, -inf
      %692 = vmax.xlane.f32.xlu0 %v691
      %v693 = vpop.xlane.xlu0 %692
      %v694 = vsub.f32 %v686, %v693
      %v695 = vmul.f32 %v694, 1.442695
      %v696 = vpow.pop %v695
      %v697 = vsel %vm303, %v696, 0.0
      %698 = vadd.xlane.f32.xlu0 %v697
      %v699 = vpop.xlane.xlu0 %698
      %v700 = vrcp.pop %v699
      %v701 = vmul.f32 %v696, %v700
      %s702 = scalar_lea.vmem %s280, 24
      %703 = vst.msk [vmem:[%s702] sm:$0xff] %vm303, %v701
      %v704 = vpack.c.bf16 %v701, %v701
      %705 = vrot.lane.b32.xlu0 %v480, 104
      %v706 = vpop.permute.xlu0 %705
      %v708 = vsel %vm303, %v704, 0
      %v711 = vsel %vm366, %v706, 0
      %713 = vmatprep.subr.bf16.mxu0 0
      %714 = vmatpush1.bf16.msra.mxu0 0
      %715 = vmatprep.subr.bf16.mxu0 0
      %716 = vmatpush1.bf16.msra.mxu0 0
      %717 = vmatprep.subr.bf16.mxu0 0
      %718 = vmatpush1.bf16.msra.mxu0 0
      %719 = vmatprep.subr.bf16.mxu0 0
      %720 = vmatpush1.bf16.msra.mxu0 0
      %721 = vmatprep.subr.bf16.mxu0 0
      %722 = vmatpush1.bf16.msra.mxu0 0
      %723 = vmatprep.subr.bf16.mxu0 0
      %724 = vmatpush1.bf16.msra.mxu0 0
      %725 = vmatprep.subr.bf16.mxu0 0
      %726 = vmatpush1.bf16.msra.mxu0 0
      %727 = vmatprep.subr.bf16.mxu0 0
      %728 = vmatpush1.bf16.msra.mxu0 %v711
      %729 = vmatprep.subr.bf16.mxu0 0
      %730 = vmatpush2.bf16.msra.mxu0 0
      %731 = vmatprep.subr.bf16.mxu0 0
      %732 = vmatpush2.bf16.msra.mxu0 0
      %733 = vmatprep.subr.bf16.mxu0 0
      %734 = vmatpush2.bf16.msra.mxu0 0
      %735 = vmatprep.subr.bf16.mxu0 0
      %736 = vmatpush2.bf16.msra.mxu0 0
      %737 = vmatprep.subr.bf16.mxu0 0
      %738 = vmatpush2.bf16.msra.mxu0 0
      %739 = vmatprep.subr.bf16.mxu0 0
      %740 = vmatpush2.bf16.msra.mxu0 0
      %741 = vmatprep.subr.bf16.mxu0 0
      %742 = vmatpush2.bf16.msra.mxu0 0
      %743 = vmatprep.subr.bf16.mxu0 0
      %744 = vmatpush2.bf16.msra.mxu0 0
      %745 = vmatprep.mubr.bf16.mxu0 0
      %746 = vmatmul.mubr.bf16.gmra.mxu0 %v708
      %v747 = vpop.f32.mrf.mxu0
      %v748 = vadd.f32 0.0, %v747
      %v749 = vpop.f32.mrf.mxu0
      %v750 = vpop.f32.mrf.mxu0
      %v751 = vpop.f32.mrf.mxu0
      %752 = vdwg.mxu0
      %754 = vrot.lane.b32.xlu0 %v524, 8
      %v755 = vpop.permute.xlu0 %754
      %758 = vrot.lane.b32.xlu0 %v636, 16
      %v759 = vpop.permute.xlu0 %758
      %762 = vrot.lane.b32.xlu0 %v748, 24
      %v763 = vpop.permute.xlu0 %762
      %v765 = vsel %vm303, %v405, %v755
      %vm766 = vcmask 130048
      %v767 = vsel %vm766, %v765, %v759
      %vm768 = vcmask 195584
      %v769 = vsel %vm768, %v767, %v763
      %v770 = vpack.c.bf16 %v769, %v769
      %vm771 = vcmask 257024
      %772 = vst.msk [vmem:[%s275] sm:$0xf] %vm771, %v770
      %p773 = scmp.lt.s32.totalorder %s17, 1
      %s774 = scalar_select %p773, %s17, 1
      %s775 = smul.addr %s774, 4
      %s776 = scalar_lea.vmem %s4, %s775
      %p777 = scmp.lt.s32.totalorder %s17, 1
      %s778 = scalar_select %p777, %s17, 1
      %s779 = smul.addr %s778, 4
      %s780 = smul.addr %s779, 8
      %s781 = scalar_lea.vmem %s5, %s780
      // Predicated region
      $region37: #{transformer_forward.34} parent=35 // pred_check
        %p782 = pneg %p139
      $region38: #{transformer_forward.34} parent=35 // pred_check_branch
        %784 = sbr.rel (%p782) target = $region40
      $region39: #{transformer_forward.34} parent=35 // pred_region
        _
      $region40: #{transformer_forward.34} parent=35 // pred_fallthru
        _
      // Predicated region
      $region41: #{transformer_forward.34} parent=35 // pred_check
        %p785 = pneg %p165
      $region42: #{transformer_forward.34} parent=35 // pred_check_branch
        %787 = sbr.rel (%p785) target = $region44
      $region43: #{transformer_forward.34} parent=35 // pred_region
        _
      $region44: #{transformer_forward.34} parent=35 // pred_fallthru
        _
    $region36: #{transformer_forward.34} parent=5 // pred_fallthru
      _
    %p788 = scmp.le.s32.totalorder 2, %s12
    // Predicated region
    $region45: #{transformer_forward.34} parent=5 // pred_check
      %p789 = pneg %p788
    $region46: #{transformer_forward.34} parent=5 // pred_check_branch
      %791 = sbr.rel (%p789) target = $region48
    $region47: #{transformer_forward.34} parent=5 // pred_region
      %s792 = ssub.s32 %s12, 2
      // Predicated region
      $region49: #{transformer_forward.34} parent=47 // pred_check
        %p793 = pneg %p145
      $region50: #{transformer_forward.34} parent=47 // pred_check_branch
        %795 = sbr.rel (%p793) target = $region52
      $region51: #{transformer_forward.34} parent=47 // pred_region
        %p796 = scmp.lt.s32.totalorder %s18, 1
        %s797 = scalar_select %p796, %s18, 1
        %s798 = smul.addr %s797, 4
        %s799 = scalar_lea.vmem %s4, %s798
      $region52: #{transformer_forward.34} parent=47 // pred_fallthru
        _
      // Predicated region
      $region53: #{transformer_forward.34} parent=47 // pred_check
        %p800 = pneg %p171
      $region54: #{transformer_forward.34} parent=47 // pred_check_branch
        %802 = sbr.rel (%p800) target = $region56
      $region55: #{transformer_forward.34} parent=47 // pred_region
        %p803 = scmp.lt.s32.totalorder %s18, 1
        %s804 = scalar_select %p803, %s18, 1
        %s805 = smul.addr %s804, 4
        %s806 = smul.addr %s805, 8
        %s807 = scalar_lea.vmem %s5, %s806
      $region56: #{transformer_forward.34} parent=47 // pred_fallthru
        _
    $region48: #{transformer_forward.34} parent=5 // pred_fallthru
      _
  $region6: #{transformer_forward.34} parent=0 // loop_footer
    %s16 = sadd.s32 1, %s12
  $region7: #{transformer_forward.34} parent=0 // loop_footer_branch
    %11 = sbr.rel target = $region3
  $region8: #{transformer_forward.34} parent=0 // loop_exit
    _

// kernel: transformer_forward.28
$region0: #{transformer_forward.28}
  #allocation0 [shape = 'u32[]', space=smem, size = 0x4, offset = 0x4, fixed_abs, tag = 'smem constant byte address 0x4 - core index']
  #allocation1 [shape = 'u32[144,128]{1,0:T(1,128)}', space=vmem, size = 0x12000, scoped, tag = 'internal scratch']
  %s0 = inlined_call_operand.vmem [shape: bf16[16,32], index: 0, kind: input, shape index: {}]
  %s1 = inlined_call_operand.vmem [shape: bf16[32,64], index: 1, kind: input, shape index: {}]
  %s2 = inlined_call_operand.vmem [shape: f32[1,64], index: 2, kind: input, shape index: {}]
  %s3 = inlined_call_operand.vmem [shape: bf16[64,32], index: 3, kind: input, shape index: {}]
  %s4 = inlined_call_operand.vmem [shape: f32[1,32], index: 4, kind: input, shape index: {}]
  %s5 = inlined_call_operand.vmem [shape: f32[16,32], index: 5, kind: input, shape index: {}]
  %s6 = inlined_call_operand.vmem [shape: f32[1,32], index: 6, kind: input, shape index: {}]
  %s7 = inlined_call_operand.vmem [shape: f32[1,32], index: 7, kind: input, shape index: {}]
  %s8 = inlined_call_operand.vmem [shape: f32[16,32], index: 8, kind: output, shape index: {0}]
  %s9 = inlined_call_operand.vmem [shape: bf16[16,32], index: 9, kind: output, shape index: {1}]
  %10 = xla_tuple %s8, %s9
  %s11 = sld [smem:[#allocation0]]
  $region50: #{transformer_forward.28} parent=0
    _
  %s13 = ssub.s32 1, %s11
  %s14 = scalar_select 0, %s13, %s11
  // Predicated region
  $region2: #{transformer_forward.28} parent=0 // pred_check
    _
  $region3: #{transformer_forward.28} parent=0 // pred_check_branch
    %16 = sbr.rel (0) target = $region5
  $region4: #{transformer_forward.28} parent=0 // pred_region
    _
  $region5: #{transformer_forward.28} parent=0 // pred_fallthru
    _
  // Predicated region
  $region6: #{transformer_forward.28} parent=0 // pred_check
    _
  $region7: #{transformer_forward.28} parent=0 // pred_check_branch
    %18 = sbr.rel (0) target = $region9
  $region8: #{transformer_forward.28} parent=0 // pred_region
    _
  $region9: #{transformer_forward.28} parent=0 // pred_fallthru
    _
  // Predicated region
  $region10: #{transformer_forward.28} parent=0 // pred_check
    _
  $region11: #{transformer_forward.28} parent=0 // pred_check_branch
    %20 = sbr.rel (0) target = $region13
  $region12: #{transformer_forward.28} parent=0 // pred_region
    _
  $region13: #{transformer_forward.28} parent=0 // pred_fallthru
    _
  // Predicated region
  $region14: #{transformer_forward.28} parent=0 // pred_check
    _
  $region15: #{transformer_forward.28} parent=0 // pred_check_branch
    %22 = sbr.rel (0) target = $region17
  $region16: #{transformer_forward.28} parent=0 // pred_region
    _
  $region17: #{transformer_forward.28} parent=0 // pred_fallthru
    _
  // Predicated region
  $region18: #{transformer_forward.28} parent=0 // pred_check
    _
  $region19: #{transformer_forward.28} parent=0 // pred_check_branch
    %24 = sbr.rel (0) target = $region21
  $region20: #{transformer_forward.28} parent=0 // pred_region
    _
  $region21: #{transformer_forward.28} parent=0 // pred_fallthru
    _
  // Predicated region
  $region22: #{transformer_forward.28} parent=0 // pred_check
    _
  $region23: #{transformer_forward.28} parent=0 // pred_check_branch
    %26 = sbr.rel (0) target = $region25
  $region24: #{transformer_forward.28} parent=0 // pred_region
    _
  $region25: #{transformer_forward.28} parent=0 // pred_fallthru
    _
  // Predicated region
  $region26: #{transformer_forward.28} parent=0 // pred_check
    _
  $region27: #{transformer_forward.28} parent=0 // pred_check_branch
    %28 = sbr.rel (0) target = $region29
  $region28: #{transformer_forward.28} parent=0 // pred_region
    _
  $region29: #{transformer_forward.28} parent=0 // pred_fallthru
    _
  // Predicated region
  $region30: #{transformer_forward.28} parent=0 // pred_check
    _
  $region31: #{transformer_forward.28} parent=0 // pred_check_branch
    %30 = sbr.rel (0) target = $region33
  $region32: #{transformer_forward.28} parent=0 // pred_region
    _
  $region33: #{transformer_forward.28} parent=0 // pred_fallthru
    _
  %v32 = vld [vmem:[%s0] sm:$0xf]
  %v33 = vld [vmem:[%s0 + $0x4] sm:$0xf]
  %v34 = vld [vmem:[%s1] sm:$0xf]
  %v35 = vld [vmem:[%s1 + $0x4] sm:$0xf]
  %v36 = vld [vmem:[%s1 + $0x8] sm:$0xf]
  %v37 = vld [vmem:[%s1 + $0xc] sm:$0xf]
  %v38 = vld [vmem:[%s2] sm:$0x1]
  %v40 = vlaneseq
  %v41 = vshrl.u32 %v40, 7
  %v42 = vsub.s32 0, %v41
  %v43 = vrot.slane %v38, %v42
  %v47 = vunpack.c.l.b16 %v32
  %v48 = vunpack.c.l.b16 %v33
  %v49 = vpack.c.b16 %v48, %v47
  %v54 = vunpack.c.l.b16 %v34
  %v55 = vunpack.c.l.b16 %v35
  %v56 = vunpack.c.l.b16 %v36
  %v57 = vunpack.c.l.b16 %v37
  %v58 = vpack.c.b16 %v55, %v54
  %v59 = vpack.c.b16 %v57, %v56
  %vm62 = vcmask 261120
  %v64 = vsel %vm62, %v49, 0
  %66 = vmatprep.subr.bf16.mxu0 0
  %67 = vmatpush1.bf16.msra.mxu0 0
  %68 = vmatprep.subr.bf16.mxu0 0
  %69 = vmatpush1.bf16.msra.mxu0 0
  %70 = vmatprep.subr.bf16.mxu0 0
  %71 = vmatpush1.bf16.msra.mxu0 0
  %72 = vmatprep.subr.bf16.mxu0 0
  %73 = vmatpush1.bf16.msra.mxu0 0
  %74 = vmatprep.subr.bf16.mxu0 0
  %75 = vmatpush1.bf16.msra.mxu0 0
  %76 = vmatprep.subr.bf16.mxu0 0
  %77 = vmatpush1.bf16.msra.mxu0 0
  %78 = vmatprep.subr.bf16.mxu0 0
  %79 = vmatpush1.bf16.msra.mxu0 %v59
  %80 = vmatprep.subr.bf16.mxu0 0
  %81 = vmatpush1.bf16.msra.mxu0 %v58
  %82 = vmatprep.subr.bf16.mxu0 0
  %83 = vmatpush2.bf16.msra.mxu0 0
  %84 = vmatprep.subr.bf16.mxu0 0
  %85 = vmatpush2.bf16.msra.mxu0 0
  %86 = vmatprep.subr.bf16.mxu0 0
  %87 = vmatpush2.bf16.msra.mxu0 0
  %88 = vmatprep.subr.bf16.mxu0 0
  %89 = vmatpush2.bf16.msra.mxu0 0
  %90 = vmatprep.subr.bf16.mxu0 0
  %91 = vmatpush2.bf16.msra.mxu0 0
  %92 = vmatprep.subr.bf16.mxu0 0
  %93 = vmatpush2.bf16.msra.mxu0 0
  %94 = vmatprep.subr.bf16.mxu0 0
  %95 = vmatpush2.bf16.msra.mxu0 0
  %96 = vmatprep.subr.bf16.mxu0 0
  %97 = vmatpush2.bf16.msra.mxu0 0
  %98 = vmatprep.mubr.bf16.mxu0 0
  %99 = vmatmul.mubr.bf16.gmra.mxu0 %v64
  %v100 = vpop.f32.mrf.mxu0
  %v101 = vadd.f32 %v43, %v100
  %v102 = vpop.f32.mrf.mxu0
  %v103 = vpop.f32.mrf.mxu0
  %v104 = vadd.f32 %v43, %v103
  %v105 = vpop.f32.mrf.mxu0
  %106 = vdwg.mxu0
  %v107 = vmax.f32 %v101, 0.0
  %v108 = vmax.f32 %v104, 0.0
  %v109 = vpack.c.bf16 %v108, %v107
  %v110 = vld [vmem:[%s3] sm:$0xf]
  %v111 = vld [vmem:[%s3 + $0x4] sm:$0xf]
  %v112 = vld [vmem:[%s3 + $0x8] sm:$0xf]
  %v113 = vld [vmem:[%s3 + $0xc] sm:$0xf]
  %v114 = vld [vmem:[%s3 + $0x10] sm:$0xf]
  %v115 = vld [vmem:[%s3 + $0x14] sm:$0xf]
  %v116 = vld [vmem:[%s3 + $0x18] sm:$0xf]
  %v117 = vld [vmem:[%s3 + $0x1c] sm:$0xf]
  %v118 = vld [vmem:[%s4] sm:$0x1]
  %v120 = vlaneseq
  %v121 = vshrl.u32 %v120, 7
  %v122 = vsub.s32 0, %v121
  %v123 = vrot.slane %v118, %v122
  %v133 = vunpack.c.l.b16 %v110
  %v134 = vunpack.c.l.b16 %v111
  %v135 = vunpack.c.l.b16 %v112
  %v136 = vunpack.c.l.b16 %v113
  %v137 = vunpack.c.l.b16 %v114
  %v138 = vunpack.c.l.b16 %v115
  %v139 = vunpack.c.l.b16 %v116
  %v140 = vunpack.c.l.b16 %v117
  %v141 = vpack.c.b16 %v134, %v133
  %v142 = vpack.c.b16 %v136, %v135
  %v143 = vpack.c.b16 %v138, %v137
  %v144 = vpack.c.b16 %v140, %v139
  %vm149 = vcmask 523264
  %v151 = vsel %vm149, %v109, 0
  %153 = vmatprep.subr.bf16.mxu0 0
  %154 = vmatpush1.bf16.msra.mxu0 0
  %155 = vmatprep.subr.bf16.mxu0 0
  %156 = vmatpush1.bf16.msra.mxu0 0
  %157 = vmatprep.subr.bf16.mxu0 0
  %158 = vmatpush1.bf16.msra.mxu0 0
  %159 = vmatprep.subr.bf16.mxu0 0
  %160 = vmatpush1.bf16.msra.mxu0 0
  %161 = vmatprep.subr.bf16.mxu0 0
  %162 = vmatpush1.bf16.msra.mxu0 %v144
  %163 = vmatprep.subr.bf16.mxu0 0
  %164 = vmatpush1.bf16.msra.mxu0 %v143
  %165 = vmatprep.subr.bf16.mxu0 0
  %166 = vmatpush1.bf16.msra.mxu0 %v142
  %167 = vmatprep.subr.bf16.mxu0 0
  %168 = vmatpush1.bf16.msra.mxu0 %v141
  %169 = vmatprep.subr.bf16.mxu0 0
  %170 = vmatpush2.bf16.msra.mxu0 0
  %171 = vmatprep.subr.bf16.mxu0 0
  %172 = vmatpush2.bf16.msra.mxu0 0
  %173 = vmatprep.subr.bf16.mxu0 0
  %174 = vmatpush2.bf16.msra.mxu0 0
  %175 = vmatprep.subr.bf16.mxu0 0
  %176 = vmatpush2.bf16.msra.mxu0 0
  %177 = vmatprep.subr.bf16.mxu0 0
  %178 = vmatpush2.bf16.msra.mxu0 0
  %179 = vmatprep.subr.bf16.mxu0 0
  %180 = vmatpush2.bf16.msra.mxu0 0
  %181 = vmatprep.subr.bf16.mxu0 0
  %182 = vmatpush2.bf16.msra.mxu0 0
  %183 = vmatprep.subr.bf16.mxu0 0
  %184 = vmatpush2.bf16.msra.mxu0 0
  %185 = vmatprep.mubr.bf16.mxu0 0
  %186 = vmatmul.mubr.bf16.gmra.mxu0 %v151
  %v187 = vpop.f32.mrf.mxu0
  %v188 = vadd.f32 %v123, %v187
  %v189 = vpop.f32.mrf.mxu0
  %v190 = vpop.f32.mrf.mxu0
  %v191 = vadd.f32 %v123, %v190
  %v192 = vpop.f32.mrf.mxu0
  %193 = vdwg.mxu0
  %v194 = vld [vmem:[%s5] sm:$0xff]
  %v195 = vld [vmem:[%s5 + $0x8] sm:$0xff]
  %v196 = vadd.f32 %v188, %v194
  %v197 = vadd.f32 %v191, %v195
  %v198 = vsel %vm62, %v196, 0.0
  %199 = vadd.xlane.f32.xlu0 %v198
  %v200 = vpop.xlane.xlu0 %199
  %v201 = vsel %vm62, %v197, 0.0
  %202 = vadd.xlane.f32.xlu0 %v201
  %v203 = vpop.xlane.xlu0 %202
  %v204 = vrcp.pop 32.0
  %v205 = vmul.f32 %v200, %v204
  %v206 = vmul.f32 %v203, %v204
  %v207 = vsub.f32 %v196, %v205
  %v208 = vsub.f32 %v197, %v206
  %v209 = vmul.f32 %v207, %v207
  %v210 = vmul.f32 %v208, %v208
  %v211 = vsel %vm62, %v209, 0.0
  %212 = vadd.xlane.f32.xlu0 %v211
  %v213 = vpop.xlane.xlu0 %212
  %v214 = vsel %vm62, %v210, 0.0
  %215 = vadd.xlane.f32.xlu0 %v214
  %v216 = vpop.xlane.xlu0 %215
  %v217 = vmul.f32 %v213, %v204
  %v218 = vmul.f32 %v216, %v204
  %v219 = vadd.f32 %v217, 1e-05
  %v220 = vadd.f32 %v218, 1e-05
  %v221 = vrsqrt.pop %v219
  %v222 = vrsqrt.pop %v220
  %v223 = vmul.f32 %v207, %v221
  %v224 = vmul.f32 %v208, %v222
  %v225 = vld [vmem:[%s6] sm:$0x1]
  %v227 = vlaneseq
  %v228 = vshrl.u32 %v227, 7
  %v229 = vsub.s32 0, %v228
  %v230 = vrot.slane %v225, %v229
  %v232 = vmul.f32 %v223, %v230
  %v233 = vmul.f32 %v224, %v230
  %v234 = vld [vmem:[%s7] sm:$0x1]
  %v236 = vlaneseq
  %v237 = vshrl.u32 %v236, 7
  %v238 = vsub.s32 0, %v237
  %v239 = vrot.slane %v234, %v238
  %v241 = vadd.f32 %v232, %v239
  %v242 = vadd.f32 %v233, %v239
  %243 = vst.msk [vmem:[%s8] sm:$0xff] %vm62, %v241
  %244 = vst.msk [vmem:[%s8 + $0x8] sm:$0xff] %vm62, %v242
  %v245 = vpack.c.bf16 %v242, %v241
  %v247 = vunpack.c.l.b16 %v245
  %v248 = vunpack.c.h.b16 %v245
  %v249 = vpack.c.b16 %v247, %v247
  %v250 = vpack.c.b16 %v248, %v248
  %vm253 = vcmask 257024
  %254 = vst.msk [vmem:[%s9] sm:$0xf] %vm253, %v249
  %255 = vst.msk [vmem:[%s9 + $0x4] sm:$0xf] %vm253, %v250
  // Predicated region
  $region34: #{transformer_forward.28} parent=0 // pred_check
    _
  $region35: #{transformer_forward.28} parent=0 // pred_check_branch
    %257 = sbr.rel (0) target = $region37
  $region36: #{transformer_forward.28} parent=0 // pred_region
    _
  $region37: #{transformer_forward.28} parent=0 // pred_fallthru
    _
  // Predicated region
  $region38: #{transformer_forward.28} parent=0 // pred_check
    _
  $region39: #{transformer_forward.28} parent=0 // pred_check_branch
    %259 = sbr.rel (0) target = $region41
  $region40: #{transformer_forward.28} parent=0 // pred_region
    _
  $region41: #{transformer_forward.28} parent=0 // pred_fallthru
    _
  // Predicated region
  $region42: #{transformer_forward.28} parent=0 // pred_check
    _
  $region43: #{transformer_forward.28} parent=0 // pred_check_branch
    %261 = sbr.rel (0) target = $region45
  $region44: #{transformer_forward.28} parent=0 // pred_region
    _
  $region45: #{transformer_forward.28} parent=0 // pred_fallthru
    _
  // Predicated region
  $region46: #{transformer_forward.28} parent=0 // pred_check
    _
  $region47: #{transformer_forward.28} parent=0 // pred_check_branch
    %263 = sbr.rel (0) target = $region49
  $region48: #{transformer_forward.28} parent=0 // pred_region
    _
  $region49: #{transformer_forward.28} parent=0 // pred_fallthru
    _

// kernel: transformer_forward.26
$region0: #{transformer_forward.26}
  #allocation0 [shape = 'u32[]', space=smem, size = 0x4, offset = 0x4, fixed_abs, tag = 'smem constant byte address 0x4 - core index']
  #allocation1 [shape = 'u32[144,128]{1,0:T(1,128)}', space=vmem, size = 0x12000, scoped, tag = 'internal scratch']
  %s0 = inlined_call_operand.vmem [shape: f32[2,1,8], index: 0, kind: input, shape index: {}]
  %s1 = inlined_call_operand.vmem [shape: bf16[2,8,32], index: 1, kind: input, shape index: {}]
  %s2 = inlined_call_operand.vmem [shape: bf16[2,8,32], index: 2, kind: input, shape index: {}]
  %s3 = inlined_call_operand.vmem [shape: bf16[2,8,32], index: 3, kind: input, shape index: {}]
  %s4 = inlined_call_operand.vmem [shape: bf16[2,8,32], index: 4, kind: output, shape index: {0}]
  %s5 = inlined_call_operand.vmem [shape: f32[2,4,8,8], index: 5, kind: output, shape index: {1}]
  %6 = xla_tuple %s4, %s5
  %s7 = sld [smem:[#allocation0]]
  $region57: #{transformer_forward.26} parent=0
    _
  %s9 = ssub.s32 1, %s7
  %s10 = scalar_select 0, %s9, %s7
  loop: start=0, step=1, limit=4
  $region2: #{transformer_forward.26} parent=0 // loop_pre_header
    _
  $region3: #{transformer_forward.26} parent=0 // loop_header
    %s12 = sphi 0, %s16
    %p13 = scmp.ge.s32.totalorder %s12, 4
    %s22 = sphi 0, %s24
    %s25 = sphi 0, %s22
    %s26 = sphi 0, %s25
    %s42 = sphi 0, %s26
    %s48 = sphi 0, %s50
    %s51 = sphi 0, %s48
    %s52 = sphi 0, %s51
    %s68 = sphi 0, %s52
    %s74 = sphi 0, %s76
    %s77 = sphi 0, %s74
    %s78 = sphi 0, %s77
    %s94 = sphi 0, %s78
    %s100 = sphi 0, %s102
    %s103 = sphi 0, %s100
    %s104 = sphi 0, %s103
    %s120 = sphi 0, %s104
    %s126 = sphi 0, %s128
    %s129 = sphi 0, %s126
    %s130 = sphi 0, %s129
    %s146 = sphi 0, %s130
    %s152 = sphi 0, %s154
    %s155 = sphi 0, %s152
    %s156 = sphi 0, %s155
    %s172 = sphi 0, %s156
  $region4: #{transformer_forward.26} parent=0 // loop_header_branch
    %15 = sbr.rel (%p13) target = $region8
  $region5: #{transformer_forward.26} parent=0 // loop_body
    %s17 = ssub.s32 %s12, 1
    %s18 = ssub.s32 %s12, 2
    %s19 = sadd.s32 %s12, 1
    %s20 = ssub.s32 %s12, %s19
    %p21 = scmp.eq.s32.totalorder %s20, 0
    %s23 = sadd.s32 %s22, 1
    %s24 = scalar_select %p21, %s22, %s23
    %p27 = pneg %p21
    %p28 = scmp.eq.s32.totalorder %s12, 1
    %p29 = por %p27, %p28
    %p30 = scmp.ne.s32.totalorder %s22, %s25
    %p31 = scmp.eq.s32.totalorder %s12, 0
    %p32 = por %p30, %p31
    %p33 = scmp.ne.s32.totalorder %s22, %s25
    %p34 = scmp.eq.s32.totalorder %s17, 1
    %p35 = por %p33, %p34
    %p36 = scmp.ne.s32.totalorder %s25, %s26
    %p37 = scmp.eq.s32.totalorder %s17, 0
    %p38 = por %p36, %p37
    %p39 = scmp.ne.s32.totalorder %s25, %s26
    %p40 = scmp.eq.s32.totalorder %s18, 1
    %p41 = por %p39, %p40
    %p43 = scmp.ne.s32.totalorder %s26, %s42
    %p44 = scmp.eq.s32.totalorder %s18, 0
    %p45 = por %p43, %p44
    %s46 = ssub.s32 %s12, %s19
    %p47 = scmp.eq.s32.totalorder %s46, 0
    %s49 = sadd.s32 %s48, 1
    %s50 = scalar_select %p47, %s48, %s49
    %p53 = pneg %p47
    %p54 = scmp.eq.s32.totalorder %s12, 1
    %p55 = por %p53, %p54
    %p56 = scmp.ne.s32.totalorder %s48, %s51
    %p57 = scmp.eq.s32.totalorder %s12, 0
    %p58 = por %p56, %p57
    %p59 = scmp.ne.s32.totalorder %s48, %s51
    %p60 = scmp.eq.s32.totalorder %s17, 1
    %p61 = por %p59, %p60
    %p62 = scmp.ne.s32.totalorder %s51, %s52
    %p63 = scmp.eq.s32.totalorder %s17, 0
    %p64 = por %p62, %p63
    %p65 = scmp.ne.s32.totalorder %s51, %s52
    %p66 = scmp.eq.s32.totalorder %s18, 1
    %p67 = por %p65, %p66
    %p69 = scmp.ne.s32.totalorder %s52, %s68
    %p70 = scmp.eq.s32.totalorder %s18, 0
    %p71 = por %p69, %p70
    %s72 = ssub.s32 %s12, %s19
    %p73 = scmp.eq.s32.totalorder %s72, 0
    %s75 = sadd.s32 %s74, 1
    %s76 = scalar_select %p73, %s74, %s75
    %p79 = pneg %p73
    %p80 = scmp.eq.s32.totalorder %s12, 1
    %p81 = por %p79, %p80
    %p82 = scmp.ne.s32.totalorder %s74, %s77
    %p83 = scmp.eq.s32.totalorder %s12, 0
    %p84 = por %p82, %p83
    %p85 = scmp.ne.s32.totalorder %s74, %s77
    %p86 = scmp.eq.s32.totalorder %s17, 1
    %p87 = por %p85, %p86
    %p88 = scmp.ne.s32.totalorder %s77, %s78
    %p89 = scmp.eq.s32.totalorder %s17, 0
    %p90 = por %p88, %p89
    %p91 = scmp.ne.s32.totalorder %s77, %s78
    %p92 = scmp.eq.s32.totalorder %s18, 1
    %p93 = por %p91, %p92
    %p95 = scmp.ne.s32.totalorder %s78, %s94
    %p96 = scmp.eq.s32.totalorder %s18, 0
    %p97 = por %p95, %p96
    %s98 = ssub.s32 %s12, %s19
    %p99 = scmp.eq.s32.totalorder %s98, 0
    %s101 = sadd.s32 %s100, 1
    %s102 = scalar_select %p99, %s100, %s101
    %p105 = pneg %p99
    %p106 = scmp.eq.s32.totalorder %s12, 1
    %p107 = por %p105, %p106
    %p108 = scmp.ne.s32.totalorder %s100, %s103
    %p109 = scmp.eq.s32.totalorder %s12, 0
    %p110 = por %p108, %p109
    %p111 = scmp.ne.s32.totalorder %s100, %s103
    %p112 = scmp.eq.s32.totalorder %s17, 1
    %p113 = por %p111, %p112
    %p114 = scmp.ne.s32.totalorder %s103, %s104
    %p115 = scmp.eq.s32.totalorder %s17, 0
    %p116 = por %p114, %p115
    %p117 = scmp.ne.s32.totalorder %s103, %s104
    %p118 = scmp.eq.s32.totalorder %s18, 1
    %p119 = por %p117, %p118
    %p121 = scmp.ne.s32.totalorder %s104, %s120
    %p122 = scmp.eq.s32.totalorder %s18, 0
    %p123 = por %p121, %p122
    %s124 = ssub.s32 %s12, %s19
    %p125 = scmp.eq.s32.totalorder %s124, 0
    %s127 = sadd.s32 %s126, 1
    %s128 = scalar_select %p125, %s126, %s127
    %p131 = pneg %p125
    %p132 = scmp.eq.s32.totalorder %s12, 1
    %p133 = por %p131, %p132
    %p134 = scmp.ne.s32.totalorder %s126, %s129
    %p135 = scmp.eq.s32.totalorder %s12, 0
    %p136 = por %p134, %p135
    %p137 = scmp.ne.s32.totalorder %s126, %s129
    %p138 = scmp.eq.s32.totalorder %s17, 1
    %p139 = por %p137, %p138
    %p140 = scmp.ne.s32.totalorder %s129, %s130
    %p141 = scmp.eq.s32.totalorder %s17, 0
    %p142 = por %p140, %p141
    %p143 = scmp.ne.s32.totalorder %s129, %s130
    %p144 = scmp.eq.s32.totalorder %s18, 1
    %p145 = por %p143, %p144
    %p147 = scmp.ne.s32.totalorder %s130, %s146
    %p148 = scmp.eq.s32.totalorder %s18, 0
    %p149 = por %p147, %p148
    %s150 = ssub.s32 %s12, %s19
    %p151 = scmp.eq.s32.totalorder %s150, 0
    %s153 = sadd.s32 %s152, 1
    %s154 = scalar_select %p151, %s152, %s153
    %p157 = pneg %p151
    %p158 = scmp.eq.s32.totalorder %s12, 1
    %p159 = por %p157, %p158
    %p160 = scmp.ne.s32.totalorder %s152, %s155
    %p161 = scmp.eq.s32.totalorder %s12, 0
    %p162 = por %p160, %p161
    %p163 = scmp.ne.s32.totalorder %s152, %s155
    %p164 = scmp.eq.s32.totalorder %s17, 1
    %p165 = por %p163, %p164
    %p166 = scmp.ne.s32.totalorder %s155, %s156
    %p167 = scmp.eq.s32.totalorder %s17, 0
    %p168 = por %p166, %p167
    %p169 = scmp.ne.s32.totalorder %s155, %s156
    %p170 = scmp.eq.s32.totalorder %s18, 1
    %p171 = por %p169, %p170
    %p173 = scmp.ne.s32.totalorder %s156, %s172
    %p174 = scmp.eq.s32.totalorder %s18, 0
    %p175 = por %p173, %p174
    %p176 = scmp.le.s32.totalorder 1, %s12
    %p177 = scmp.lt.s32.totalorder %s12, 3
    %p178 = pnand %p176, %p177
    %p179 = pneg %p178
    // Predicated region
    $region9: #{transformer_forward.26} parent=5 // pred_check
      _
    $region10: #{transformer_forward.26} parent=5 // pred_check_branch
      %181 = sbr.rel (%p178) target = $region12
    $region11: #{transformer_forward.26} parent=5 // pred_region
      %s182 = ssub.s32 %s12, 1
    $region12: #{transformer_forward.26} parent=5 // pred_fallthru
      _
    %p183 = scmp.lt.s32.totalorder %s12, 2
    // Predicated region
    $region13: #{transformer_forward.26} parent=5 // pred_check
      %p184 = pneg %p183
    $region14: #{transformer_forward.26} parent=5 // pred_check_branch
      %186 = sbr.rel (%p184) target = $region16
    $region15: #{transformer_forward.26} parent=5 // pred_region
      // Predicated region
      $region17: #{transformer_forward.26} parent=15 // pred_check
        %p187 = pneg %p32
      $region18: #{transformer_forward.26} parent=15 // pred_check_branch
        %189 = sbr.rel (%p187) target = $region20
      $region19: #{transformer_forward.26} parent=15 // pred_region
        %p190 = scmp.lt.s32.totalorder %s12, 1
        %s191 = scalar_select %p190, %s12, 1
        %s192 = scalar_lea.vmem %s0, %s191
      $region20: #{transformer_forward.26} parent=15 // pred_fallthru
        _
      // Predicated region
      $region21: #{transformer_forward.26} parent=15 // pred_check
        %p193 = pneg %p58
      $region22: #{transformer_forward.26} parent=15 // pred_check_branch
        %195 = sbr.rel (%p193) target = $region24
      $region23: #{transformer_forward.26} parent=15 // pred_region
        %p196 = scmp.lt.s32.totalorder %s12, 1
        %s197 = scalar_select %p196, %s12, 1
        %s198 = smul.addr %s197, 4
        %s199 = scalar_lea.vmem %s1, %s198
      $region24: #{transformer_forward.26} parent=15 // pred_fallthru
        _
      // Predicated region
      $region25: #{transformer_forward.26} parent=15 // pred_check
        %p200 = pneg %p84
      $region26: #{transformer_forward.26} parent=15 // pred_check_branch
        %202 = sbr.rel (%p200) target = $region28
      $region27: #{transformer_forward.26} parent=15 // pred_region
        %p203 = scmp.lt.s32.totalorder %s12, 1
        %s204 = scalar_select %p203, %s12, 1
        %s205 = smul.addr %s204, 4
        %s206 = scalar_lea.vmem %s2, %s205
      $region28: #{transformer_forward.26} parent=15 // pred_fallthru
        _
      // Predicated region
      $region29: #{transformer_forward.26} parent=15 // pred_check
        %p207 = pneg %p110
      $region30: #{transformer_forward.26} parent=15 // pred_check_branch
        %209 = sbr.rel (%p207) target = $region32
      $region31: #{transformer_forward.26} parent=15 // pred_region
        %p210 = scmp.lt.s32.totalorder %s12, 1
        %s211 = scalar_select %p210, %s12, 1
        %s212 = smul.addr %s211, 4
        %s213 = scalar_lea.vmem %s3, %s212
      $region32: #{transformer_forward.26} parent=15 // pred_fallthru
        _
    $region16: #{transformer_forward.26} parent=5 // pred_fallthru
      _
    %p214 = scmp.le.s32.totalorder 1, %s12
    %p215 = scmp.lt.s32.totalorder %s12, 3
    %p216 = pnand %p214, %p215
    %p217 = pneg %p216
    // Predicated region
    $region33: #{transformer_forward.26} parent=5 // pred_check
      _
    $region34: #{transformer_forward.26} parent=5 // pred_check_branch
      %219 = sbr.rel (%p216) target = $region36
    $region35: #{transformer_forward.26} parent=5 // pred_region
      %s220 = ssub.s32 %s12, 1
      %p221 = scmp.lt.s32.totalorder %s17, 1
      %s222 = scalar_select %p221, %s17, 1
      %s223 = scalar_lea.vmem %s0, %s222
      %p224 = pneg %p38
      %p225 = pneg %p35
      %p226 = scmp.lt.s32.totalorder %s17, 1
      %s227 = scalar_select %p226, %s17, 1
      %s228 = smul.addr %s227, 4
      %s229 = scalar_lea.vmem %s1, %s228
      %p230 = pneg %p64
      %p231 = pneg %p61
      %p232 = scmp.lt.s32.totalorder %s17, 1
      %s233 = scalar_select %p232, %s17, 1
      %s234 = smul.addr %s233, 4
      %s235 = scalar_lea.vmem %s2, %s234
      %p236 = pneg %p90
      %p237 = pneg %p87
      %p238 = scmp.lt.s32.totalorder %s17, 1
      %s239 = scalar_select %p238, %s17, 1
      %s240 = smul.addr %s239, 4
      %s241 = scalar_lea.vmem %s3, %s240
      %p242 = pneg %p116
      %p243 = pneg %p113
      %p244 = pneg %p142
      %p245 = pneg %p139
      %p246 = scmp.lt.s32.totalorder %s17, 1
      %s247 = scalar_select %p246, %s17, 1
      %s248 = smul.addr %s247, 4
      %s249 = scalar_lea.vmem %s4, %s248
      %p250 = pneg %p168
      %p251 = pneg %p165
      %p252 = scmp.lt.s32.totalorder %s17, 1
      %s253 = scalar_select %p252, %s17, 1
      %s254 = smul.addr %s253, 4
      %s255 = smul.addr %s254, 8
      %s256 = scalar_lea.vmem %s5, %s255
      %p257 = scmp.lt.s32.totalorder %s17, 1
      %s258 = scalar_select %p257, %s17, 1
      %s259 = scalar_lea.vmem %s0, %s258
      %p260 = scmp.lt.s32.totalorder %s17, 1
      %s261 = scalar_select %p260, %s17, 1
      %s262 = smul.addr %s261, 4
      %s263 = scalar_lea.vmem %s1, %s262
      %p264 = scmp.lt.s32.totalorder %s17, 1
      %s265 = scalar_select %p264, %s17, 1
      %s266 = smul.addr %s265, 4
      %s267 = scalar_lea.vmem %s2, %s266
      %p268 = scmp.lt.s32.totalorder %s17, 1
      %s269 = scalar_select %p268, %s17, 1
      %s270 = smul.addr %s269, 4
      %s271 = scalar_lea.vmem %s3, %s270
      %p272 = scmp.lt.s32.totalorder %s17, 1
      %s273 = scalar_select %p272, %s17, 1
      %s274 = smul.addr %s273, 4
      %s275 = scalar_lea.vmem %s4, %s274
      %p276 = scmp.lt.s32.totalorder %s17, 1
      %s277 = scalar_select %p276, %s17, 1
      %s278 = smul.addr %s277, 4
      %s279 = smul.addr %s278, 8
      %s280 = scalar_lea.vmem %s5, %s279
      %v282 = vld [vmem:[%s259] sm:$0x1]
      %vm283 = vcmp.gt.f32.partialorder %v282, 0.0
      %v284 = vsel %vm283, -1e+09, 0.0
      %v286 = vlaneseq
      %v287 = vshrl.u32 %v286, 7
      %v288 = vsub.s32 0, %v287
      %v289 = vrot.slane %v284, %v288
      %v291 = vld [vmem:[%s263] sm:$0xf]
      %v292 = vunpack.c.l.bf16 %v291
      %v293 = vmul.f32 %v292, 0.35355338
      %v294 = vpack.c.bf16 %v293, %v293
      %v295 = vld [vmem:[%s267] sm:$0xf]
      %v296 = vld [vmem:[%s271] sm:$0xf]
      %vm297 = vcmask 64512
      %v299 = vsel %vm297, %v294, 0
      %v302 = vsel %vm297, %v295, 0
      %304 = vmatprep.subr.bf16.mxu0 0
      %305 = vmatpush1.bf16.xpose.msra.mxu0 0
      %306 = vmatprep.subr.bf16.mxu0 0
      %307 = vmatpush1.bf16.xpose.msra.mxu0 0
      %308 = vmatprep.subr.bf16.mxu0 0
      %309 = vmatpush1.bf16.xpose.msra.mxu0 0
      %310 = vmatprep.subr.bf16.mxu0 0
      %311 = vmatpush1.bf16.xpose.msra.mxu0 0
      %312 = vmatprep.subr.bf16.mxu0 0
      %313 = vmatpush1.bf16.xpose.msra.mxu0 0
      %314 = vmatprep.subr.bf16.mxu0 0
      %315 = vmatpush1.bf16.xpose.msra.mxu0 0
      %316 = vmatprep.subr.bf16.mxu0 0
      %317 = vmatpush1.bf16.xpose.msra.mxu0 0
      %318 = vmatprep.subr.bf16.mxu0 0
      %319 = vmatpush1.bf16.xpose.msra.mxu0 %v302
      %320 = vmatprep.subr.bf16.mxu0 0
      %321 = vmatpush2.bf16.xpose.msra.mxu0 0
      %322 = vmatprep.subr.bf16.mxu0 0
      %323 = vmatpush2.bf16.xpose.msra.mxu0 0
      %324 = vmatprep.subr.bf16.mxu0 0
      %325 = vmatpush2.bf16.xpose.msra.mxu0 0
      %326 = vmatprep.subr.bf16.mxu0 0
      %327 = vmatpush2.bf16.xpose.msra.mxu0 0
      %328 = vmatprep.subr.bf16.mxu0 0
      %329 = vmatpush2.bf16.xpose.msra.mxu0 0
      %330 = vmatprep.subr.bf16.mxu0 0
      %331 = vmatpush2.bf16.xpose.msra.mxu0 0
      %332 = vmatprep.subr.bf16.mxu0 0
      %333 = vmatpush2.bf16.xpose.msra.mxu0 0
      %334 = vmatprep.subr.bf16.mxu0 0
      %335 = vmatpush2.bf16.xpose.msra.mxu0 0
      %336 = vmatprep.mubr.bf16.mxu0 0
      %337 = vmatmul.mubr.bf16.gmra.mxu0 %v299
      %v338 = vpop.f32.mrf.mxu0
      %v339 = vadd.f32 %v289, %v338
      %v340 = vpop.f32.mrf.mxu0
      %v341 = vpop.f32.mrf.mxu0
      %v342 = vpop.f32.mrf.mxu0
      %343 = vdwg.mxu0
      %v344 = vsel %vm297, %v339, -inf
      %345 = vmax.xlane.f32.xlu0 %v344
      %v346 = vpop.xlane.xlu0 %345
      %v347 = vsub.f32 %v339, %v346
      %v348 = vmul.f32 %v347, 1.442695
      %v349 = vpow.pop %v348
      %v350 = vsel %vm297, %v349, 0.0
      %351 = vadd.xlane.f32.xlu0 %v350
      %v352 = vpop.xlane.xlu0 %351
      %v353 = vrcp.pop %v352
      %v354 = vmul.f32 %v349, %v353
      %355 = vst.msk [vmem:[%s280] sm:$0xff] %vm297, %v354
      %v356 = vpack.c.bf16 %v354, %v354
      %v358 = vsel %vm297, %v356, 0
      %vm360 = vcmask 1043456
      %v362 = vsel %vm360, %v296, 0
      %364 = vmatprep.subr.bf16.mxu0 0
      %365 = vmatpush1.bf16.msra.mxu0 0
      %366 = vmatprep.subr.bf16.mxu0 0
      %367 = vmatpush1.bf16.msra.mxu0 0
      %368 = vmatprep.subr.bf16.mxu0 0
      %369 = vmatpush1.bf16.msra.mxu0 0
      %370 = vmatprep.subr.bf16.mxu0 0
      %371 = vmatpush1.bf16.msra.mxu0 0
      %372 = vmatprep.subr.bf16.mxu0 0
      %373 = vmatpush1.bf16.msra.mxu0 0
      %374 = vmatprep.subr.bf16.mxu0 0
      %375 = vmatpush1.bf16.msra.mxu0 0
      %376 = vmatprep.subr.bf16.mxu0 0
      %377 = vmatpush1.bf16.msra.mxu0 0
      %378 = vmatprep.subr.bf16.mxu0 0
      %379 = vmatpush1.bf16.msra.mxu0 %v362
      %380 = vmatprep.subr.bf16.mxu0 0
      %381 = vmatpush2.bf16.msra.mxu0 0
      %382 = vmatprep.subr.bf16.mxu0 0
      %383 = vmatpush2.bf16.msra.mxu0 0
      %384 = vmatprep.subr.bf16.mxu0 0
      %385 = vmatpush2.bf16.msra.mxu0 0
      %386 = vmatprep.subr.bf16.mxu0 0
      %387 = vmatpush2.bf16.msra.mxu0 0
      %388 = vmatprep.subr.bf16.mxu0 0
      %389 = vmatpush2.bf16.msra.mxu0 0
      %390 = vmatprep.subr.bf16.mxu0 0
      %391 = vmatpush2.bf16.msra.mxu0 0
      %392 = vmatprep.subr.bf16.mxu0 0
      %393 = vmatpush2.bf16.msra.mxu0 0
      %394 = vmatprep.subr.bf16.mxu0 0
      %395 = vmatpush2.bf16.msra.mxu0 0
      %396 = vmatprep.mubr.bf16.mxu0 0
      %397 = vmatmul.mubr.bf16.gmra.mxu0 %v358
      %v398 = vpop.f32.mrf.mxu0
      %v399 = vadd.f32 0.0, %v398
      %v400 = vpop.f32.mrf.mxu0
      %v401 = vpop.f32.mrf.mxu0
      %v402 = vpop.f32.mrf.mxu0
      %403 = vdwg.mxu0
      %405 = vrot.lane.b32.xlu0 %v294, 120
      %v406 = vpop.permute.xlu0 %405
      %v408 = vunpack.c.l.b16 %v295
      %v409 = vpack.c.b16 %v408, %v408
      %410 = vrot.lane.b32.xlu0 %v409, 120
      %v411 = vpop.permute.xlu0 %410
      %v413 = vsel %vm297, %v406, 0
      %v416 = vsel %vm297, %v411, 0
      %418 = vmatprep.subr.bf16.mxu0 0
      %419 = vmatpush1.bf16.xpose.msra.mxu0 0
      %420 = vmatprep.subr.bf16.mxu0 0
      %421 = vmatpush1.bf16.xpose.msra.mxu0 0
      %422 = vmatprep.subr.bf16.mxu0 0
      %423 = vmatpush1.bf16.xpose.msra.mxu0 0
      %424 = vmatprep.subr.bf16.mxu0 0
      %425 = vmatpush1.bf16.xpose.msra.mxu0 0
      %426 = vmatprep.subr.bf16.mxu0 0
      %427 = vmatpush1.bf16.xpose.msra.mxu0 0
      %428 = vmatprep.subr.bf16.mxu0 0
      %429 = vmatpush1.bf16.xpose.msra.mxu0 0
      %430 = vmatprep.subr.bf16.mxu0 0
      %431 = vmatpush1.bf16.xpose.msra.mxu0 0
      %432 = vmatprep.subr.bf16.mxu0 0
      %433 = vmatpush1.bf16.xpose.msra.mxu0 %v416
      %434 = vmatprep.subr.bf16.mxu0 0
      %435 = vmatpush2.bf16.xpose.msra.mxu0 0
      %436 = vmatprep.subr.bf16.mxu0 0
      %437 = vmatpush2.bf16.xpose.msra.mxu0 0
      %438 = vmatprep.subr.bf16.mxu0 0
      %439 = vmatpush2.bf16.xpose.msra.mxu0 0
      %440 = vmatprep.subr.bf16.mxu0 0
      %441 = vmatpush2.bf16.xpose.msra.mxu0 0
      %442 = vmatprep.subr.bf16.mxu0 0
      %443 = vmatpush2.bf16.xpose.msra.mxu0 0
      %444 = vmatprep.subr.bf16.mxu0 0
      %445 = vmatpush2.bf16.xpose.msra.mxu0 0
      %446 = vmatprep.subr.bf16.mxu0 0
      %447 = vmatpush2.bf16.xpose.msra.mxu0 0
      %448 = vmatprep.subr.bf16.mxu0 0
      %449 = vmatpush2.bf16.xpose.msra.mxu0 0
      %450 = vmatprep.mubr.bf16.mxu0 0
      %451 = vmatmul.mubr.bf16.gmra.mxu0 %v413
      %v452 = vpop.f32.mrf.mxu0
      %v453 = vadd.f32 %v289, %v452
      %v454 = vpop.f32.mrf.mxu0
      %v455 = vpop.f32.mrf.mxu0
      %v456 = vpop.f32.mrf.mxu0
      %457 = vdwg.mxu0
      %v458 = vsel %vm297, %v453, -inf
      %459 = vmax.xlane.f32.xlu0 %v458
      %v460 = vpop.xlane.xlu0 %459
      %v461 = vsub.f32 %v453, %v460
      %v462 = vmul.f32 %v461, 1.442695
      %v463 = vpow.pop %v462
      %v464 = vsel %vm297, %v463, 0.0
      %465 = vadd.xlane.f32.xlu0 %v464
      %v466 = vpop.xlane.xlu0 %465
      %v467 = vrcp.pop %v466
      %v468 = vmul.f32 %v463, %v467
      %s469 = scalar_lea.vmem %s280, 8
      %470 = vst.msk [vmem:[%s469] sm:$0xff] %vm297, %v468
      %v471 = vpack.c.bf16 %v468, %v468
      %v473 = vunpack.c.l.b16 %v296
      %v474 = vpack.c.b16 %v473, %v473
      %475 = vrot.lane.b32.xlu0 %v474, 120
      %v476 = vpop.permute.xlu0 %475
      %v478 = vsel %vm297, %v471, 0
      %v481 = vsel %vm360, %v476, 0
      %483 = vmatprep.subr.bf16.mxu0 0
      %484 = vmatpush1.bf16.msra.mxu0 0
      %485 = vmatprep.subr.bf16.mxu0 0
      %486 = vmatpush1.bf16.msra.mxu0 0
      %487 = vmatprep.subr.bf16.mxu0 0
      %488 = vmatpush1.bf16.msra.mxu0 0
      %489 = vmatprep.subr.bf16.mxu0 0
      %490 = vmatpush1.bf16.msra.mxu0 0
      %491 = vmatprep.subr.bf16.mxu0 0
      %492 = vmatpush1.bf16.msra.mxu0 0
      %493 = vmatprep.subr.bf16.mxu0 0
      %494 = vmatpush1.bf16.msra.mxu0 0
      %495 = vmatprep.subr.bf16.mxu0 0
      %496 = vmatpush1.bf16.msra.mxu0 0
      %497 = vmatprep.subr.bf16.mxu0 0
      %498 = vmatpush1.bf16.msra.mxu0 %v481
      %499 = vmatprep.subr.bf16.mxu0 0
      %500 = vmatpush2.bf16.msra.mxu0 0
      %501 = vmatprep.subr.bf16.mxu0 0
      %502 = vmatpush2.bf16.msra.mxu0 0
      %503 = vmatprep.subr.bf16.mxu0 0
      %504 = vmatpush2.bf16.msra.mxu0 0
      %505 = vmatprep.subr.bf16.mxu0 0
      %506 = vmatpush2.bf16.msra.mxu0 0
      %507 = vmatprep.subr.bf16.mxu0 0
      %508 = vmatpush2.bf16.msra.mxu0 0
      %509 = vmatprep.subr.bf16.mxu0 0
      %510 = vmatpush2.bf16.msra.mxu0 0
      %511 = vmatprep.subr.bf16.mxu0 0
      %512 = vmatpush2.bf16.msra.mxu0 0
      %513 = vmatprep.subr.bf16.mxu0 0
      %514 = vmatpush2.bf16.msra.mxu0 0
      %515 = vmatprep.mubr.bf16.mxu0 0
      %516 = vmatmul.mubr.bf16.gmra.mxu0 %v478
      %v517 = vpop.f32.mrf.mxu0
      %v518 = vadd.f32 0.0, %v517
      %v519 = vpop.f32.mrf.mxu0
      %v520 = vpop.f32.mrf.mxu0
      %v521 = vpop.f32.mrf.mxu0
      %522 = vdwg.mxu0
      %523 = vrot.lane.b32.xlu0 %v294, 112
      %v524 = vpop.permute.xlu0 %523
      %525 = vrot.lane.b32.xlu0 %v409, 112
      %v526 = vpop.permute.xlu0 %525
      %v528 = vsel %vm297, %v524, 0
      %v531 = vsel %vm297, %v526, 0
      %533 = vmatprep.subr.bf16.mxu0 0
      %534 = vmatpush1.bf16.xpose.msra.mxu0 0
      %535 = vmatprep.subr.bf16.mxu0 0
      %536 = vmatpush1.bf16.xpose.msra.mxu0 0
      %537 = vmatprep.subr.bf16.mxu0 0
      %538 = vmatpush1.bf16.xpose.msra.mxu0 0
      %539 = vmatprep.subr.bf16.mxu0 0
      %540 = vmatpush1.bf16.xpose.msra.mxu0 0
      %541 = vmatprep.subr.bf16.mxu0 0
      %542 = vmatpush1.bf16.xpose.msra.mxu0 0
      %543 = vmatprep.subr.bf16.mxu0 0
      %544 = vmatpush1.bf16.xpose.msra.mxu0 0
      %545 = vmatprep.subr.bf16.mxu0 0
      %546 = vmatpush1.bf16.xpose.msra.mxu0 0
      %547 = vmatprep.subr.bf16.mxu0 0
      %548 = vmatpush1.bf16.xpose.msra.mxu0 %v531
      %549 = vmatprep.subr.bf16.mxu0 0
      %550 = vmatpush2.bf16.xpose.msra.mxu0 0
      %551 = vmatprep.subr.bf16.mxu0 0
      %552 = vmatpush2.bf16.xpose.msra.mxu0 0
      %553 = vmatprep.subr.bf16.mxu0 0
      %554 = vmatpush2.bf16.xpose.msra.mxu0 0
      %555 = vmatprep.subr.bf16.mxu0 0
      %556 = vmatpush2.bf16.xpose.msra.mxu0 0
      %557 = vmatprep.subr.bf16.mxu0 0
      %558 = vmatpush2.bf16.xpose.msra.mxu0 0
      %559 = vmatprep.subr.bf16.mxu0 0
      %560 = vmatpush2.bf16.xpose.msra.mxu0 0
      %561 = vmatprep.subr.bf16.mxu0 0
      %562 = vmatpush2.bf16.xpose.msra.mxu0 0
      %563 = vmatprep.subr.bf16.mxu0 0
      %564 = vmatpush2.bf16.xpose.msra.mxu0 0
      %565 = vmatprep.mubr.bf16.mxu0 0
      %566 = vmatmul.mubr.bf16.gmra.mxu0 %v528
      %v567 = vpop.f32.mrf.mxu0
      %v568 = vadd.f32 %v289, %v567
      %v569 = vpop.f32.mrf.mxu0
      %v570 = vpop.f32.mrf.mxu0
      %v571 = vpop.f32.mrf.mxu0
      %572 = vdwg.mxu0
      %v573 = vsel %vm297, %v568, -inf
      %574 = vmax.xlane.f32.xlu0 %v573
      %v575 = vpop.xlane.xlu0 %574
      %v576 = vsub.f32 %v568, %v575
      %v577 = vmul.f32 %v576, 1.442695
      %v578 = vpow.pop %v577
      %v579 = vsel %vm297, %v578, 0.0
      %580 = vadd.xlane.f32.xlu0 %v579
      %v581 = vpop.xlane.xlu0 %580
      %v582 = vrcp.pop %v581
      %v583 = vmul.f32 %v578, %v582
      %s584 = scalar_lea.vmem %s280, 16
      %585 = vst.msk [vmem:[%s584] sm:$0xff] %vm297, %v583
      %v586 = vpack.c.bf16 %v583, %v583
      %587 = vrot.lane.b32.xlu0 %v474, 112
      %v588 = vpop.permute.xlu0 %587
      %v590 = vsel %vm297, %v586, 0
      %v593 = vsel %vm360, %v588, 0
      %595 = vmatprep.subr.bf16.mxu0 0
      %596 = vmatpush1.bf16.msra.mxu0 0
      %597 = vmatprep.subr.bf16.mxu0 0
      %598 = vmatpush1.bf16.msra.mxu0 0
      %599 = vmatprep.subr.bf16.mxu0 0
      %600 = vmatpush1.bf16.msra.mxu0 0
      %601 = vmatprep.subr.bf16.mxu0 0
      %602 = vmatpush1.bf16.msra.mxu0 0
      %603 = vmatprep.subr.bf16.mxu0 0
      %604 = vmatpush1.bf16.msra.mxu0 0
      %605 = vmatprep.subr.bf16.mxu0 0
      %606 = vmatpush1.bf16.msra.mxu0 0
      %607 = vmatprep.subr.bf16.mxu0 0
      %608 = vmatpush1.bf16.msra.mxu0 0
      %609 = vmatprep.subr.bf16.mxu0 0
      %610 = vmatpush1.bf16.msra.mxu0 %v593
      %611 = vmatprep.subr.bf16.mxu0 0
      %612 = vmatpush2.bf16.msra.mxu0 0
      %613 = vmatprep.subr.bf16.mxu0 0
      %614 = vmatpush2.bf16.msra.mxu0 0
      %615 = vmatprep.subr.bf16.mxu0 0
      %616 = vmatpush2.bf16.msra.mxu0 0
      %617 = vmatprep.subr.bf16.mxu0 0
      %618 = vmatpush2.bf16.msra.mxu0 0
      %619 = vmatprep.subr.bf16.mxu0 0
      %620 = vmatpush2.bf16.msra.mxu0 0
      %621 = vmatprep.subr.bf16.mxu0 0
      %622 = vmatpush2.bf16.msra.mxu0 0
      %623 = vmatprep.subr.bf16.mxu0 0
      %624 = vmatpush2.bf16.msra.mxu0 0
      %625 = vmatprep.subr.bf16.mxu0 0
      %626 = vmatpush2.bf16.msra.mxu0 0
      %627 = vmatprep.mubr.bf16.mxu0 0
      %628 = vmatmul.mubr.bf16.gmra.mxu0 %v590
      %v629 = vpop.f32.mrf.mxu0
      %v630 = vadd.f32 0.0, %v629
      %v631 = vpop.f32.mrf.mxu0
      %v632 = vpop.f32.mrf.mxu0
      %v633 = vpop.f32.mrf.mxu0
      %634 = vdwg.mxu0
      %635 = vrot.lane.b32.xlu0 %v294, 104
      %v636 = vpop.permute.xlu0 %635
      %637 = vrot.lane.b32.xlu0 %v409, 104
      %v638 = vpop.permute.xlu0 %637
      %v640 = vsel %vm297, %v636, 0
      %v643 = vsel %vm297, %v638, 0
      %645 = vmatprep.subr.bf16.mxu0 0
      %646 = vmatpush1.bf16.xpose.msra.mxu0 0
      %647 = vmatprep.subr.bf16.mxu0 0
      %648 = vmatpush1.bf16.xpose.msra.mxu0 0
      %649 = vmatprep.subr.bf16.mxu0 0
      %650 = vmatpush1.bf16.xpose.msra.mxu0 0
      %651 = vmatprep.subr.bf16.mxu0 0
      %652 = vmatpush1.bf16.xpose.msra.mxu0 0
      %653 = vmatprep.subr.bf16.mxu0 0
      %654 = vmatpush1.bf16.xpose.msra.mxu0 0
      %655 = vmatprep.subr.bf16.mxu0 0
      %656 = vmatpush1.bf16.xpose.msra.mxu0 0
      %657 = vmatprep.subr.bf16.mxu0 0
      %658 = vmatpush1.bf16.xpose.msra.mxu0 0
      %659 = vmatprep.subr.bf16.mxu0 0
      %660 = vmatpush1.bf16.xpose.msra.mxu0 %v643
      %661 = vmatprep.subr.bf16.mxu0 0
      %662 = vmatpush2.bf16.xpose.msra.mxu0 0
      %663 = vmatprep.subr.bf16.mxu0 0
      %664 = vmatpush2.bf16.xpose.msra.mxu0 0
      %665 = vmatprep.subr.bf16.mxu0 0
      %666 = vmatpush2.bf16.xpose.msra.mxu0 0
      %667 = vmatprep.subr.bf16.mxu0 0
      %668 = vmatpush2.bf16.xpose.msra.mxu0 0
      %669 = vmatprep.subr.bf16.mxu0 0
      %670 = vmatpush2.bf16.xpose.msra.mxu0 0
      %671 = vmatprep.subr.bf16.mxu0 0
      %672 = vmatpush2.bf16.xpose.msra.mxu0 0
      %673 = vmatprep.subr.bf16.mxu0 0
      %674 = vmatpush2.bf16.xpose.msra.mxu0 0
      %675 = vmatprep.subr.bf16.mxu0 0
      %676 = vmatpush2.bf16.xpose.msra.mxu0 0
      %677 = vmatprep.mubr.bf16.mxu0 0
      %678 = vmatmul.mubr.bf16.gmra.mxu0 %v640
      %v679 = vpop.f32.mrf.mxu0
      %v680 = vadd.f32 %v289, %v679
      %v681 = vpop.f32.mrf.mxu0
      %v682 = vpop.f32.mrf.mxu0
      %v683 = vpop.f32.mrf.mxu0
      %684 = vdwg.mxu0
      %v685 = vsel %vm297, %v680, -inf
      %686 = vmax.xlane.f32.xlu0 %v685
      %v687 = vpop.xlane.xlu0 %686
      %v688 = vsub.f32 %v680, %v687
      %v689 = vmul.f32 %v688, 1.442695
      %v690 = vpow.pop %v689
      %v691 = vsel %vm297, %v690, 0.0
      %692 = vadd.xlane.f32.xlu0 %v691
      %v693 = vpop.xlane.xlu0 %692
      %v694 = vrcp.pop %v693
      %v695 = vmul.f32 %v690, %v694
      %s696 = scalar_lea.vmem %s280, 24
      %697 = vst.msk [vmem:[%s696] sm:$0xff] %vm297, %v695
      %v698 = vpack.c.bf16 %v695, %v695
      %699 = vrot.lane.b32.xlu0 %v474, 104
      %v700 = vpop.permute.xlu0 %699
      %v702 = vsel %vm297, %v698, 0
      %v705 = vsel %vm360, %v700, 0
      %707 = vmatprep.subr.bf16.mxu0 0
      %708 = vmatpush1.bf16.msra.mxu0 0
      %709 = vmatprep.subr.bf16.mxu0 0
      %710 = vmatpush1.bf16.msra.mxu0 0
      %711 = vmatprep.subr.bf16.mxu0 0
      %712 = vmatpush1.bf16.msra.mxu0 0
      %713 = vmatprep.subr.bf16.mxu0 0
      %714 = vmatpush1.bf16.msra.mxu0 0
      %715 = vmatprep.subr.bf16.mxu0 0
      %716 = vmatpush1.bf16.msra.mxu0 0
      %717 = vmatprep.subr.bf16.mxu0 0
      %718 = vmatpush1.bf16.msra.mxu0 0
      %719 = vmatprep.subr.bf16.mxu0 0
      %720 = vmatpush1.bf16.msra.mxu0 0
      %721 = vmatprep.subr.bf16.mxu0 0
      %722 = vmatpush1.bf16.msra.mxu0 %v705
      %723 = vmatprep.subr.bf16.mxu0 0
      %724 = vmatpush2.bf16.msra.mxu0 0
      %725 = vmatprep.subr.bf16.mxu0 0
      %726 = vmatpush2.bf16.msra.mxu0 0
      %727 = vmatprep.subr.bf16.mxu0 0
      %728 = vmatpush2.bf16.msra.mxu0 0
      %729 = vmatprep.subr.bf16.mxu0 0
      %730 = vmatpush2.bf16.msra.mxu0 0
      %731 = vmatprep.subr.bf16.mxu0 0
      %732 = vmatpush2.bf16.msra.mxu0 0
      %733 = vmatprep.subr.bf16.mxu0 0
      %734 = vmatpush2.bf16.msra.mxu0 0
      %735 = vmatprep.subr.bf16.mxu0 0
      %736 = vmatpush2.bf16.msra.mxu0 0
      %737 = vmatprep.subr.bf16.mxu0 0
      %738 = vmatpush2.bf16.msra.mxu0 0
      %739 = vmatprep.mubr.bf16.mxu0 0
      %740 = vmatmul.mubr.bf16.gmra.mxu0 %v702
      %v741 = vpop.f32.mrf.mxu0
      %v742 = vadd.f32 0.0, %v741
      %v743 = vpop.f32.mrf.mxu0
      %v744 = vpop.f32.mrf.mxu0
      %v745 = vpop.f32.mrf.mxu0
      %746 = vdwg.mxu0
      %748 = vrot.lane.b32.xlu0 %v518, 8
      %v749 = vpop.permute.xlu0 %748
      %752 = vrot.lane.b32.xlu0 %v630, 16
      %v753 = vpop.permute.xlu0 %752
      %756 = vrot.lane.b32.xlu0 %v742, 24
      %v757 = vpop.permute.xlu0 %756
      %v759 = vsel %vm297, %v399, %v749
      %vm760 = vcmask 130048
      %v761 = vsel %vm760, %v759, %v753
      %vm762 = vcmask 195584
      %v763 = vsel %vm762, %v761, %v757
      %v764 = vpack.c.bf16 %v763, %v763
      %vm765 = vcmask 257024
      %766 = vst.msk [vmem:[%s275] sm:$0xf] %vm765, %v764
      %p767 = scmp.lt.s32.totalorder %s17, 1
      %s768 = scalar_select %p767, %s17, 1
      %s769 = smul.addr %s768, 4
      %s770 = scalar_lea.vmem %s4, %s769
      %p771 = scmp.lt.s32.totalorder %s17, 1
      %s772 = scalar_select %p771, %s17, 1
      %s773 = smul.addr %s772, 4
      %s774 = smul.addr %s773, 8
      %s775 = scalar_lea.vmem %s5, %s774
      // Predicated region
      $region37: #{transformer_forward.26} parent=35 // pred_check
        %p776 = pneg %p139
      $region38: #{transformer_forward.26} parent=35 // pred_check_branch
        %778 = sbr.rel (%p776) target = $region40
      $region39: #{transformer_forward.26} parent=35 // pred_region
        _
      $region40: #{transformer_forward.26} parent=35 // pred_fallthru
        _
      // Predicated region
      $region41: #{transformer_forward.26} parent=35 // pred_check
        %p779 = pneg %p165
      $region42: #{transformer_forward.26} parent=35 // pred_check_branch
        %781 = sbr.rel (%p779) target = $region44
      $region43: #{transformer_forward.26} parent=35 // pred_region
        _
      $region44: #{transformer_forward.26} parent=35 // pred_fallthru
        _
    $region36: #{transformer_forward.26} parent=5 // pred_fallthru
      _
    %p782 = scmp.le.s32.totalorder 2, %s12
    // Predicated region
    $region45: #{transformer_forward.26} parent=5 // pred_check
      %p783 = pneg %p782
    $region46: #{transformer_forward.26} parent=5 // pred_check_branch
      %785 = sbr.rel (%p783) target = $region48
    $region47: #{transformer_forward.26} parent=5 // pred_region
      %s786 = ssub.s32 %s12, 2
      // Predicated region
      $region49: #{transformer_forward.26} parent=47 // pred_check
        %p787 = pneg %p145
      $region50: #{transformer_forward.26} parent=47 // pred_check_branch
        %789 = sbr.rel (%p787) target = $region52
      $region51: #{transformer_forward.26} parent=47 // pred_region
        %p790 = scmp.lt.s32.totalorder %s18, 1
        %s791 = scalar_select %p790, %s18, 1
        %s792 = smul.addr %s791, 4
        %s793 = scalar_lea.vmem %s4, %s792
      $region52: #{transformer_forward.26} parent=47 // pred_fallthru
        _
      // Predicated region
      $region53: #{transformer_forward.26} parent=47 // pred_check
        %p794 = pneg %p171
      $region54: #{transformer_forward.26} parent=47 // pred_check_branch
        %796 = sbr.rel (%p794) target = $region56
      $region55: #{transformer_forward.26} parent=47 // pred_region
        %p797 = scmp.lt.s32.totalorder %s18, 1
        %s798 = scalar_select %p797, %s18, 1
        %s799 = smul.addr %s798, 4
        %s800 = smul.addr %s799, 8
        %s801 = scalar_lea.vmem %s5, %s800
      $region56: #{transformer_forward.26} parent=47 // pred_fallthru
        _
    $region48: #{transformer_forward.26} parent=5 // pred_fallthru
      _
  $region6: #{transformer_forward.26} parent=0 // loop_footer
    %s16 = sadd.s32 1, %s12
  $region7: #{transformer_forward.26} parent=0 // loop_footer_branch
    %11 = sbr.rel target = $region3
  $region8: #{transformer_forward.26} parent=0 // loop_exit
    _

// kernel: transformer_forward.45
$region0: #{transformer_forward.45}
  #allocation0 [shape = 'u32[]', space=smem, size = 0x4, offset = 0x4, fixed_abs, tag = 'smem constant byte address 0x4 - core index']
  #allocation1 [shape = 'u32[144,128]{1,0:T(1,128)}', space=vmem, size = 0x12000, scoped, tag = 'internal scratch']
  #allocation2 [shape = 'f32[16,64]{1,0:T(8,128)}', space=vmem, size = 0x2000, scoped, tag = 'scratch operand']
  %s0 = inlined_call_operand.vmem [shape: bf16[16,32], index: 0, kind: input, shape index: {}]
  %s1 = inlined_call_operand.vmem [shape: bf16[32,64], index: 1, kind: input, shape index: {}]
  %s2 = inlined_call_operand.vmem [shape: f32[1,64], index: 2, kind: input, shape index: {}]
  %s3 = inlined_call_operand.vmem [shape: bf16[16,64], index: 3, kind: output, shape index: {}]
  %s4 = sld [smem:[#allocation0]]
  $region30: #{transformer_forward.45} parent=0
    _
  %s6 = ssub.s32 1, %s4
  %s7 = scalar_select 0, %s6, %s4
  // Predicated region
  $region2: #{transformer_forward.45} parent=0 // pred_check
    _
  $region3: #{transformer_forward.45} parent=0 // pred_check_branch
    %9 = sbr.rel (0) target = $region5
  $region4: #{transformer_forward.45} parent=0 // pred_region
    _
  $region5: #{transformer_forward.45} parent=0 // pred_fallthru
    _
  // Predicated region
  $region6: #{transformer_forward.45} parent=0 // pred_check
    _
  $region7: #{transformer_forward.45} parent=0 // pred_check_branch
    %11 = sbr.rel (0) target = $region9
  $region8: #{transformer_forward.45} parent=0 // pred_region
    _
  $region9: #{transformer_forward.45} parent=0 // pred_fallthru
    _
  // Predicated region
  $region10: #{transformer_forward.45} parent=0 // pred_check
    _
  $region11: #{transformer_forward.45} parent=0 // pred_check_branch
    %13 = sbr.rel (0) target = $region13
  $region12: #{transformer_forward.45} parent=0 // pred_region
    _
  $region13: #{transformer_forward.45} parent=0 // pred_fallthru
    _
  %p15 = scmp.eq.s32.totalorder 0, 0
  // Predicated region
  $region14: #{transformer_forward.45} parent=0 // pred_check
    %p16 = pneg %p15
  $region15: #{transformer_forward.45} parent=0 // pred_check_branch
    %18 = sbr.rel (%p16) target = $region17
  $region16: #{transformer_forward.45} parent=0 // pred_region
    %vm19 = vcmask 523264
    %20 = vst.msk [vmem:[#allocation2] sm:$0xff] %vm19, 0.0
    %21 = vst.msk [vmem:[#allocation2 + $0x8] sm:$0xff] %vm19, 0.0
  $region17: #{transformer_forward.45} parent=0 // pred_fallthru
    _
  %v22 = vld [vmem:[#allocation2] sm:$0xff]
  %v23 = vld [vmem:[#allocation2 + $0x8] sm:$0xff]
  %v24 = vld [vmem:[%s0] sm:$0xf]
  %v25 = vld [vmem:[%s0 + $0x4] sm:$0xf]
  %v26 = vld [vmem:[%s1] sm:$0xf]
  %v27 = vld [vmem:[%s1 + $0x4] sm:$0xf]
  %v28 = vld [vmem:[%s1 + $0x8] sm:$0xf]
  %v29 = vld [vmem:[%s1 + $0xc] sm:$0xf]
  %v32 = vunpack.c.l.b16 %v24
  %v33 = vunpack.c.l.b16 %v25
  %v34 = vpack.c.b16 %v33, %v32
  %v39 = vunpack.c.l.b16 %v26
  %v40 = vunpack.c.l.b16 %v27
  %v41 = vunpack.c.l.b16 %v28
  %v42 = vunpack.c.l.b16 %v29
  %v43 = vpack.c.b16 %v40, %v39
  %v44 = vpack.c.b16 %v42, %v41
  %vm47 = vcmask 261120
  %v49 = vsel %vm47, %v34, 0
  %51 = vmatprep.subr.bf16.mxu0 0
  %52 = vmatpush1.bf16.msra.mxu0 0
  %53 = vmatprep.subr.bf16.mxu0 0
  %54 = vmatpush1.bf16.msra.mxu0 0
  %55 = vmatprep.subr.bf16.mxu0 0
  %56 = vmatpush1.bf16.msra.mxu0 0
  %57 = vmatprep.subr.bf16.mxu0 0
  %58 = vmatpush1.bf16.msra.mxu0 0
  %59 = vmatprep.subr.bf16.mxu0 0
  %60 = vmatpush1.bf16.msra.mxu0 0
  %61 = vmatprep.subr.bf16.mxu0 0
  %62 = vmatpush1.bf16.msra.mxu0 0
  %63 = vmatprep.subr.bf16.mxu0 0
  %64 = vmatpush1.bf16.msra.mxu0 %v44
  %65 = vmatprep.subr.bf16.mxu0 0
  %66 = vmatpush1.bf16.msra.mxu0 %v43
  %67 = vmatprep.subr.bf16.mxu0 0
  %68 = vmatpush2.bf16.msra.mxu0 0
  %69 = vmatprep.subr.bf16.mxu0 0
  %70 = vmatpush2.bf16.msra.mxu0 0
  %71 = vmatprep.subr.bf16.mxu0 0
  %72 = vmatpush2.bf16.msra.mxu0 0
  %73 = vmatprep.subr.bf16.mxu0 0
  %74 = vmatpush2.bf16.msra.mxu0 0
  %75 = vmatprep.subr.bf16.mxu0 0
  %76 = vmatpush2.bf16.msra.mxu0 0
  %77 = vmatprep.subr.bf16.mxu0 0
  %78 = vmatpush2.bf16.msra.mxu0 0
  %79 = vmatprep.subr.bf16.mxu0 0
  %80 = vmatpush2.bf16.msra.mxu0 0
  %81 = vmatprep.subr.bf16.mxu0 0
  %82 = vmatpush2.bf16.msra.mxu0 0
  %83 = vmatprep.mubr.bf16.mxu0 0
  %84 = vmatmul.mubr.bf16.gmra.mxu0 %v49
  %v85 = vpop.f32.mrf.mxu0
  %v86 = vadd.f32 0.0, %v85
  %v87 = vpop.f32.mrf.mxu0
  %v88 = vpop.f32.mrf.mxu0
  %v89 = vadd.f32 0.0, %v88
  %v90 = vpop.f32.mrf.mxu0
  %91 = vdwg.mxu0
  %v92 = vadd.f32 %v22, %v86
  %v93 = vadd.f32 %v23, %v89
  %vm94 = vcmask 523264
  %95 = vst.msk [vmem:[#allocation2] sm:$0xff] %vm94, %v92
  %96 = vst.msk [vmem:[#allocation2 + $0x8] sm:$0xff] %vm94, %v93
  // Predicated region
  $region18: #{transformer_forward.45} parent=0 // pred_check
    %p97 = pneg %p15
  $region19: #{transformer_forward.45} parent=0 // pred_check_branch
    %99 = sbr.rel (%p97) target = $region21
  $region20: #{transformer_forward.45} parent=0 // pred_region
    %v100 = vld [vmem:[#allocation2] sm:$0xff]
    %v101 = vld [vmem:[#allocation2 + $0x8] sm:$0xff]
    %v102 = vld [vmem:[%s2] sm:$0x1]
    %v104 = vlaneseq
    %v105 = vshrl.u32 %v104, 7
    %v106 = vsub.s32 0, %v105
    %v107 = vrot.slane %v102, %v106
    %v109 = vadd.f32 %v100, %v107
    %v110 = vadd.f32 %v101, %v107
    %v111 = vpack.c.bf16 %v110, %v109
    %v113 = vunpack.c.l.b16 %v111
    %v114 = vunpack.c.h.b16 %v111
    %v115 = vpack.c.b16 %v113, %v113
    %v116 = vpack.c.b16 %v114, %v114
    %vm119 = vcmask 519168
    %120 = vst.msk [vmem:[%s3] sm:$0xf] %vm119, %v115
    %121 = vst.msk [vmem:[%s3 + $0x4] sm:$0xf] %vm119, %v116
  $region21: #{transformer_forward.45} parent=0 // pred_fallthru
    _
  // Predicated region
  $region22: #{transformer_forward.45} parent=0 // pred_check
    _
  $region23: #{transformer_forward.45} parent=0 // pred_check_branch
    %123 = sbr.rel (0) target = $region25
  $region24: #{transformer_forward.45} parent=0 // pred_region
    _
  $region25: #{transformer_forward.45} parent=0 // pred_fallthru
    _
  // Predicated region
  $region26: #{transformer_forward.45} parent=0 // pred_check
    _
  $region27: #{transformer_forward.45} parent=0 // pred_check_branch
    %125 = sbr.rel (0) target = $region29
  $region28: #{transformer_forward.45} parent=0 // pred_region
    _
  $region29: #{transformer_forward.45} parent=0 // pred_fallthru
    _

// kernel: transformer_forward.32
$region0: #{transformer_forward.32}
  #allocation0 [shape = 'u32[]', space=smem, size = 0x4, offset = 0x4, fixed_abs, tag = 'smem constant byte address 0x4 - core index']
  #allocation1 [shape = 'u32[144,128]{1,0:T(1,128)}', space=vmem, size = 0x12000, scoped, tag = 'internal scratch']
  %s0 = inlined_call_operand.vmem [shape: bf16[16,32], index: 0, kind: input, shape index: {}]
  %s1 = inlined_call_operand.vmem [shape: bf16[32,64], index: 1, kind: input, shape index: {}]
  %s2 = inlined_call_operand.vmem [shape: f32[1,64], index: 2, kind: input, shape index: {}]
  %s3 = inlined_call_operand.vmem [shape: bf16[64,32], index: 3, kind: input, shape index: {}]
  %s4 = inlined_call_operand.vmem [shape: f32[1,32], index: 4, kind: input, shape index: {}]
  %s5 = inlined_call_operand.vmem [shape: f32[16,32], index: 5, kind: input, shape index: {}]
  %s6 = inlined_call_operand.vmem [shape: f32[1,32], index: 6, kind: input, shape index: {}]
  %s7 = inlined_call_operand.vmem [shape: f32[1,32], index: 7, kind: input, shape index: {}]
  %s8 = inlined_call_operand.hbm [shape: f32[16,32], index: 8, kind: output, shape index: {0}]
  %s9 = inlined_call_operand.vmem [shape: bf16[16,32], index: 9, kind: output, shape index: {1}]
  %10 = xla_tuple %s8, %s9
  %s11 = sld [smem:[#allocation0]]
  $region50: #{transformer_forward.32} parent=0
    _
  %s13 = ssub.s32 1, %s11
  %s14 = scalar_select 0, %s13, %s11
  $region1: #{transformer_forward.32} parent=0
    #allocation2 [shape = 'u8[8192]{0}', space=vmem, size = 0x2000, scoped, tag = 'output window, operand 0, single buffered']
    #allocation3 [shape = 's32[1]{0}', space=sflag, size = 0x4, scoped, tag = 'scoped memory for transformer_forward.32']
    %15 = vsyncpa [#allocation3], 0
    // Predicated region
    $region2: #{transformer_forward.32} parent=1 // pred_check
      _
    $region3: #{transformer_forward.32} parent=1 // pred_check_branch
      %17 = sbr.rel (0) target = $region5
    $region4: #{transformer_forward.32} parent=1 // pred_region
      _
    $region5: #{transformer_forward.32} parent=1 // pred_fallthru
      _
    // Predicated region
    $region6: #{transformer_forward.32} parent=1 // pred_check
      _
    $region7: #{transformer_forward.32} parent=1 // pred_check_branch
      %19 = sbr.rel (0) target = $region9
    $region8: #{transformer_forward.32} parent=1 // pred_region
      _
    $region9: #{transformer_forward.32} parent=1 // pred_fallthru
      _
    // Predicated region
    $region10: #{transformer_forward.32} parent=1 // pred_check
      _
    $region11: #{transformer_forward.32} parent=1 // pred_check_branch
      %21 = sbr.rel (0) target = $region13
    $region12: #{transformer_forward.32} parent=1 // pred_region
      _
    $region13: #{transformer_forward.32} parent=1 // pred_fallthru
      _
    // Predicated region
    $region14: #{transformer_forward.32} parent=1 // pred_check
      _
    $region15: #{transformer_forward.32} parent=1 // pred_check_branch
      %23 = sbr.rel (0) target = $region17
    $region16: #{transformer_forward.32} parent=1 // pred_region
      _
    $region17: #{transformer_forward.32} parent=1 // pred_fallthru
      _
    // Predicated region
    $region18: #{transformer_forward.32} parent=1 // pred_check
      _
    $region19: #{transformer_forward.32} parent=1 // pred_check_branch
      %25 = sbr.rel (0) target = $region21
    $region20: #{transformer_forward.32} parent=1 // pred_region
      _
    $region21: #{transformer_forward.32} parent=1 // pred_fallthru
      _
    // Predicated region
    $region22: #{transformer_forward.32} parent=1 // pred_check
      _
    $region23: #{transformer_forward.32} parent=1 // pred_check_branch
      %27 = sbr.rel (0) target = $region25
    $region24: #{transformer_forward.32} parent=1 // pred_region
      _
    $region25: #{transformer_forward.32} parent=1 // pred_fallthru
      _
    // Predicated region
    $region26: #{transformer_forward.32} parent=1 // pred_check
      _
    $region27: #{transformer_forward.32} parent=1 // pred_check_branch
      %29 = sbr.rel (0) target = $region29
    $region28: #{transformer_forward.32} parent=1 // pred_region
      _
    $region29: #{transformer_forward.32} parent=1 // pred_fallthru
      _
    // Predicated region
    $region30: #{transformer_forward.32} parent=1 // pred_check
      _
    $region31: #{transformer_forward.32} parent=1 // pred_check_branch
      %31 = sbr.rel (0) target = $region33
    $region32: #{transformer_forward.32} parent=1 // pred_region
      _
    $region33: #{transformer_forward.32} parent=1 // pred_fallthru
      _
    %v33 = vld [vmem:[%s0] sm:$0xf]
    %v34 = vld [vmem:[%s0 + $0x4] sm:$0xf]
    %v35 = vld [vmem:[%s1] sm:$0xf]
    %v36 = vld [vmem:[%s1 + $0x4] sm:$0xf]
    %v37 = vld [vmem:[%s1 + $0x8] sm:$0xf]
    %v38 = vld [vmem:[%s1 + $0xc] sm:$0xf]
    %v39 = vld [vmem:[%s2] sm:$0x1]
    %v41 = vlaneseq
    %v42 = vshrl.u32 %v41, 7
    %v43 = vsub.s32 0, %v42
    %v44 = vrot.slane %v39, %v43
    %v48 = vunpack.c.l.b16 %v33
    %v49 = vunpack.c.l.b16 %v34
    %v50 = vpack.c.b16 %v49, %v48
    %v55 = vunpack.c.l.b16 %v35
    %v56 = vunpack.c.l.b16 %v36
    %v57 = vunpack.c.l.b16 %v37
    %v58 = vunpack.c.l.b16 %v38
    %v59 = vpack.c.b16 %v56, %v55
    %v60 = vpack.c.b16 %v58, %v57
    %vm63 = vcmask 261120
    %v65 = vsel %vm63, %v50, 0
    %67 = vmatprep.subr.bf16.mxu0 0
    %68 = vmatpush1.bf16.msra.mxu0 0
    %69 = vmatprep.subr.bf16.mxu0 0
    %70 = vmatpush1.bf16.msra.mxu0 0
    %71 = vmatprep.subr.bf16.mxu0 0
    %72 = vmatpush1.bf16.msra.mxu0 0
    %73 = vmatprep.subr.bf16.mxu0 0
    %74 = vmatpush1.bf16.msra.mxu0 0
    %75 = vmatprep.subr.bf16.mxu0 0
    %76 = vmatpush1.bf16.msra.mxu0 0
    %77 = vmatprep.subr.bf16.mxu0 0
    %78 = vmatpush1.bf16.msra.mxu0 0
    %79 = vmatprep.subr.bf16.mxu0 0
    %80 = vmatpush1.bf16.msra.mxu0 %v60
    %81 = vmatprep.subr.bf16.mxu0 0
    %82 = vmatpush1.bf16.msra.mxu0 %v59
    %83 = vmatprep.subr.bf16.mxu0 0
    %84 = vmatpush2.bf16.msra.mxu0 0
    %85 = vmatprep.subr.bf16.mxu0 0
    %86 = vmatpush2.bf16.msra.mxu0 0
    %87 = vmatprep.subr.bf16.mxu0 0
    %88 = vmatpush2.bf16.msra.mxu0 0
    %89 = vmatprep.subr.bf16.mxu0 0
    %90 = vmatpush2.bf16.msra.mxu0 0
    %91 = vmatprep.subr.bf16.mxu0 0
    %92 = vmatpush2.bf16.msra.mxu0 0
    %93 = vmatprep.subr.bf16.mxu0 0
    %94 = vmatpush2.bf16.msra.mxu0 0
    %95 = vmatprep.subr.bf16.mxu0 0
    %96 = vmatpush2.bf16.msra.mxu0 0
    %97 = vmatprep.subr.bf16.mxu0 0
    %98 = vmatpush2.bf16.msra.mxu0 0
    %99 = vmatprep.mubr.bf16.mxu0 0
    %100 = vmatmul.mubr.bf16.gmra.mxu0 %v65
    %v101 = vpop.f32.mrf.mxu0
    %v102 = vadd.f32 %v44, %v101
    %v103 = vpop.f32.mrf.mxu0
    %v104 = vpop.f32.mrf.mxu0
    %v105 = vadd.f32 %v44, %v104
    %v106 = vpop.f32.mrf.mxu0
    %107 = vdwg.mxu0
    %v108 = vmax.f32 %v102, 0.0
    %v109 = vmax.f32 %v105, 0.0
    %v110 = vpack.c.bf16 %v109, %v108
    %v111 = vld [vmem:[%s3] sm:$0xf]
    %v112 = vld [vmem:[%s3 + $0x4] sm:$0xf]
    %v113 = vld [vmem:[%s3 + $0x8] sm:$0xf]
    %v114 = vld [vmem:[%s3 + $0xc] sm:$0xf]
    %v115 = vld [vmem:[%s3 + $0x10] sm:$0xf]
    %v116 = vld [vmem:[%s3 + $0x14] sm:$0xf]
    %v117 = vld [vmem:[%s3 + $0x18] sm:$0xf]
    %v118 = vld [vmem:[%s3 + $0x1c] sm:$0xf]
    %v119 = vld [vmem:[%s4] sm:$0x1]
    %v121 = vlaneseq
    %v122 = vshrl.u32 %v121, 7
    %v123 = vsub.s32 0, %v122
    %v124 = vrot.slane %v119, %v123
    %v134 = vunpack.c.l.b16 %v111
    %v135 = vunpack.c.l.b16 %v112
    %v136 = vunpack.c.l.b16 %v113
    %v137 = vunpack.c.l.b16 %v114
    %v138 = vunpack.c.l.b16 %v115
    %v139 = vunpack.c.l.b16 %v116
    %v140 = vunpack.c.l.b16 %v117
    %v141 = vunpack.c.l.b16 %v118
    %v142 = vpack.c.b16 %v135, %v134
    %v143 = vpack.c.b16 %v137, %v136
    %v144 = vpack.c.b16 %v139, %v138
    %v145 = vpack.c.b16 %v141, %v140
    %vm150 = vcmask 523264
    %v152 = vsel %vm150, %v110, 0
    %154 = vmatprep.subr.bf16.mxu0 0
    %155 = vmatpush1.bf16.msra.mxu0 0
    %156 = vmatprep.subr.bf16.mxu0 0
    %157 = vmatpush1.bf16.msra.mxu0 0
    %158 = vmatprep.subr.bf16.mxu0 0
    %159 = vmatpush1.bf16.msra.mxu0 0
    %160 = vmatprep.subr.bf16.mxu0 0
    %161 = vmatpush1.bf16.msra.mxu0 0
    %162 = vmatprep.subr.bf16.mxu0 0
    %163 = vmatpush1.bf16.msra.mxu0 %v145
    %164 = vmatprep.subr.bf16.mxu0 0
    %165 = vmatpush1.bf16.msra.mxu0 %v144
    %166 = vmatprep.subr.bf16.mxu0 0
    %167 = vmatpush1.bf16.msra.mxu0 %v143
    %168 = vmatprep.subr.bf16.mxu0 0
    %169 = vmatpush1.bf16.msra.mxu0 %v142
    %170 = vmatprep.subr.bf16.mxu0 0
    %171 = vmatpush2.bf16.msra.mxu0 0
    %172 = vmatprep.subr.bf16.mxu0 0
    %173 = vmatpush2.bf16.msra.mxu0 0
    %174 = vmatprep.subr.bf16.mxu0 0
    %175 = vmatpush2.bf16.msra.mxu0 0
    %176 = vmatprep.subr.bf16.mxu0 0
    %177 = vmatpush2.bf16.msra.mxu0 0
    %178 = vmatprep.subr.bf16.mxu0 0
    %179 = vmatpush2.bf16.msra.mxu0 0
    %180 = vmatprep.subr.bf16.mxu0 0
    %181 = vmatpush2.bf16.msra.mxu0 0
    %182 = vmatprep.subr.bf16.mxu0 0
    %183 = vmatpush2.bf16.msra.mxu0 0
    %184 = vmatprep.subr.bf16.mxu0 0
    %185 = vmatpush2.bf16.msra.mxu0 0
    %186 = vmatprep.mubr.bf16.mxu0 0
    %187 = vmatmul.mubr.bf16.gmra.mxu0 %v152
    %v188 = vpop.f32.mrf.mxu0
    %v189 = vadd.f32 %v124, %v188
    %v190 = vpop.f32.mrf.mxu0
    %v191 = vpop.f32.mrf.mxu0
    %v192 = vadd.f32 %v124, %v191
    %v193 = vpop.f32.mrf.mxu0
    %194 = vdwg.mxu0
    %v195 = vld [vmem:[%s5] sm:$0xff]
    %v196 = vld [vmem:[%s5 + $0x8] sm:$0xff]
    %v197 = vadd.f32 %v189, %v195
    %v198 = vadd.f32 %v192, %v196
    %v199 = vsel %vm63, %v197, 0.0
    %200 = vadd.xlane.f32.xlu0 %v199
    %v201 = vpop.xlane.xlu0 %200
    %v202 = vsel %vm63, %v198, 0.0
    %203 = vadd.xlane.f32.xlu0 %v202
    %v204 = vpop.xlane.xlu0 %203
    %v205 = vrcp.pop 32.0
    %v206 = vmul.f32 %v201, %v205
    %v207 = vmul.f32 %v204, %v205
    %v208 = vsub.f32 %v197, %v206
    %v209 = vsub.f32 %v198, %v207
    %v210 = vmul.f32 %v208, %v208
    %v211 = vmul.f32 %v209, %v209
    %v212 = vsel %vm63, %v210, 0.0
    %213 = vadd.xlane.f32.xlu0 %v212
    %v214 = vpop.xlane.xlu0 %213
    %v215 = vsel %vm63, %v211, 0.0
    %216 = vadd.xlane.f32.xlu0 %v215
    %v217 = vpop.xlane.xlu0 %216
    %v218 = vmul.f32 %v214, %v205
    %v219 = vmul.f32 %v217, %v205
    %v220 = vadd.f32 %v218, 1e-05
    %v221 = vadd.f32 %v219, 1e-05
    %v222 = vrsqrt.pop %v220
    %v223 = vrsqrt.pop %v221
    %v224 = vmul.f32 %v208, %v222
    %v225 = vmul.f32 %v209, %v223
    %v226 = vld [vmem:[%s6] sm:$0x1]
    %v228 = vlaneseq
    %v229 = vshrl.u32 %v228, 7
    %v230 = vsub.s32 0, %v229
    %v231 = vrot.slane %v226, %v230
    %v233 = vmul.f32 %v224, %v231
    %v234 = vmul.f32 %v225, %v231
    %v235 = vld [vmem:[%s7] sm:$0x1]
    %v237 = vlaneseq
    %v238 = vshrl.u32 %v237, 7
    %v239 = vsub.s32 0, %v238
    %v240 = vrot.slane %v235, %v239
    %v242 = vadd.f32 %v233, %v240
    %v243 = vadd.f32 %v234, %v240
    %244 = vst.msk [vmem:[#allocation2] sm:$0xff] %vm63, %v242
    %245 = vst.msk [vmem:[#allocation2 + $0x8] sm:$0xff] %vm63, %v243
    %v246 = vpack.c.bf16 %v243, %v242
    %v248 = vunpack.c.l.b16 %v246
    %v249 = vunpack.c.h.b16 %v246
    %v250 = vpack.c.b16 %v248, %v248
    %v251 = vpack.c.b16 %v249, %v249
    %vm254 = vcmask 257024
    %255 = vst.msk [vmem:[%s9] sm:$0xf] %vm254, %v250
    %256 = vst.msk [vmem:[%s9 + $0x4] sm:$0xf] %vm254, %v251
    // Predicated region
    $region34: #{transformer_forward.32} parent=1 // pred_check
      _
    $region35: #{transformer_forward.32} parent=1 // pred_check_branch
      %258 = sbr.rel (0) target = $region37
    $region36: #{transformer_forward.32} parent=1 // pred_region
      %s260 = ssub.s32 256, 256
      %261 = vsyncadd [#allocation3], %s260
      %s262 = sshll.u32 [#allocation2], 4
      %s263 = int_to_ptr.vmem [resolvable:$true] %s262
      %268 = dma.vmem_to_hbm [thread:$0]  %s263, 256, %s8, [#allocation3], 128, 128, 8
    $region37: #{transformer_forward.32} parent=1 // pred_fallthru
      _
    // Predicated region
    $region38: #{transformer_forward.32} parent=1 // pred_check
      _
    $region39: #{transformer_forward.32} parent=1 // pred_check_branch
      %270 = sbr.rel (0) target = $region41
    $region40: #{transformer_forward.32} parent=1 // pred_region
      _
    $region41: #{transformer_forward.32} parent=1 // pred_fallthru
      _
    // Predicated region
    $region42: #{transformer_forward.32} parent=1 // pred_check
      _
    $region43: #{transformer_forward.32} parent=1 // pred_check_branch
      %272 = sbr.rel (0) target = $region45
    $region44: #{transformer_forward.32} parent=1 // pred_region
      %273 = dma.done [#allocation3], 256
    $region45: #{transformer_forward.32} parent=1 // pred_fallthru
      _
    // Predicated region
    $region46: #{transformer_forward.32} parent=1 // pred_check
      _
    $region47: #{transformer_forward.32} parent=1 // pred_check_branch
      %275 = sbr.rel (0) target = $region49
    $region48: #{transformer_forward.32} parent=1 // pred_region
      _
    $region49: #{transformer_forward.32} parent=1 // pred_fallthru
      _
    %276 = vsyncpa [#allocation3], 1

// kernel: transformer_forward.49
$region0: #{transformer_forward.49}
  #allocation0 [shape = 'u32[]', space=smem, size = 0x4, offset = 0x4, fixed_abs, tag = 'smem constant byte address 0x4 - core index']
  #allocation1 [shape = 'u32[144,128]{1,0:T(1,128)}', space=vmem, size = 0x12000, scoped, tag = 'internal scratch']
  #allocation2 [shape = 'f32[16,50]{1,0:T(8,128)}', space=vmem, size = 0x2000, scoped, tag = 'scratch operand']
  %s0 = inlined_call_operand.vmem [shape: bf16[16,32], index: 0, kind: input, shape index: {}]
  %s1 = inlined_call_operand.vmem [shape: bf16[32,50], index: 1, kind: input, shape index: {}]
  %s2 = inlined_call_operand.vmem [shape: f32[1,50], index: 2, kind: input, shape index: {}]
  %s3 = inlined_call_operand.hbm [shape: f32[16,50], index: 3, kind: output, shape index: {}]
  %s4 = sld [smem:[#allocation0]]
  $region30: #{transformer_forward.49} parent=0
    _
  %s6 = ssub.s32 1, %s4
  %s7 = scalar_select 0, %s6, %s4
  $region1: #{transformer_forward.49} parent=0
    #allocation3 [shape = 'u8[8192]{0}', space=vmem, size = 0x2000, scoped, tag = 'output window, operand 0, single buffered']
    #allocation4 [shape = 's32[1]{0}', space=sflag, size = 0x4, scoped, tag = 'scoped memory for transformer_forward.49']
    %8 = vsyncpa [#allocation4], 0
    // Predicated region
    $region2: #{transformer_forward.49} parent=1 // pred_check
      _
    $region3: #{transformer_forward.49} parent=1 // pred_check_branch
      %10 = sbr.rel (0) target = $region5
    $region4: #{transformer_forward.49} parent=1 // pred_region
      _
    $region5: #{transformer_forward.49} parent=1 // pred_fallthru
      _
    // Predicated region
    $region6: #{transformer_forward.49} parent=1 // pred_check
      _
    $region7: #{transformer_forward.49} parent=1 // pred_check_branch
      %12 = sbr.rel (0) target = $region9
    $region8: #{transformer_forward.49} parent=1 // pred_region
      _
    $region9: #{transformer_forward.49} parent=1 // pred_fallthru
      _
    // Predicated region
    $region10: #{transformer_forward.49} parent=1 // pred_check
      _
    $region11: #{transformer_forward.49} parent=1 // pred_check_branch
      %14 = sbr.rel (0) target = $region13
    $region12: #{transformer_forward.49} parent=1 // pred_region
      _
    $region13: #{transformer_forward.49} parent=1 // pred_fallthru
      _
    %p16 = scmp.eq.s32.totalorder 0, 0
    // Predicated region
    $region14: #{transformer_forward.49} parent=1 // pred_check
      %p17 = pneg %p16
    $region15: #{transformer_forward.49} parent=1 // pred_check_branch
      %19 = sbr.rel (%p17) target = $region17
    $region16: #{transformer_forward.49} parent=1 // pred_region
      %vm20 = vcmask 408576
      %21 = vst.msk [vmem:[#allocation2] sm:$0xff] %vm20, 0.0
      %22 = vst.msk [vmem:[#allocation2 + $0x8] sm:$0xff] %vm20, 0.0
    $region17: #{transformer_forward.49} parent=1 // pred_fallthru
      _
    %v23 = vld [vmem:[#allocation2] sm:$0xff]
    %v24 = vld [vmem:[#allocation2 + $0x8] sm:$0xff]
    %v25 = vld [vmem:[%s0] sm:$0xf]
    %v26 = vld [vmem:[%s0 + $0x4] sm:$0xf]
    %v27 = vld [vmem:[%s1] sm:$0xf]
    %v28 = vld [vmem:[%s1 + $0x4] sm:$0xf]
    %v29 = vld [vmem:[%s1 + $0x8] sm:$0xf]
    %v30 = vld [vmem:[%s1 + $0xc] sm:$0xf]
    %v33 = vunpack.c.l.b16 %v25
    %v34 = vunpack.c.l.b16 %v26
    %v35 = vpack.c.b16 %v34, %v33
    %v40 = vunpack.c.l.b16 %v27
    %v41 = vunpack.c.l.b16 %v28
    %v42 = vunpack.c.l.b16 %v29
    %v43 = vunpack.c.l.b16 %v30
    %v44 = vpack.c.b16 %v41, %v40
    %v45 = vpack.c.b16 %v43, %v42
    %vm48 = vcmask 261120
    %v50 = vsel %vm48, %v35, 0
    %52 = vmatprep.subr.bf16.mxu0 0
    %53 = vmatpush1.bf16.msra.mxu0 0
    %54 = vmatprep.subr.bf16.mxu0 0
    %55 = vmatpush1.bf16.msra.mxu0 0
    %56 = vmatprep.subr.bf16.mxu0 0
    %57 = vmatpush1.bf16.msra.mxu0 0
    %58 = vmatprep.subr.bf16.mxu0 0
    %59 = vmatpush1.bf16.msra.mxu0 0
    %60 = vmatprep.subr.bf16.mxu0 0
    %61 = vmatpush1.bf16.msra.mxu0 0
    %62 = vmatprep.subr.bf16.mxu0 0
    %63 = vmatpush1.bf16.msra.mxu0 0
    %64 = vmatprep.subr.bf16.mxu0 0
    %65 = vmatpush1.bf16.msra.mxu0 %v45
    %66 = vmatprep.subr.bf16.mxu0 0
    %67 = vmatpush1.bf16.msra.mxu0 %v44
    %68 = vmatprep.subr.bf16.mxu0 0
    %69 = vmatpush2.bf16.msra.mxu0 0
    %70 = vmatprep.subr.bf16.mxu0 0
    %71 = vmatpush2.bf16.msra.mxu0 0
    %72 = vmatprep.subr.bf16.mxu0 0
    %73 = vmatpush2.bf16.msra.mxu0 0
    %74 = vmatprep.subr.bf16.mxu0 0
    %75 = vmatpush2.bf16.msra.mxu0 0
    %76 = vmatprep.subr.bf16.mxu0 0
    %77 = vmatpush2.bf16.msra.mxu0 0
    %78 = vmatprep.subr.bf16.mxu0 0
    %79 = vmatpush2.bf16.msra.mxu0 0
    %80 = vmatprep.subr.bf16.mxu0 0
    %81 = vmatpush2.bf16.msra.mxu0 0
    %82 = vmatprep.subr.bf16.mxu0 0
    %83 = vmatpush2.bf16.msra.mxu0 0
    %84 = vmatprep.mubr.bf16.mxu0 0
    %85 = vmatmul.mubr.bf16.gmra.mxu0 %v50
    %v86 = vpop.f32.mrf.mxu0
    %v87 = vadd.f32 0.0, %v86
    %v88 = vpop.f32.mrf.mxu0
    %v89 = vpop.f32.mrf.mxu0
    %v90 = vadd.f32 0.0, %v89
    %v91 = vpop.f32.mrf.mxu0
    %92 = vdwg.mxu0
    %v93 = vadd.f32 %v23, %v87
    %v94 = vadd.f32 %v24, %v90
    %vm95 = vcmask 408576
    %96 = vst.msk [vmem:[#allocation2] sm:$0xff] %vm95, %v93
    %97 = vst.msk [vmem:[#allocation2 + $0x8] sm:$0xff] %vm95, %v94
    // Predicated region
    $region18: #{transformer_forward.49} parent=1 // pred_check
      %p98 = pneg %p16
    $region19: #{transformer_forward.49} parent=1 // pred_check_branch
      %100 = sbr.rel (%p98) target = $region21
    $region20: #{transformer_forward.49} parent=1 // pred_region
      %v101 = vld [vmem:[#allocation2] sm:$0xff]
      %v102 = vld [vmem:[#allocation2 + $0x8] sm:$0xff]
      %v103 = vld [vmem:[%s2] sm:$0x1]
      %v105 = vlaneseq
      %v106 = vshrl.u32 %v105, 7
      %v107 = vsub.s32 0, %v106
      %v108 = vrot.slane %v103, %v107
      %v110 = vadd.f32 %v101, %v108
      %v111 = vadd.f32 %v102, %v108
      %112 = vst.msk [vmem:[#allocation3] sm:$0xff] %vm95, %v110
      %113 = vst.msk [vmem:[#allocation3 + $0x8] sm:$0xff] %vm95, %v111
    $region21: #{transformer_forward.49} parent=1 // pred_fallthru
      _
    // Predicated region
    $region22: #{transformer_forward.49} parent=1 // pred_check
      _
    $region23: #{transformer_forward.49} parent=1 // pred_check_branch
      %115 = sbr.rel (0) target = $region25
    $region24: #{transformer_forward.49} parent=1 // pred_region
      %s117 = ssub.s32 256, 256
      %118 = vsyncadd [#allocation4], %s117
      %s119 = sshll.u32 [#allocation3], 4
      %s120 = int_to_ptr.vmem [resolvable:$true] %s119
      %125 = dma.vmem_to_hbm [thread:$0]  %s120, 256, %s3, [#allocation4], 128, 128, 8
    $region25: #{transformer_forward.49} parent=1 // pred_fallthru
      _
    // Predicated region
    $region26: #{transformer_forward.49} parent=1 // pred_check
      _
    $region27: #{transformer_forward.49} parent=1 // pred_check_branch
      %127 = sbr.rel (0) target = $region29
    $region28: #{transformer_forward.49} parent=1 // pred_region
      %128 = dma.done [#allocation4], 256
    $region29: #{transformer_forward.49} parent=1 // pred_fallthru
      _
    %129 = vsyncpa [#allocation4], 1

</llo_original>
